<compile_context>
chip_gen: v6e
topology: v6e:2x2x1
jax: 0.10.0
libtpu: 0.0.40
codegen_flags: <defaults>
</compile_context>

<pallas_src>
import functools

import numpy as np
import jax
import jax.numpy as jnp
from jax import lax
from jax.experimental import pallas as pl
from jax.experimental.pallas import tpu as pltpu


# --------------------------------------------------------------------------
# Pallas kernel: fused query-fc + streamed similarity decomposition with
# column tiling and fused relu / row-sum / col-sum / running-max.
# Grid = (n_splits [parallel], row_tiles_per_split [arbitrary]).
# --------------------------------------------------------------------------
def simcam_kernel(x0_ref,   # (tm, Cf)   bf16, streamed query feature rows
                  wfc_ref,  # (Cf, Cout) bf16, resident fc weight (pre-transposed)
                  bfc_ref,  # (1, Cout)  f32,  fc bias / (h*w)
                  f1t_ref,  # (Cout, hw) bf16, resident fc(gallery), pre-transposed
                  rs_ref,   # (tm, 1)    f32 out: relu row sums for this row tile
                  st_ref,   # (2, hw)    f32 out: [0]=relu col sums, [1]=running max
                  *, tn):
    i = pl.program_id(1)
    tm = x0_ref.shape[0]
    hw = f1t_ref.shape[1]
    n_col = hw // tn

    # Per-split init of the resident stats block (col sums + running max).
    @pl.when(i == 0)
    def _init():
        st_ref[0:1, :] = jnp.zeros((1, hw), jnp.float32)
        st_ref[1:2, :] = jnp.full((1, hw), -jnp.inf, jnp.float32)

    # fc head on this query row tile: bf16 MXU, f32 accumulation, back to bf16.
    f0 = jnp.dot(x0_ref[...], wfc_ref[...], preferred_element_type=jnp.float32)
    f0 = (f0 + bfc_ref[...]).astype(jnp.bfloat16)                 # (tm, Cout)

    rs_ref[...] = jnp.zeros((tm, 1), jnp.float32)

    # Column-tiled similarity slab: each (tm, tn) MXU tile is reduced
    # immediately (bounds vreg pressure; overlaps MXU with VPU/XLU work).
    @pl.loop(0, n_col, unroll=bool(n_col <= 8))
    def _col(j):
        col0 = pl.multiple_of(j * tn, tn)
        d = jnp.dot(f0, f1t_ref[:, pl.ds(col0, tn)],
                    preferred_element_type=jnp.float32)           # (tm, tn) f32
        d_relu = jnp.maximum(d, 0.0)
        rs_ref[...] += jnp.sum(d_relu, axis=1, keepdims=True)
        st_ref[0:1, pl.ds(col0, tn)] += jnp.sum(d_relu, axis=0, keepdims=True)
        tmax = jnp.max(d, keepdims=True)                          # (1, 1)
        st_ref[1:2, pl.ds(col0, tn)] = jnp.maximum(
            st_ref[1:2, pl.ds(col0, tn)], jnp.broadcast_to(tmax, (1, tn)))


# --------------------------------------------------------------------------
# Glue: synthetic backbone, separable bilinear upsample, VMEM budgeting,
# wrapper, plain-JAX reference.
# --------------------------------------------------------------------------
def bilinear_matrix(out_size, in_size):
    """Row weights of F.interpolate(mode='bilinear', align_corners=False)."""
    # TODO(synk): half-pixel + border-clamp formula; not cross-checked against
    # torch.nn.functional.interpolate inside this script.
    o = np.arange(out_size, dtype=np.float64)
    src = (o + 0.5) * (in_size / out_size) - 0.5
    src = np.maximum(src, 0.0)
    i0 = np.minimum(np.floor(src).astype(np.int64), in_size - 1)
    i1 = np.minimum(i0 + 1, in_size - 1)
    frac = src - i0
    W = np.zeros((out_size, in_size), dtype=np.float64)
    W[np.arange(out_size), i0] += 1.0 - frac
    W[np.arange(out_size), i1] += frac
    return W.astype(np.float32)


def _extract_features(x_q, x_g, params):
    """Concat + synthetic backbone conv (stand-in for `model`), NHWC flatten."""
    x = jnp.concatenate([x_q, x_g], axis=0)                       # (2, Cin, H, W)
    feats = lax.conv_general_dilated(
        x, params["conv_w"], window_strides=(4, 4), padding=[(1, 1), (1, 1)],
        dimension_numbers=("NCHW", "OIHW", "NCHW"))
    feats = jnp.maximum(feats + params["conv_b"][None, :, None, None], 0.0)
    feats = jnp.transpose(feats, (0, 2, 3, 1))                    # permute(0,2,3,1)
    _, h, w, Cf = feats.shape
    return feats[0].reshape(h * w, Cf), feats[1].reshape(h * w, Cf), h, w


def _upsample(maps_hw, H, W):
    """Separable bilinear (align_corners=False) upsample (2, h, w) -> (2, H, W)."""
    _, h, w = maps_hw.shape
    wH = jnp.asarray(bilinear_matrix(H, h))
    wW = jnp.asarray(bilinear_matrix(W, w))
    return jnp.einsum("Hh,nhw,Ww->nHW", wH, maps_hw, wW)


def _vmem_capacity_bytes():
    try:
        return int(pltpu.get_tpu_info().vmem_capacity_bytes)
    except Exception:
        return 64 * 1024 * 1024          # conservative fallback (v7x per-TC)


def _vmem_estimate(tm, tn, hw, cf, cout):
    resident = 2 * (cf * cout + cout * hw) + 4 * cout    # bf16 wfc + f1t, f32 bias (Buffered(1))
    streamed = 2 * (tm * cf * 2)                         # bf16 x0 tile, double-buffered
    outputs = 2 * (tm * 4) + 2 * (2 * hw * 4)            # rs + st output buffers
    live = tm * cout * 6 + 2 * tm * tn * 4 + tm * 4 + 4 * hw   # f0, d/relu tile, misc
    return resident + streamed + outputs + live + (1 << 20)     # ~1 MiB slack


def _auto_tm(hw, tn, cf, cout, budget):
    for cand in (512, 384, 256, 128):
        if cand <= hw and hw % cand == 0 and \
           _vmem_estimate(cand, tn, hw, cf, cout) <= budget:
            return cand
    for cand in range(min(hw, 128), 0, -8):
        if hw % cand == 0:
            return cand
    return hw


def simcam_forward(x_q, x_g, params, point=None, tm=None, tn=512):
    # TODO(synk): Point_Specific path (point is not None: replicate-pad +
    # query-point bilinear sampling of the 4-D decomposition) not implemented.
    assert point is None
    _, _, H, W = x_q.shape
    x0f, x1f, h, w = _extract_features(x_q, x_g, params)
    hw, Cf = x0f.shape
    Cout = params["fc_w"].shape[0]

    # ---- fc head hoisted to the wrapper for the gallery image (f32),
    #      plus exact rank-1 "plain sum" terms for the max<0 branch.
    wfc_t = params["fc_w"].T                                   # (Cf, Cout)
    bfc = params["fc_b"] / float(hw)                           # (Cout,)
    f1 = x1f @ wfc_t + bfc[None, :]                            # (hw, Cout)
    s1 = jnp.sum(f1, axis=0)                                   # (Cout,) = sum_g f1[g]
    s0 = jnp.sum(x0f, axis=0) @ wfc_t + params["fc_b"]         # (Cout,) = sum_q f0[q]
    rs_all = x0f @ (wfc_t @ s1) + jnp.dot(bfc, s1)             # (hw,)  sum_g D[q, g]
    cs_all = f1 @ s0                                           # (hw,)  sum_q D[q, g]

    # ---- bf16 operands for the kernel MXU, standard (M,K)@(K,N) layouts.
    x0_b = x0f.astype(jnp.bfloat16)                            # (hw, Cf)
    wfc_b = wfc_t.astype(jnp.bfloat16)                         # (Cf, Cout)
    f1t_b = f1.T.astype(jnp.bfloat16)                          # (Cout, hw)
    bfc_2d = bfc.reshape(1, Cout)

    # ---- tiling / VMEM budgeting (generation-aware).
    tn = min(tn, hw)
    if hw % tn:
        tn = hw                                                # single column tile
    assert tn == hw or tn % 128 == 0
    budget = _vmem_capacity_bytes() * 3 // 4                   # leave headroom
    if tm is None:
        tm = _auto_tm(hw, tn, Cf, Cout, budget)
    tm = min(tm, hw)
    assert hw % tm == 0 and tm % 8 == 0, "feature rows must tile evenly"
    tiles = hw // tm
    n_splits = 2 if tiles % 2 == 0 else 1                      # 2-way split for v7x megacore
    tps = tiles // n_splits

    est = _vmem_estimate(tm, tn, hw, Cf, Cout)
    ckw = {}
    if est > 32 * 1024 * 1024:
        ckw["vmem_limit_bytes"] = min(est, budget)

    kernel = functools.partial(simcam_kernel, tn=tn)
    rs_pos, st = pl.pallas_call(
        kernel,
        out_shape=(jax.ShapeDtypeStruct((hw, 1), jnp.float32),
                   jax.ShapeDtypeStruct((n_splits, 2, hw), jnp.float32)),
        grid=(n_splits, tps),
        in_specs=[
            pl.BlockSpec((tm, Cf), lambda c, i: (c * tps + i, 0)),     # streamed query rows
            pl.BlockSpec((Cf, Cout), lambda c, i: (0, 0),
                         pipeline_mode=pl.Buffered(1)),                # resident fc weight
            pl.BlockSpec((1, Cout), lambda c, i: (0, 0),
                         pipeline_mode=pl.Buffered(1)),                # resident fc bias
            pl.BlockSpec((Cout, hw), lambda c, i: (0, 0),
                         pipeline_mode=pl.Buffered(1)),                # resident fc(gallery)^T
        ],
        out_specs=(
            pl.BlockSpec((tm, 1), lambda c, i: (c * tps + i, 0)),      # relu row sums
            pl.BlockSpec((None, 2, hw), lambda c, i: (c, 0, 0)),       # per-split col sums + max
        ),
        compiler_params=pltpu.CompilerParams(
            dimension_semantics=("parallel", "arbitrary"), **ckw),
    )(x0_b, wfc_b, bfc_2d, f1t_b)

    # ---- combine split partials + normalize (exact for m > 0 and m < 0).
    m = jnp.max(st[:, 1, :])
    cs_pos = jnp.sum(st[:, 0, :], axis=0)                      # (hw,)
    rs_pos = rs_pos[:, 0]                                      # (hw,)
    pos = m > 0.0
    neg = m < 0.0
    inv_p = jnp.where(pos, 1.0 / jnp.where(pos, m, 1.0), 0.0)
    inv_n = jnp.where(neg, 1.0 / jnp.where(neg, -m, 1.0), 0.0)
    d1 = rs_pos * inv_p + (rs_pos - rs_all) * inv_n            # sum over (k, l)
    d2 = cs_pos * inv_p + (cs_pos - cs_all) * inv_n            # sum over (i, j)

    maps = jnp.stack([d1.reshape(h, w), d2.reshape(h, w)], axis=0)
    return _upsample(maps, H, W)


def simcam_reference(x_q, x_g, params):
    """Plain-JAX f32 reference of the original math (materializes D)."""
    _, _, H, W = x_q.shape
    x0f, x1f, h, w = _extract_features(x_q, x_g, params)
    hw = h * w
    wfc, bfc = params["fc_w"], params["fc_b"]
    f0 = x0f @ wfc.T + bfc / hw
    f1 = x1f @ wfc.T + bfc / hw
    D = f0 @ f1.T
    D = D / jnp.max(D)
    D = jnp.maximum(D, 0.0)
    maps = jnp.stack([D.sum(1).reshape(h, w), D.sum(0).reshape(h, w)], axis=0)
    return _upsample(maps, H, W)


if __name__ == "__main__":
    key = jax.random.PRNGKey(0)
    kq, kg, kcw, kcb, kfw, kfb = jax.random.split(key, 6)

    N, Cin, H, W = 1, 4, 128, 128      # per-image NCHW inputs -> h = w = 32, hw = 1024
    Cf, Cout, K = 128, 128, 3          # lane-aligned backbone / fc widths

    x_q = jax.random.normal(kq, (N, Cin, H, W), jnp.float32)   # query image
    x_g = jax.random.normal(kg, (N, Cin, H, W), jnp.float32)   # gallery image

    params = {
        "conv_w": 0.1 * jax.random.normal(kcw, (Cf, Cin, K, K), jnp.float32),
        "conv_b": 0.1 * jax.random.normal(kcb, (Cf,), jnp.float32),
        "fc_w": 0.1 * jax.random.normal(kfw, (Cout, Cf), jnp.float32),
        "fc_b": 0.1 * jax.random.normal(kfb, (Cout,), jnp.float32),
    }

    # tm=256 -> grid (2 splits, 2 row tiles) with a 2-iteration column loop,
    # exercising init, accumulate, split-combine and column-tiling paths.
    out = jax.block_until_ready(
        simcam_forward(x_q, x_g, params, point=None, tm=256))
    assert out.shape == (2, H, W) and out.dtype == jnp.float32

    ref = jax.block_until_ready(simcam_reference(x_q, x_g, params))
    err = float(np.max(np.abs(np.asarray(out) - np.asarray(ref))))
    # bf16 MXU operands (kernel) vs f32 end-to-end reference -> loose-ish tol.
    assert np.allclose(np.asarray(out), np.asarray(ref), rtol=3e-2, atol=3e-2), err

    print("KERNEL_OK")
</pallas_src>

<mosaic_0001>
module attributes {stable_mosaic.version = 11 : i64} {
  func.func @simcam_kernel(%arg0: i32, %arg1: i32, %arg2: memref<256x128xbf16, #tpu.memory_space<vmem>>, %arg3: memref<128x128xbf16, #tpu.memory_space<vmem>>, %arg4: memref<1x128xf32, #tpu.memory_space<vmem>>, %arg5: memref<128x1024xbf16, #tpu.memory_space<vmem>>, %arg6: memref<256x1xf32, #tpu.memory_space<vmem>>, %arg7: memref<1x2x1024xf32, #tpu.memory_space<vmem>>) attributes {dimension_semantics = [#tpu.dimension_semantics<parallel>, #tpu.dimension_semantics<arbitrary>], iteration_bounds = array<i64: 2, 2>, scalar_prefetch = 0 : i64, scratch_operands = 0 : i64, tpu.core_type = #tpu.core_type<tc>, window_params = [{transform_indices = @transform_0, window_bounds = array<i64: 256, 128>}, {pipeline_mode = #tpu.pipeline_mode<synchronous>, transform_indices = @transform_1, window_bounds = array<i64: 128, 128>}, {pipeline_mode = #tpu.pipeline_mode<synchronous>, transform_indices = @transform_2, window_bounds = array<i64: 1, 128>}, {pipeline_mode = #tpu.pipeline_mode<synchronous>, transform_indices = @transform_3, window_bounds = array<i64: 128, 1024>}, {transform_indices = @transform_4, window_bounds = array<i64: 256, 1>}, {transform_indices = @transform_5, window_bounds = array<i64: 1, 2, 1024>}]} {
    %c0_i32 = arith.constant 0 : i32
    %0 = arith.cmpi eq, %arg1, %c0_i32 : i32
    %1 = arith.extui %0 : i1 to i32
    %c0_i32_0 = arith.constant 0 : i32
    %2 = arith.cmpi ne, %1, %c0_i32_0 : i32
    scf.if %2 {
      %cst_50 = arith.constant 0.000000e+00 : f32
      %90 = vector.broadcast %cst_50 : f32 to vector<1x1024xf32>
      %c0_51 = arith.constant 0 : index
      %c0_52 = arith.constant 0 : index
      %c0_53 = arith.constant 0 : index
      %91 = vector.load %arg7[%c0_51, %c0_52, %c0_53] : memref<1x2x1024xf32, #tpu.memory_space<vmem>>, vector<1x1x1024xf32>
      %92 = vector.shape_cast %91 : vector<1x1x1024xf32> to vector<1x1024xf32>
      %93 = vector.shape_cast %90 : vector<1x1024xf32> to vector<1x1x1024xf32>
      tpu.vector_store %arg7[%c0_51, %c0_52, %c0_53], %93 {strides = array<i32>} : memref<1x2x1024xf32, #tpu.memory_space<vmem>>, vector<1x1x1024xf32>,
      %cst_54 = arith.constant 0xFF800000 : f32
      %94 = vector.broadcast %cst_54 : f32 to vector<1x1024xf32>
      %c0_55 = arith.constant 0 : index
      %c1_56 = arith.constant 1 : index
      %c0_57 = arith.constant 0 : index
      %95 = vector.load %arg7[%c0_55, %c1_56, %c0_57] : memref<1x2x1024xf32, #tpu.memory_space<vmem>>, vector<1x1x1024xf32>
      %96 = vector.shape_cast %95 : vector<1x1x1024xf32> to vector<1x1024xf32>
      %97 = vector.shape_cast %94 : vector<1x1024xf32> to vector<1x1x1024xf32>
      tpu.vector_store %arg7[%c0_55, %c1_56, %c0_57], %97 {strides = array<i32>} : memref<1x2x1024xf32, #tpu.memory_space<vmem>>, vector<1x1x1024xf32>,
    } else {
    }
    %c0 = arith.constant 0 : index
    %c0_1 = arith.constant 0 : index
    %3 = vector.load %arg2[%c0, %c0_1] : memref<256x128xbf16, #tpu.memory_space<vmem>>, vector<256x128xbf16>
    %c0_2 = arith.constant 0 : index
    %c0_3 = arith.constant 0 : index
    %4 = vector.load %arg3[%c0_2, %c0_3] : memref<128x128xbf16, #tpu.memory_space<vmem>>, vector<128x128xbf16>
    %cst = arith.constant dense<0.000000e+00> : vector<256x128xf32>
    %5 = tpu.matmul %3, %4, %cst {dimension_numbers = #tpu.dot_dimension_numbers<[1], [0], [0], [1], [0, 0, 1, 1], [], []>} : vector<256x128xbf16>, vector<128x128xbf16>, vector<256x128xf32> -> vector<256x128xf32>
    %c0_4 = arith.constant 0 : index
    %c0_5 = arith.constant 0 : index
    %6 = vector.load %arg4[%c0_4, %c0_5] : memref<1x128xf32, #tpu.memory_space<vmem>>, vector<1x128xf32>
    %7 = vector.broadcast %6 : vector<1x128xf32> to vector<256x128xf32>
    %8 = arith.addf %5, %7 : vector<256x128xf32>
    %9 = arith.truncf %8 : vector<256x128xf32> to vector<256x128xbf16>
    %cst_6 = arith.constant 0.000000e+00 : f32
    %10 = vector.broadcast %cst_6 : f32 to vector<256x1xf32>
    %c0_7 = arith.constant 0 : index
    %c0_8 = arith.constant 0 : index
    %11 = vector.load %arg6[%c0_7, %c0_8] : memref<256x1xf32, #tpu.memory_space<vmem>>, vector<256x1xf32>
    tpu.vector_store %arg6[%c0_7, %c0_8], %10 {strides = array<i32>} : memref<256x1xf32, #tpu.memory_space<vmem>>, vector<256x1xf32>,
    %c0_i32_9 = arith.constant 0 : i32
    %c1_i32 = arith.constant 1 : i32
    %12 = arith.muli %c0_i32_9, %c1_i32 : i32
    %c0_i32_10 = arith.constant 0 : i32
    %13 = arith.addi %c0_i32_10, %12 : i32
    %c512_i32 = arith.constant 512 : i32
    %14 = arith.muli %13, %c512_i32 : i32
    %15 = tpu.assume_multiple %14, 512 : i32
    %c0_11 = arith.constant 0 : index
    %16 = arith.index_cast %15 : i32 to index
    %17 = vector.load %arg5[%c0_11, %16] : memref<128x1024xbf16, #tpu.memory_space<vmem>>, vector<128x512xbf16>
    %cst_12 = arith.constant dense<0.000000e+00> : vector<256x512xf32>
    %18 = tpu.matmul %9, %17, %cst_12 {dimension_numbers = #tpu.dot_dimension_numbers<[1], [0], [0], [1], [0, 0, 1, 1], [], []>} : vector<256x128xbf16>, vector<128x512xbf16>, vector<256x512xf32> -> vector<256x512xf32>
    %cst_13 = arith.constant 0.000000e+00 : f32
    %19 = vector.broadcast %cst_13 : f32 to vector<256x512xf32>
    %20 = arith.maximumf %18, %19 : vector<256x512xf32>
    %c0_14 = arith.constant 0 : index
    %c0_15 = arith.constant 0 : index
    %21 = vector.load %arg6[%c0_14, %c0_15] : memref<256x1xf32, #tpu.memory_space<vmem>>, vector<256x1xf32>
    %cst_16 = arith.constant dense<0.000000e+00> : vector<256xf32>
    %22 = vector.multi_reduction <add>, %20, %cst_16 [1] : vector<256x512xf32> to vector<256xf32>
    %23 = vector.shape_cast %22 : vector<256xf32> to vector<256x1xf32>
    %24 = arith.addf %21, %23 : vector<256x1xf32>
    %c0_17 = arith.constant 0 : index
    %c0_18 = arith.constant 0 : index
    %25 = vector.load %arg6[%c0_17, %c0_18] : memref<256x1xf32, #tpu.memory_space<vmem>>, vector<256x1xf32>
    tpu.vector_store %arg6[%c0_17, %c0_18], %24 {strides = array<i32>} : memref<256x1xf32, #tpu.memory_space<vmem>>, vector<256x1xf32>,
    %c0_19 = arith.constant 0 : index
    %c0_20 = arith.constant 0 : index
    %26 = arith.index_cast %15 : i32 to index
    %27 = vector.load %arg7[%c0_19, %c0_20, %26] : memref<1x2x1024xf32, #tpu.memory_space<vmem>>, vector<1x1x512xf32>
    %28 = vector.shape_cast %27 : vector<1x1x512xf32> to vector<1x512xf32>
    %cst_21 = arith.constant dense<0.000000e+00> : vector<512xf32>
    %29 = vector.multi_reduction <add>, %20, %cst_21 [0] : vector<256x512xf32> to vector<512xf32>
    %30 = vector.shape_cast %29 : vector<512xf32> to vector<1x512xf32>
    %31 = arith.addf %28, %30 : vector<1x512xf32>
    %c0_22 = arith.constant 0 : index
    %c0_23 = arith.constant 0 : index
    %32 = arith.index_cast %15 : i32 to index
    %33 = vector.load %arg7[%c0_22, %c0_23, %32] : memref<1x2x1024xf32, #tpu.memory_space<vmem>>, vector<1x1x512xf32>
    %34 = vector.shape_cast %33 : vector<1x1x512xf32> to vector<1x512xf32>
    %35 = vector.shape_cast %31 : vector<1x512xf32> to vector<1x1x512xf32>
    tpu.vector_store %arg7[%c0_22, %c0_23, %32], %35 {strides = array<i32>} : memref<1x2x1024xf32, #tpu.memory_space<vmem>>, vector<1x1x512xf32>,
    %36 = vector.shape_cast %18 : vector<256x512xf32> to vector<1x256x512xf32>
    %cst_24 = arith.constant dense<0xFF800000> : vector<1xf32>
    %37 = vector.multi_reduction <maximumf>, %36, %cst_24 [1, 2] : vector<1x256x512xf32> to vector<1xf32>
    %38 = vector.shape_cast %37 : vector<1xf32> to vector<1x1x1xf32>
    %39 = vector.extract %38[0, 0, 0] : f32 from vector<1x1x1xf32>
    %40 = vector.broadcast %39 : f32 to vector<1x1xf32>
    %c0_25 = arith.constant 0 : index
    %c1 = arith.constant 1 : index
    %41 = arith.index_cast %15 : i32 to index
    %42 = vector.load %arg7[%c0_25, %c1, %41] : memref<1x2x1024xf32, #tpu.memory_space<vmem>>, vector<1x1x512xf32>
    %43 = vector.shape_cast %42 : vector<1x1x512xf32> to vector<1x512xf32>
    %44 = vector.shape_cast %40 : vector<1x1xf32> to vector<1x1xf32>
    %45 = vector.broadcast %44 : vector<1x1xf32> to vector<1x512xf32>
    %46 = arith.maximumf %43, %45 : vector<1x512xf32>
    %c0_26 = arith.constant 0 : index
    %c1_27 = arith.constant 1 : index
    %47 = arith.index_cast %15 : i32 to index
    %48 = vector.load %arg7[%c0_26, %c1_27, %47] : memref<1x2x1024xf32, #tpu.memory_space<vmem>>, vector<1x1x512xf32>
    %49 = vector.shape_cast %48 : vector<1x1x512xf32> to vector<1x512xf32>
    %50 = vector.shape_cast %46 : vector<1x512xf32> to vector<1x1x512xf32>
    tpu.vector_store %arg7[%c0_26, %c1_27, %47], %50 {strides = array<i32>} : memref<1x2x1024xf32, #tpu.memory_space<vmem>>, vector<1x1x512xf32>,
    %c1_i32_28 = arith.constant 1 : i32
    %c1_i32_29 = arith.constant 1 : i32
    %51 = arith.muli %c1_i32_28, %c1_i32_29 : i32
    %c0_i32_30 = arith.constant 0 : i32
    %52 = arith.addi %c0_i32_30, %51 : i32
    %c512_i32_31 = arith.constant 512 : i32
    %53 = arith.muli %52, %c512_i32_31 : i32
    %54 = tpu.assume_multiple %53, 512 : i32
    %c0_32 = arith.constant 0 : index
    %55 = arith.index_cast %54 : i32 to index
    %56 = vector.load %arg5[%c0_32, %55] : memref<128x1024xbf16, #tpu.memory_space<vmem>>, vector<128x512xbf16>
    %cst_33 = arith.constant dense<0.000000e+00> : vector<256x512xf32>
    %57 = tpu.matmul %9, %56, %cst_33 {dimension_numbers = #tpu.dot_dimension_numbers<[1], [0], [0], [1], [0, 0, 1, 1], [], []>} : vector<256x128xbf16>, vector<128x512xbf16>, vector<256x512xf32> -> vector<256x512xf32>
    %cst_34 = arith.constant 0.000000e+00 : f32
    %58 = vector.broadcast %cst_34 : f32 to vector<256x512xf32>
    %59 = arith.maximumf %57, %58 : vector<256x512xf32>
    %c0_35 = arith.constant 0 : index
    %c0_36 = arith.constant 0 : index
    %60 = vector.load %arg6[%c0_35, %c0_36] : memref<256x1xf32, #tpu.memory_space<vmem>>, vector<256x1xf32>
    %cst_37 = arith.constant dense<0.000000e+00> : vector<256xf32>
    %61 = vector.multi_reduction <add>, %59, %cst_37 [1] : vector<256x512xf32> to vector<256xf32>
    %62 = vector.shape_cast %61 : vector<256xf32> to vector<256x1xf32>
    %63 = arith.addf %60, %62 : vector<256x1xf32>
    %c0_38 = arith.constant 0 : index
    %c0_39 = arith.constant 0 : index
    %64 = vector.load %arg6[%c0_38, %c0_39] : memref<256x1xf32, #tpu.memory_space<vmem>>, vector<256x1xf32>
    tpu.vector_store %arg6[%c0_38, %c0_39], %63 {strides = array<i32>} : memref<256x1xf32, #tpu.memory_space<vmem>>, vector<256x1xf32>,
    %c0_40 = arith.constant 0 : index
    %c0_41 = arith.constant 0 : index
    %65 = arith.index_cast %54 : i32 to index
    %66 = vector.load %arg7[%c0_40, %c0_41, %65] : memref<1x2x1024xf32, #tpu.memory_space<vmem>>, vector<1x1x512xf32>
    %67 = vector.shape_cast %66 : vector<1x1x512xf32> to vector<1x512xf32>
    %cst_42 = arith.constant dense<0.000000e+00> : vector<512xf32>
    %68 = vector.multi_reduction <add>, %59, %cst_42 [0] : vector<256x512xf32> to vector<512xf32>
    %69 = vector.shape_cast %68 : vector<512xf32> to vector<1x512xf32>
    %70 = arith.addf %67, %69 : vector<1x512xf32>
    %c0_43 = arith.constant 0 : index
    %c0_44 = arith.constant 0 : index
    %71 = arith.index_cast %54 : i32 to index
    %72 = vector.load %arg7[%c0_43, %c0_44, %71] : memref<1x2x1024xf32, #tpu.memory_space<vmem>>, vector<1x1x512xf32>
    %73 = vector.shape_cast %72 : vector<1x1x512xf32> to vector<1x512xf32>
    %74 = vector.shape_cast %70 : vector<1x512xf32> to vector<1x1x512xf32>
    tpu.vector_store %arg7[%c0_43, %c0_44, %71], %74 {strides = array<i32>} : memref<1x2x1024xf32, #tpu.memory_space<vmem>>, vector<1x1x512xf32>,
    %75 = vector.shape_cast %57 : vector<256x512xf32> to vector<1x256x512xf32>
    %cst_45 = arith.constant dense<0xFF800000> : vector<1xf32>
    %76 = vector.multi_reduction <maximumf>, %75, %cst_45 [1, 2] : vector<1x256x512xf32> to vector<1xf32>
    %77 = vector.shape_cast %76 : vector<1xf32> to vector<1x1x1xf32>
    %78 = vector.extract %77[0, 0, 0] : f32 from vector<1x1x1xf32>
    %79 = vector.broadcast %78 : f32 to vector<1x1xf32>
    %c0_46 = arith.constant 0 : index
    %c1_47 = arith.constant 1 : index
    %80 = arith.index_cast %54 : i32 to index
    %81 = vector.load %arg7[%c0_46, %c1_47, %80] : memref<1x2x1024xf32, #tpu.memory_space<vmem>>, vector<1x1x512xf32>
    %82 = vector.shape_cast %81 : vector<1x1x512xf32> to vector<1x512xf32>
    %83 = vector.shape_cast %79 : vector<1x1xf32> to vector<1x1xf32>
    %84 = vector.broadcast %83 : vector<1x1xf32> to vector<1x512xf32>
    %85 = arith.maximumf %82, %84 : vector<1x512xf32>
    %c0_48 = arith.constant 0 : index
    %c1_49 = arith.constant 1 : index
    %86 = arith.index_cast %54 : i32 to index
    %87 = vector.load %arg7[%c0_48, %c1_49, %86] : memref<1x2x1024xf32, #tpu.memory_space<vmem>>, vector<1x1x512xf32>
    %88 = vector.shape_cast %87 : vector<1x1x512xf32> to vector<1x512xf32>
    %89 = vector.shape_cast %85 : vector<1x512xf32> to vector<1x1x512xf32>
    tpu.vector_store %arg7[%c0_48, %c1_49, %86], %89 {strides = array<i32>} : memref<1x2x1024xf32, #tpu.memory_space<vmem>>, vector<1x1x512xf32>,
    %c2_i32 = arith.constant 2 : i32
    return
  }
  func.func @transform_0(%arg0: i32, %arg1: i32) -> (i32, i32) {
    %c2_i32 = arith.constant 2 : i32
    %0 = arith.muli %arg0, %c2_i32 : i32
    %1 = arith.addi %0, %arg1 : i32
    %c0_i32 = arith.constant 0 : i32
    %c0_i32_0 = arith.constant 0 : i32
    return %1, %c0_i32 : i32, i32
  }
  func.func @transform_1(%arg0: i32, %arg1: i32) -> (i32, i32) {
    %c0_i32 = arith.constant 0 : i32
    %c0_i32_0 = arith.constant 0 : i32
    %c0_i32_1 = arith.constant 0 : i32
    return %c0_i32, %c0_i32_0 : i32, i32
  }
  func.func @transform_2(%arg0: i32, %arg1: i32) -> (i32, i32) {
    %c0_i32 = arith.constant 0 : i32
    %c0_i32_0 = arith.constant 0 : i32
    %c0_i32_1 = arith.constant 0 : i32
    return %c0_i32, %c0_i32_0 : i32, i32
  }
  func.func @transform_3(%arg0: i32, %arg1: i32) -> (i32, i32) {
    %c0_i32 = arith.constant 0 : i32
    %c0_i32_0 = arith.constant 0 : i32
    %c0_i32_1 = arith.constant 0 : i32
    return %c0_i32, %c0_i32_0 : i32, i32
  }
  func.func @transform_4(%arg0: i32, %arg1: i32) -> (i32, i32) {
    %c2_i32 = arith.constant 2 : i32
    %0 = arith.muli %arg0, %c2_i32 : i32
    %1 = arith.addi %0, %arg1 : i32
    %c0_i32 = arith.constant 0 : i32
    %c0_i32_0 = arith.constant 0 : i32
    return %1, %c0_i32 : i32, i32
  }
  func.func @transform_5(%arg0: i32, %arg1: i32) -> (i32, i32, i32) {
    %c0_i32 = arith.constant 0 : i32
    %c0_i32_0 = arith.constant 0 : i32
    %c0_i32_1 = arith.constant 0 : i32
    return %arg0, %c0_i32, %c0_i32_0 : i32, i32, i32
  }
}

</mosaic_0001>

<llo_original>
// kernel: tpu_custom_call.1
$region0: #{tpu_custom_call.1}
  #allocation0 [shape = 'u32[]', space=smem, size = 0x4, offset = 0x4, fixed_abs, tag = 'smem constant byte address 0x4 - core index']
  #allocation1 [shape = 'u32[144,128]{1,0:T(1,128)}', space=vmem, size = 0x12000, scoped, tag = 'internal scratch']
  %s0 = inlined_call_operand.hbm [shape: bf16[1024,128], index: 0, kind: input, shape index: {}]
  %s1 = inlined_call_operand.hbm [shape: bf16[128,128], index: 1, kind: input, shape index: {}]
  %s2 = inlined_call_operand.vmem [shape: f32[1,128], index: 2, kind: input, shape index: {}]
  %s3 = inlined_call_operand.hbm [shape: bf16[128,1024], index: 3, kind: input, shape index: {}]
  %s4 = inlined_call_operand.vmem [shape: f32[1024,1], index: 4, kind: output, shape index: {0}]
  %s5 = inlined_call_operand.hbm [shape: f32[2,2,1024], index: 5, kind: output, shape index: {1}]
  %6 = xla_tuple %s4, %s5
  %s7 = sld [smem:[#allocation0]]
  $region73: #{tpu_custom_call.1} parent=0
    _
  %s9 = ssub.s32 1, %s7
  %s10 = scalar_select 0, %s9, %s7
  $region1: #{tpu_custom_call.1} parent=0
    #allocation2 [shape = 'u8[131072]{0}', space=vmem, size = 0x20000, scoped, tag = 'input window, operand 0']
    #allocation3 [shape = 's32[2]{0}', space=sflag, size = 0x8, scoped, tag = 'scoped memory for tpu_custom_call.1']
    #allocation4 [shape = 's32[2]{0}', space=sflag, size = 0x8, scoped, tag = 'scoped memory for tpu_custom_call.1']
    #allocation5 [shape = 'u8[32768]{0}', space=vmem, size = 0x8000, scoped, tag = 'input window, operand 1, single buffered']
    #allocation6 [shape = 's32[1]{0}', space=sflag, size = 0x4, scoped, tag = 'scoped memory for tpu_custom_call.1']
    #allocation7 [shape = 'u8[262144]{0}', space=vmem, size = 0x40000, scoped, tag = 'input window, operand 3, single buffered']
    #allocation8 [shape = 'u8[16384]{0}', space=vmem, size = 0x4000, scoped, tag = 'output window, operand 1']
    %11 = vsyncpa [#allocation3], 0
    %s12 = scalar_lea.sflag [#allocation3], 1
    %13 = vsyncpa %s12, 0
    %14 = vsyncpa [#allocation6], 0
    %15 = vsyncpa [#allocation4], 0
    %s16 = scalar_lea.sflag [#allocation4], 1
    %17 = vsyncpa %s16, 0
    loop: start=0, step=1, limit=6
    $region2: #{tpu_custom_call.1} parent=1 // loop_pre_header
      _
    $region3: #{tpu_custom_call.1} parent=1 // loop_header
      %s19 = sphi 0, %s23
      %p20 = scmp.ge.s32.totalorder %s19, 6
      %s26 = sphi 0, %s38
      %s27 = sphi 0, %s34
      %s28 = sphi 0, %s26
      %s29 = sphi 0, %s27
      %s30 = sphi 0, %s28
      %s31 = sphi 0, %s29
      %s45 = sphi 0, %s47
      %s48 = sphi 0, %s45
      %s49 = sphi 0, %s48
      %s65 = sphi 0, %s49
      %s69 = sphi 0, %s69
      %s71 = sphi 0, %s69
      %s72 = sphi 0, %s71
      %s86 = sphi 0, %s72
      %s90 = sphi 0, %s90
      %s92 = sphi 0, %s90
      %s93 = sphi 0, %s92
      %s107 = sphi 0, %s93
      %s111 = sphi 0, %s111
      %s113 = sphi 0, %s111
      %s114 = sphi 0, %s113
      %s128 = sphi 0, %s114
      %s138 = sphi 0, %s140
      %s141 = sphi 0, %s138
      %s142 = sphi 0, %s141
      %s158 = sphi 0, %s142
      %s164 = sphi 0, %s166
      %s167 = sphi 0, %s164
      %s168 = sphi 0, %s167
      %s184 = sphi 0, %s168
    $region4: #{tpu_custom_call.1} parent=1 // loop_header_branch
      %22 = sbr.rel (%p20) target = $region8
    $region5: #{tpu_custom_call.1} parent=1 // loop_body
      %s24 = ssub.s32 %s19, 1
      %s25 = ssub.s32 %s19, 2
      %s32 = sadd.s32 1, %s27
      %p33 = scmp.ge.s32.totalorder %s32, 2
      %s34 = scalar_select %p33, 0, %s32
      %s35 = sadd.s32 1, %s26
      %s36 = scalar_select %p33, %s35, %s26
      %p37 = scmp.ge.s32.totalorder %s36, 2
      %s38 = scalar_select %p37, 0, %s36
      %s39 = smul.u32 %s26, 2
      %s40 = sadd.s32 %s39, %s27
      %s41 = smul.u32 %s38, 2
      %s42 = sadd.s32 %s41, %s34
      %s43 = ssub.s32 %s40, %s42
      %p44 = scmp.eq.s32.totalorder %s43, 0
      %s46 = sadd.s32 %s45, 1
      %s47 = scalar_select %p44, %s45, %s46
      %p50 = pneg %p44
      %p51 = scmp.eq.s32.totalorder %s19, 3
      %p52 = por %p50, %p51
      %p53 = scmp.ne.s32.totalorder %s45, %s48
      %p54 = scmp.eq.s32.totalorder %s19, 0
      %p55 = por %p53, %p54
      %p56 = scmp.ne.s32.totalorder %s45, %s48
      %p57 = scmp.eq.s32.totalorder %s24, 3
      %p58 = por %p56, %p57
      %p59 = scmp.ne.s32.totalorder %s48, %s49
      %p60 = scmp.eq.s32.totalorder %s24, 0
      %p61 = por %p59, %p60
      %p62 = scmp.ne.s32.totalorder %s48, %s49
      %p63 = scmp.eq.s32.totalorder %s25, 3
      %p64 = por %p62, %p63
      %p66 = scmp.ne.s32.totalorder %s49, %s65
      %p67 = scmp.eq.s32.totalorder %s25, 0
      %p68 = por %p66, %p67
      %s70 = sadd.s32 %s69, 1
      %p73 = scmp.eq.s32.totalorder %s19, 3
      %p74 = scmp.ne.s32.totalorder %s69, %s71
      %p75 = scmp.eq.s32.totalorder %s19, 0
      %p76 = por %p74, %p75
      %p77 = scmp.ne.s32.totalorder %s69, %s71
      %p78 = scmp.eq.s32.totalorder %s24, 3
      %p79 = por %p77, %p78
      %p80 = scmp.ne.s32.totalorder %s71, %s72
      %p81 = scmp.eq.s32.totalorder %s24, 0
      %p82 = por %p80, %p81
      %p83 = scmp.ne.s32.totalorder %s71, %s72
      %p84 = scmp.eq.s32.totalorder %s25, 3
      %p85 = por %p83, %p84
      %p87 = scmp.ne.s32.totalorder %s72, %s86
      %p88 = scmp.eq.s32.totalorder %s25, 0
      %p89 = por %p87, %p88
      %s91 = sadd.s32 %s90, 1
      %p94 = scmp.eq.s32.totalorder %s19, 3
      %p95 = scmp.ne.s32.totalorder %s90, %s92
      %p96 = scmp.eq.s32.totalorder %s19, 0
      %p97 = por %p95, %p96
      %p98 = scmp.ne.s32.totalorder %s90, %s92
      %p99 = scmp.eq.s32.totalorder %s24, 3
      %p100 = por %p98, %p99
      %p101 = scmp.ne.s32.totalorder %s92, %s93
      %p102 = scmp.eq.s32.totalorder %s24, 0
      %p103 = por %p101, %p102
      %p104 = scmp.ne.s32.totalorder %s92, %s93
      %p105 = scmp.eq.s32.totalorder %s25, 3
      %p106 = por %p104, %p105
      %p108 = scmp.ne.s32.totalorder %s93, %s107
      %p109 = scmp.eq.s32.totalorder %s25, 0
      %p110 = por %p108, %p109
      %s112 = sadd.s32 %s111, 1
      %p115 = scmp.eq.s32.totalorder %s19, 3
      %p116 = scmp.ne.s32.totalorder %s111, %s113
      %p117 = scmp.eq.s32.totalorder %s19, 0
      %p118 = por %p116, %p117
      %p119 = scmp.ne.s32.totalorder %s111, %s113
      %p120 = scmp.eq.s32.totalorder %s24, 3
      %p121 = por %p119, %p120
      %p122 = scmp.ne.s32.totalorder %s113, %s114
      %p123 = scmp.eq.s32.totalorder %s24, 0
      %p124 = por %p122, %p123
      %p125 = scmp.ne.s32.totalorder %s113, %s114
      %p126 = scmp.eq.s32.totalorder %s25, 3
      %p127 = por %p125, %p126
      %p129 = scmp.ne.s32.totalorder %s114, %s128
      %p130 = scmp.eq.s32.totalorder %s25, 0
      %p131 = por %p129, %p130
      %s132 = smul.u32 %s26, 2
      %s133 = sadd.s32 %s132, %s27
      %s134 = smul.u32 %s38, 2
      %s135 = sadd.s32 %s134, %s34
      %s136 = ssub.s32 %s133, %s135
      %p137 = scmp.eq.s32.totalorder %s136, 0
      %s139 = sadd.s32 %s138, 1
      %s140 = scalar_select %p137, %s138, %s139
      %p143 = pneg %p137
      %p144 = scmp.eq.s32.totalorder %s19, 3
      %p145 = por %p143, %p144
      %p146 = scmp.ne.s32.totalorder %s138, %s141
      %p147 = scmp.eq.s32.totalorder %s19, 0
      %p148 = por %p146, %p147
      %p149 = scmp.ne.s32.totalorder %s138, %s141
      %p150 = scmp.eq.s32.totalorder %s24, 3
      %p151 = por %p149, %p150
      %p152 = scmp.ne.s32.totalorder %s141, %s142
      %p153 = scmp.eq.s32.totalorder %s24, 0
      %p154 = por %p152, %p153
      %p155 = scmp.ne.s32.totalorder %s141, %s142
      %p156 = scmp.eq.s32.totalorder %s25, 3
      %p157 = por %p155, %p156
      %p159 = scmp.ne.s32.totalorder %s142, %s158
      %p160 = scmp.eq.s32.totalorder %s25, 0
      %p161 = por %p159, %p160
      %s162 = ssub.s32 %s26, %s38
      %p163 = scmp.eq.s32.totalorder %s162, 0
      %s165 = sadd.s32 %s164, 1
      %s166 = scalar_select %p163, %s164, %s165
      %p169 = pneg %p163
      %p170 = scmp.eq.s32.totalorder %s19, 3
      %p171 = por %p169, %p170
      %p172 = scmp.ne.s32.totalorder %s164, %s167
      %p173 = scmp.eq.s32.totalorder %s19, 0
      %p174 = por %p172, %p173
      %p175 = scmp.ne.s32.totalorder %s164, %s167
      %p176 = scmp.eq.s32.totalorder %s24, 3
      %p177 = por %p175, %p176
      %p178 = scmp.ne.s32.totalorder %s167, %s168
      %p179 = scmp.eq.s32.totalorder %s24, 0
      %p180 = por %p178, %p179
      %p181 = scmp.ne.s32.totalorder %s167, %s168
      %p182 = scmp.eq.s32.totalorder %s25, 3
      %p183 = por %p181, %p182
      %p185 = scmp.ne.s32.totalorder %s168, %s184
      %p186 = scmp.eq.s32.totalorder %s25, 0
      %p187 = por %p185, %p186
      %p188 = scmp.le.s32.totalorder 1, %s19
      %p189 = scmp.lt.s32.totalorder %s19, 5
      %p190 = pnand %p188, %p189
      %p191 = pneg %p190
      // Predicated region
      $region9: #{tpu_custom_call.1} parent=5 // pred_check
        _
      $region10: #{tpu_custom_call.1} parent=5 // pred_check_branch
        %193 = sbr.rel (%p190) target = $region12
      $region11: #{tpu_custom_call.1} parent=5 // pred_region
        %s194 = ssub.s32 %s19, 1
        // Predicated region
        $region13: #{tpu_custom_call.1} parent=11 // pred_check
          %p195 = pneg %p82
        $region14: #{tpu_custom_call.1} parent=11 // pred_check_branch
          %197 = sbr.rel (%p195) target = $region16
        $region15: #{tpu_custom_call.1} parent=11 // pred_region
          %s199 = ssub.s32 1024, 1024
          %200 = vsyncadd [#allocation6], %s199
          %s201 = sshll.u32 [#allocation5], 4
          %s202 = int_to_ptr.vmem [resolvable:$true] %s201
          %207 = dma.hbm_to_vmem [thread:$0]  %s1, 1024, %s202, [#allocation6], 64, 64, 4
        $region16: #{tpu_custom_call.1} parent=11 // pred_fallthru
          _
        // Predicated region
        $region17: #{tpu_custom_call.1} parent=11 // pred_check
          %p208 = pneg %p103
        $region18: #{tpu_custom_call.1} parent=11 // pred_check_branch
          %210 = sbr.rel (%p208) target = $region20
        $region19: #{tpu_custom_call.1} parent=11 // pred_region
          _
        $region20: #{tpu_custom_call.1} parent=11 // pred_fallthru
          _
        // Predicated region
        $region21: #{tpu_custom_call.1} parent=11 // pred_check
          %p211 = pneg %p124
        $region22: #{tpu_custom_call.1} parent=11 // pred_check_branch
          %213 = sbr.rel (%p211) target = $region24
        $region23: #{tpu_custom_call.1} parent=11 // pred_region
          %s215 = ssub.s32 8192, 8192
          %216 = vsyncadd [#allocation6], %s215
          %s217 = sshll.u32 [#allocation7], 4
          %s218 = int_to_ptr.vmem [resolvable:$true] %s217
          %223 = dma.hbm_to_vmem [thread:$0]  %s3, 8192, %s218, [#allocation6], 512, 512, 32
        $region24: #{tpu_custom_call.1} parent=11 // pred_fallthru
          _
      $region12: #{tpu_custom_call.1} parent=5 // pred_fallthru
        _
      %p224 = scmp.lt.s32.totalorder %s19, 4
      // Predicated region
      $region25: #{tpu_custom_call.1} parent=5 // pred_check
        %p225 = pneg %p224
      $region26: #{tpu_custom_call.1} parent=5 // pred_check_branch
        %227 = sbr.rel (%p225) target = $region28
      $region27: #{tpu_custom_call.1} parent=5 // pred_region
        // Predicated region
        $region29: #{tpu_custom_call.1} parent=27 // pred_check
          %p228 = pneg %p55
        $region30: #{tpu_custom_call.1} parent=27 // pred_check_branch
          %230 = sbr.rel (%p228) target = $region32
        $region31: #{tpu_custom_call.1} parent=27 // pred_region
          %s231 = sand.u32 %s45, 1
          %s232 = scalar_lea.sflag [#allocation3], %s231
          %s233 = sand.u32 %s45, 1
          %s234 = smul.addr %s233, 128
          %s235 = scalar_lea.vmem [#allocation2], %s234
          %s236 = smul.u32 %s26, 2
          %s237 = sadd.s32 %s236, %s27
          %s238 = smul.u32 32, %s237
          %s240 = ssub.s32 2048, 2048
          %241 = vsyncadd %s232, %s240
          %s242 = smul.addr %s238, 64
          %s243 = scalar_lea.hbm %s0, %s242
          %s244 = sshll.u32 %s235, 4
          %s245 = int_to_ptr.vmem [resolvable:$true] %s244
          %250 = dma.hbm_to_vmem [thread:$0]  %s243, 2048, %s245, %s232, 64, 64, 4
        $region32: #{tpu_custom_call.1} parent=27 // pred_fallthru
          _
      $region28: #{tpu_custom_call.1} parent=5 // pred_fallthru
        _
      %p251 = scmp.le.s32.totalorder 1, %s19
      %p252 = scmp.lt.s32.totalorder %s19, 5
      %p253 = pnand %p251, %p252
      %p254 = pneg %p253
      // Predicated region
      $region33: #{tpu_custom_call.1} parent=5 // pred_check
        _
      $region34: #{tpu_custom_call.1} parent=5 // pred_check_branch
        %256 = sbr.rel (%p253) target = $region36
      $region35: #{tpu_custom_call.1} parent=5 // pred_region
        %s257 = ssub.s32 %s19, 1
        %s258 = sand.u32 %s48, 1
        %s259 = scalar_lea.sflag [#allocation3], %s258
        %s260 = sand.u32 %s48, 1
        %s261 = smul.addr %s260, 128
        %s262 = scalar_lea.vmem [#allocation2], %s261
        // Predicated region
        $region37: #{tpu_custom_call.1} parent=35 // pred_check
          %p263 = pneg %p61
        $region38: #{tpu_custom_call.1} parent=35 // pred_check_branch
          %265 = sbr.rel (%p263) target = $region40
        $region39: #{tpu_custom_call.1} parent=35 // pred_region
          %266 = dma.done %s259, 2048
        $region40: #{tpu_custom_call.1} parent=35 // pred_fallthru
          _
        // Predicated region
        $region41: #{tpu_custom_call.1} parent=35 // pred_check
          %p267 = pneg %p82
        $region42: #{tpu_custom_call.1} parent=35 // pred_check_branch
          %269 = sbr.rel (%p267) target = $region44
        $region43: #{tpu_custom_call.1} parent=35 // pred_region
          %270 = dma.done [#allocation6], 1024
        $region44: #{tpu_custom_call.1} parent=35 // pred_fallthru
          _
        // Predicated region
        $region45: #{tpu_custom_call.1} parent=35 // pred_check
          %p271 = pneg %p124
        $region46: #{tpu_custom_call.1} parent=35 // pred_check_branch
          %273 = sbr.rel (%p271) target = $region48
        $region47: #{tpu_custom_call.1} parent=35 // pred_region
          %274 = dma.done [#allocation6], 8192
        $region48: #{tpu_custom_call.1} parent=35 // pred_fallthru
          _
        %s275 = sand.u32 %s48, 1
        %s276 = scalar_lea.sflag [#allocation3], %s275
        %s277 = sand.u32 %s48, 1
        %s278 = smul.addr %s277, 128
        %s279 = scalar_lea.vmem [#allocation2], %s278
        %p280 = pneg %p61
        %p281 = pneg %p58
        %p282 = pneg %p82
        %p283 = pneg %p79
        %p284 = pneg %p103
        %p285 = pneg %p100
        %p286 = pneg %p124
        %p287 = pneg %p121
        %p288 = pneg %p154
        %p289 = pneg %p151
        %s290 = smul.u32 %s28, 2
        %s291 = sadd.s32 %s290, %s29
        %s292 = smul.u32 32, %s291
        %p293 = scmp.lt.s32.totalorder %s292, 127
        %s294 = scalar_select %p293, %s292, 127
        %s295 = smul.addr %s294, 8
        %s296 = scalar_lea.vmem %s4, %s295
        %p297 = pneg %p180
        %p298 = pneg %p177
        %s299 = sand.u32 %s167, 1
        %s300 = scalar_lea.sflag [#allocation4], %s299
        %s301 = sand.u32 %s167, 1
        %s302 = smul.addr %s301, 16
        %s303 = scalar_lea.vmem [#allocation8], %s302
        %s304 = smul.u32 %s28, 2
        %s305 = sadd.s32 %s304, %s29
        %s306 = smul.u32 32, %s305
        %s307 = smul.u32 %s28, 2
        %s308 = sadd.s32 %s307, %s29
        %s309 = smul.u32 32, %s308
        %p310 = scmp.lt.s32.totalorder %s309, 127
        %s311 = scalar_select %p310, %s309, 127
        %s312 = smul.addr %s311, 8
        %s313 = scalar_lea.vmem %s4, %s312
        %s314 = smul.u32 %s28, 2
        %s315 = sadd.s32 %s314, %s29
        %s316 = smul.u32 32, %s315
        %p318 = scmp.eq.s32.totalorder %s29, 0
        // Predicated region
        $region49: #{tpu_custom_call.1} parent=35 // pred_check
          %p319 = pneg %p318
        $region50: #{tpu_custom_call.1} parent=35 // pred_check_branch
          %321 = sbr.rel (%p319) target = $region52
        $region51: #{tpu_custom_call.1} parent=35 // pred_region
          %322 = vst [vmem:[%s303] ss:$2 sm:$0xff] 0.0
          %s323 = scalar_lea.vmem %s303, 1 [#allocation8]
          %324 = vst [vmem:[%s323] ss:$2 sm:$0xff] -inf
        $region52: #{tpu_custom_call.1} parent=35 // pred_fallthru
          _
        %v325 = vld [vmem:[%s262] sm:$0xf]
        %v326 = vld [vmem:[%s262 + $0x4] sm:$0xf]
        %v327 = vld [vmem:[%s262 + $0x8] sm:$0xf]
        %v328 = vld [vmem:[%s262 + $0xc] sm:$0xf]
        %v329 = vld [vmem:[%s262 + $0x10] sm:$0xf]
        %v330 = vld [vmem:[%s262 + $0x14] sm:$0xf]
        %v331 = vld [vmem:[%s262 + $0x18] sm:$0xf]
        %v332 = vld [vmem:[%s262 + $0x1c] sm:$0xf]
        %v333 = vld [vmem:[%s262 + $0x20] sm:$0xf]
        %v334 = vld [vmem:[%s262 + $0x24] sm:$0xf]
        %v335 = vld [vmem:[%s262 + $0x28] sm:$0xf]
        %v336 = vld [vmem:[%s262 + $0x2c] sm:$0xf]
        %v337 = vld [vmem:[%s262 + $0x30] sm:$0xf]
        %v338 = vld [vmem:[%s262 + $0x34] sm:$0xf]
        %v339 = vld [vmem:[%s262 + $0x38] sm:$0xf]
        %v340 = vld [vmem:[%s262 + $0x3c] sm:$0xf]
        %v341 = vld [vmem:[%s262 + $0x40] sm:$0xf]
        %v342 = vld [vmem:[%s262 + $0x44] sm:$0xf]
        %v343 = vld [vmem:[%s262 + $0x48] sm:$0xf]
        %v344 = vld [vmem:[%s262 + $0x4c] sm:$0xf]
        %v345 = vld [vmem:[%s262 + $0x50] sm:$0xf]
        %v346 = vld [vmem:[%s262 + $0x54] sm:$0xf]
        %v347 = vld [vmem:[%s262 + $0x58] sm:$0xf]
        %v348 = vld [vmem:[%s262 + $0x5c] sm:$0xf]
        %v349 = vld [vmem:[%s262 + $0x60] sm:$0xf]
        %v350 = vld [vmem:[%s262 + $0x64] sm:$0xf]
        %v351 = vld [vmem:[%s262 + $0x68] sm:$0xf]
        %v352 = vld [vmem:[%s262 + $0x6c] sm:$0xf]
        %v353 = vld [vmem:[%s262 + $0x70] sm:$0xf]
        %v354 = vld [vmem:[%s262 + $0x74] sm:$0xf]
        %v355 = vld [vmem:[%s262 + $0x78] sm:$0xf]
        %v356 = vld [vmem:[%s262 + $0x7c] sm:$0xf]
        %v357 = vld [vmem:[#allocation5] sm:$0xf]
        %v358 = vld [vmem:[#allocation5 + $0x4] sm:$0xf]
        %v359 = vld [vmem:[#allocation5 + $0x8] sm:$0xf]
        %v360 = vld [vmem:[#allocation5 + $0xc] sm:$0xf]
        %v361 = vld [vmem:[#allocation5 + $0x10] sm:$0xf]
        %v362 = vld [vmem:[#allocation5 + $0x14] sm:$0xf]
        %v363 = vld [vmem:[#allocation5 + $0x18] sm:$0xf]
        %v364 = vld [vmem:[#allocation5 + $0x1c] sm:$0xf]
        %v365 = vld [vmem:[#allocation5 + $0x20] sm:$0xf]
        %v366 = vld [vmem:[#allocation5 + $0x24] sm:$0xf]
        %v367 = vld [vmem:[#allocation5 + $0x28] sm:$0xf]
        %v368 = vld [vmem:[#allocation5 + $0x2c] sm:$0xf]
        %v369 = vld [vmem:[#allocation5 + $0x30] sm:$0xf]
        %v370 = vld [vmem:[#allocation5 + $0x34] sm:$0xf]
        %v371 = vld [vmem:[#allocation5 + $0x38] sm:$0xf]
        %v372 = vld [vmem:[#allocation5 + $0x3c] sm:$0xf]
        %v373 = vld [vmem:[%s2] sm:$0x1]
        %v375 = vlaneseq
        %v376 = vshrl.u32 %v375, 7
        %v377 = vsub.s32 0, %v376
        %v378 = vrot.slane %v373, %v377
        %v412 = vunpack.c.l.b16 %v325
        %v413 = vunpack.c.l.b16 %v326
        %v414 = vunpack.c.l.b16 %v327
        %v415 = vunpack.c.l.b16 %v328
        %v416 = vunpack.c.l.b16 %v329
        %v417 = vunpack.c.l.b16 %v330
        %v418 = vunpack.c.l.b16 %v331
        %v419 = vunpack.c.l.b16 %v332
        %v420 = vunpack.c.l.b16 %v333
        %v421 = vunpack.c.l.b16 %v334
        %v422 = vunpack.c.l.b16 %v335
        %v423 = vunpack.c.l.b16 %v336
        %v424 = vunpack.c.l.b16 %v337
        %v425 = vunpack.c.l.b16 %v338
        %v426 = vunpack.c.l.b16 %v339
        %v427 = vunpack.c.l.b16 %v340
        %v428 = vunpack.c.l.b16 %v341
        %v429 = vunpack.c.l.b16 %v342
        %v430 = vunpack.c.l.b16 %v343
        %v431 = vunpack.c.l.b16 %v344
        %v432 = vunpack.c.l.b16 %v345
        %v433 = vunpack.c.l.b16 %v346
        %v434 = vunpack.c.l.b16 %v347
        %v435 = vunpack.c.l.b16 %v348
        %v436 = vunpack.c.l.b16 %v349
        %v437 = vunpack.c.l.b16 %v350
        %v438 = vunpack.c.l.b16 %v351
        %v439 = vunpack.c.l.b16 %v352
        %v440 = vunpack.c.l.b16 %v353
        %v441 = vunpack.c.l.b16 %v354
        %v442 = vunpack.c.l.b16 %v355
        %v443 = vunpack.c.l.b16 %v356
        %v444 = vpack.c.b16 %v413, %v412
        %v445 = vpack.c.b16 %v415, %v414
        %v446 = vpack.c.b16 %v417, %v416
        %v447 = vpack.c.b16 %v419, %v418
        %v448 = vpack.c.b16 %v421, %v420
        %v449 = vpack.c.b16 %v423, %v422
        %v450 = vpack.c.b16 %v425, %v424
        %v451 = vpack.c.b16 %v427, %v426
        %v452 = vpack.c.b16 %v429, %v428
        %v453 = vpack.c.b16 %v431, %v430
        %v454 = vpack.c.b16 %v433, %v432
        %v455 = vpack.c.b16 %v435, %v434
        %v456 = vpack.c.b16 %v437, %v436
        %v457 = vpack.c.b16 %v439, %v438
        %v458 = vpack.c.b16 %v441, %v440
        %v459 = vpack.c.b16 %v443, %v442
        %v492 = vunpack.c.l.b16 %v357
        %v493 = vunpack.c.l.b16 %v358
        %v494 = vunpack.c.l.b16 %v359
        %v495 = vunpack.c.l.b16 %v360
        %v496 = vunpack.c.l.b16 %v361
        %v497 = vunpack.c.l.b16 %v362
        %v498 = vunpack.c.l.b16 %v363
        %v499 = vunpack.c.l.b16 %v364
        %v500 = vunpack.c.l.b16 %v365
        %v501 = vunpack.c.l.b16 %v366
        %v502 = vunpack.c.l.b16 %v367
        %v503 = vunpack.c.l.b16 %v368
        %v504 = vunpack.c.l.b16 %v369
        %v505 = vunpack.c.l.b16 %v370
        %v506 = vunpack.c.l.b16 %v371
        %v507 = vunpack.c.l.b16 %v372
        %v508 = vpack.c.b16 %v493, %v492
        %v509 = vpack.c.b16 %v495, %v494
        %v510 = vpack.c.b16 %v497, %v496
        %v511 = vpack.c.b16 %v499, %v498
        %v512 = vpack.c.b16 %v501, %v500
        %v513 = vpack.c.b16 %v503, %v502
        %v514 = vpack.c.b16 %v505, %v504
        %v515 = vpack.c.b16 %v507, %v506
        %524 = vmatprep.subr.bf16.mxu0 0
        %525 = vmatpush1.bf16.msra.mxu0 %v515
        %526 = vmatprep.subr.bf16.mxu0 0
        %527 = vmatpush1.bf16.msra.mxu0 %v514
        %528 = vmatprep.subr.bf16.mxu0 0
        %529 = vmatpush1.bf16.msra.mxu0 %v513
        %530 = vmatprep.subr.bf16.mxu0 0
        %531 = vmatpush1.bf16.msra.mxu0 %v512
        %532 = vmatprep.subr.bf16.mxu0 0
        %533 = vmatpush1.bf16.msra.mxu0 %v511
        %534 = vmatprep.subr.bf16.mxu0 0
        %535 = vmatpush1.bf16.msra.mxu0 %v510
        %536 = vmatprep.subr.bf16.mxu0 0
        %537 = vmatpush1.bf16.msra.mxu0 %v509
        %538 = vmatprep.subr.bf16.mxu0 0
        %539 = vmatpush1.bf16.msra.mxu0 %v508
        %540 = vmatprep.subr.bf16.mxu0 0
        %541 = vmatpush2.bf16.msra.mxu0 0
        %542 = vmatprep.subr.bf16.mxu0 0
        %543 = vmatpush2.bf16.msra.mxu0 0
        %544 = vmatprep.subr.bf16.mxu0 0
        %545 = vmatpush2.bf16.msra.mxu0 0
        %546 = vmatprep.subr.bf16.mxu0 0
        %547 = vmatpush2.bf16.msra.mxu0 0
        %548 = vmatprep.subr.bf16.mxu0 0
        %549 = vmatpush2.bf16.msra.mxu0 0
        %550 = vmatprep.subr.bf16.mxu0 0
        %551 = vmatpush2.bf16.msra.mxu0 0
        %552 = vmatprep.subr.bf16.mxu0 0
        %553 = vmatpush2.bf16.msra.mxu0 0
        %554 = vmatprep.subr.bf16.mxu0 0
        %555 = vmatpush2.bf16.msra.mxu0 0
        %556 = vmatprep.mubr.bf16.mxu0 0
        %557 = vmatmul.mubr.bf16.gmra.mxu0 %v444
        %v558 = vpop.f32.mrf.mxu0
        %v559 = vadd.f32 %v378, %v558
        %v560 = vpop.f32.mrf.mxu0
        %v561 = vpop.f32.mrf.mxu0
        %v562 = vadd.f32 %v378, %v561
        %v563 = vpop.f32.mrf.mxu0
        %564 = vmatprep.mubr.bf16.mxu0 0
        %565 = vmatmul.mubr.bf16.gmra.mxu0 %v445
        %v566 = vpop.f32.mrf.mxu0
        %v567 = vadd.f32 %v378, %v566
        %v568 = vpop.f32.mrf.mxu0
        %v569 = vpop.f32.mrf.mxu0
        %v570 = vadd.f32 %v378, %v569
        %v571 = vpop.f32.mrf.mxu0
        %572 = vmatprep.mubr.bf16.mxu0 0
        %573 = vmatmul.mubr.bf16.gmra.mxu0 %v446
        %v574 = vpop.f32.mrf.mxu0
        %v575 = vadd.f32 %v378, %v574
        %v576 = vpop.f32.mrf.mxu0
        %v577 = vpop.f32.mrf.mxu0
        %v578 = vadd.f32 %v378, %v577
        %v579 = vpop.f32.mrf.mxu0
        %580 = vmatprep.mubr.bf16.mxu0 0
        %581 = vmatmul.mubr.bf16.gmra.mxu0 %v447
        %v582 = vpop.f32.mrf.mxu0
        %v583 = vadd.f32 %v378, %v582
        %v584 = vpop.f32.mrf.mxu0
        %v585 = vpop.f32.mrf.mxu0
        %v586 = vadd.f32 %v378, %v585
        %v587 = vpop.f32.mrf.mxu0
        %588 = vmatprep.mubr.bf16.mxu0 0
        %589 = vmatmul.mubr.bf16.gmra.mxu0 %v448
        %v590 = vpop.f32.mrf.mxu0
        %v591 = vadd.f32 %v378, %v590
        %v592 = vpop.f32.mrf.mxu0
        %v593 = vpop.f32.mrf.mxu0
        %v594 = vadd.f32 %v378, %v593
        %v595 = vpop.f32.mrf.mxu0
        %596 = vmatprep.mubr.bf16.mxu0 0
        %597 = vmatmul.mubr.bf16.gmra.mxu0 %v449
        %v598 = vpop.f32.mrf.mxu0
        %v599 = vadd.f32 %v378, %v598
        %v600 = vpop.f32.mrf.mxu0
        %v601 = vpop.f32.mrf.mxu0
        %v602 = vadd.f32 %v378, %v601
        %v603 = vpop.f32.mrf.mxu0
        %604 = vmatprep.mubr.bf16.mxu0 0
        %605 = vmatmul.mubr.bf16.gmra.mxu0 %v450
        %v606 = vpop.f32.mrf.mxu0
        %v607 = vadd.f32 %v378, %v606
        %v608 = vpop.f32.mrf.mxu0
        %v609 = vpop.f32.mrf.mxu0
        %v610 = vadd.f32 %v378, %v609
        %v611 = vpop.f32.mrf.mxu0
        %612 = vmatprep.mubr.bf16.mxu0 0
        %613 = vmatmul.mubr.bf16.gmra.mxu0 %v451
        %v614 = vpop.f32.mrf.mxu0
        %v615 = vadd.f32 %v378, %v614
        %v616 = vpop.f32.mrf.mxu0
        %v617 = vpop.f32.mrf.mxu0
        %v618 = vadd.f32 %v378, %v617
        %v619 = vpop.f32.mrf.mxu0
        %620 = vmatprep.mubr.bf16.mxu0 0
        %621 = vmatmul.mubr.bf16.gmra.mxu0 %v452
        %v622 = vpop.f32.mrf.mxu0
        %v623 = vadd.f32 %v378, %v622
        %v624 = vpop.f32.mrf.mxu0
        %v625 = vpop.f32.mrf.mxu0
        %v626 = vadd.f32 %v378, %v625
        %v627 = vpop.f32.mrf.mxu0
        %628 = vmatprep.mubr.bf16.mxu0 0
        %629 = vmatmul.mubr.bf16.gmra.mxu0 %v453
        %v630 = vpop.f32.mrf.mxu0
        %v631 = vadd.f32 %v378, %v630
        %v632 = vpop.f32.mrf.mxu0
        %v633 = vpop.f32.mrf.mxu0
        %v634 = vadd.f32 %v378, %v633
        %v635 = vpop.f32.mrf.mxu0
        %636 = vmatprep.mubr.bf16.mxu0 0
        %637 = vmatmul.mubr.bf16.gmra.mxu0 %v454
        %v638 = vpop.f32.mrf.mxu0
        %v639 = vadd.f32 %v378, %v638
        %v640 = vpop.f32.mrf.mxu0
        %v641 = vpop.f32.mrf.mxu0
        %v642 = vadd.f32 %v378, %v641
        %v643 = vpop.f32.mrf.mxu0
        %644 = vmatprep.mubr.bf16.mxu0 0
        %645 = vmatmul.mubr.bf16.gmra.mxu0 %v455
        %v646 = vpop.f32.mrf.mxu0
        %v647 = vadd.f32 %v378, %v646
        %v648 = vpop.f32.mrf.mxu0
        %v649 = vpop.f32.mrf.mxu0
        %v650 = vadd.f32 %v378, %v649
        %v651 = vpop.f32.mrf.mxu0
        %652 = vmatprep.mubr.bf16.mxu0 0
        %653 = vmatmul.mubr.bf16.gmra.mxu0 %v456
        %v654 = vpop.f32.mrf.mxu0
        %v655 = vadd.f32 %v378, %v654
        %v656 = vpop.f32.mrf.mxu0
        %v657 = vpop.f32.mrf.mxu0
        %v658 = vadd.f32 %v378, %v657
        %v659 = vpop.f32.mrf.mxu0
        %660 = vmatprep.mubr.bf16.mxu0 0
        %661 = vmatmul.mubr.bf16.gmra.mxu0 %v457
        %v662 = vpop.f32.mrf.mxu0
        %v663 = vadd.f32 %v378, %v662
        %v664 = vpop.f32.mrf.mxu0
        %v665 = vpop.f32.mrf.mxu0
        %v666 = vadd.f32 %v378, %v665
        %v667 = vpop.f32.mrf.mxu0
        %668 = vmatprep.mubr.bf16.mxu0 0
        %669 = vmatmul.mubr.bf16.gmra.mxu0 %v458
        %v670 = vpop.f32.mrf.mxu0
        %v671 = vadd.f32 %v378, %v670
        %v672 = vpop.f32.mrf.mxu0
        %v673 = vpop.f32.mrf.mxu0
        %v674 = vadd.f32 %v378, %v673
        %v675 = vpop.f32.mrf.mxu0
        %676 = vmatprep.mubr.bf16.mxu0 0
        %677 = vmatmul.mubr.bf16.gmra.mxu0 %v459
        %v678 = vpop.f32.mrf.mxu0
        %v679 = vadd.f32 %v378, %v678
        %v680 = vpop.f32.mrf.mxu0
        %v681 = vpop.f32.mrf.mxu0
        %v682 = vadd.f32 %v378, %v681
        %v683 = vpop.f32.mrf.mxu0
        %684 = vdwg.mxu0
        %v685 = vpack.c.bf16 %v562, %v559
        %v686 = vpack.c.bf16 %v570, %v567
        %v687 = vpack.c.bf16 %v578, %v575
        %v688 = vpack.c.bf16 %v586, %v583
        %v689 = vpack.c.bf16 %v594, %v591
        %v690 = vpack.c.bf16 %v602, %v599
        %v691 = vpack.c.bf16 %v610, %v607
        %v692 = vpack.c.bf16 %v618, %v615
        %v693 = vpack.c.bf16 %v626, %v623
        %v694 = vpack.c.bf16 %v634, %v631
        %v695 = vpack.c.bf16 %v642, %v639
        %v696 = vpack.c.bf16 %v650, %v647
        %v697 = vpack.c.bf16 %v658, %v655
        %v698 = vpack.c.bf16 %v666, %v663
        %v699 = vpack.c.bf16 %v674, %v671
        %v700 = vpack.c.bf16 %v682, %v679
        %vm701 = vcmask 7168
        %702 = vst.msk [vmem:[%s313] sm:$0xff] %vm701, 0.0
        %703 = vst.msk [vmem:[%s313 + $0x8] sm:$0xff] %vm701, 0.0
        %704 = vst.msk [vmem:[%s313 + $0x10] sm:$0xff] %vm701, 0.0
        %705 = vst.msk [vmem:[%s313 + $0x18] sm:$0xff] %vm701, 0.0
        %706 = vst.msk [vmem:[%s313 + $0x20] sm:$0xff] %vm701, 0.0
        %707 = vst.msk [vmem:[%s313 + $0x28] sm:$0xff] %vm701, 0.0
        %708 = vst.msk [vmem:[%s313 + $0x30] sm:$0xff] %vm701, 0.0
        %709 = vst.msk [vmem:[%s313 + $0x38] sm:$0xff] %vm701, 0.0
        %710 = vst.msk [vmem:[%s313 + $0x40] sm:$0xff] %vm701, 0.0
        %711 = vst.msk [vmem:[%s313 + $0x48] sm:$0xff] %vm701, 0.0
        %712 = vst.msk [vmem:[%s313 + $0x50] sm:$0xff] %vm701, 0.0
        %713 = vst.msk [vmem:[%s313 + $0x58] sm:$0xff] %vm701, 0.0
        %714 = vst.msk [vmem:[%s313 + $0x60] sm:$0xff] %vm701, 0.0
        %715 = vst.msk [vmem:[%s313 + $0x68] sm:$0xff] %vm701, 0.0
        %716 = vst.msk [vmem:[%s313 + $0x70] sm:$0xff] %vm701, 0.0
        %717 = vst.msk [vmem:[%s313 + $0x78] sm:$0xff] %vm701, 0.0
        %718 = vst.msk [vmem:[%s313 + $0x80] sm:$0xff] %vm701, 0.0
        %719 = vst.msk [vmem:[%s313 + $0x88] sm:$0xff] %vm701, 0.0
        %720 = vst.msk [vmem:[%s313 + $0x90] sm:$0xff] %vm701, 0.0
        %721 = vst.msk [vmem:[%s313 + $0x98] sm:$0xff] %vm701, 0.0
        %722 = vst.msk [vmem:[%s313 + $0xa0] sm:$0xff] %vm701, 0.0
        %723 = vst.msk [vmem:[%s313 + $0xa8] sm:$0xff] %vm701, 0.0
        %724 = vst.msk [vmem:[%s313 + $0xb0] sm:$0xff] %vm701, 0.0
        %725 = vst.msk [vmem:[%s313 + $0xb8] sm:$0xff] %vm701, 0.0
        %726 = vst.msk [vmem:[%s313 + $0xc0] sm:$0xff] %vm701, 0.0
        %727 = vst.msk [vmem:[%s313 + $0xc8] sm:$0xff] %vm701, 0.0
        %728 = vst.msk [vmem:[%s313 + $0xd0] sm:$0xff] %vm701, 0.0
        %729 = vst.msk [vmem:[%s313 + $0xd8] sm:$0xff] %vm701, 0.0
        %730 = vst.msk [vmem:[%s313 + $0xe0] sm:$0xff] %vm701, 0.0
        %731 = vst.msk [vmem:[%s313 + $0xe8] sm:$0xff] %vm701, 0.0
        %732 = vst.msk [vmem:[%s313 + $0xf0] sm:$0xff] %vm701, 0.0
        %733 = vst.msk [vmem:[%s313 + $0xf8] sm:$0xff] %vm701, 0.0
        %v734 = vld [vmem:[#allocation7] sm:$0xff]
        %v735 = vld [vmem:[#allocation7 + $0x8] sm:$0xff]
        %v736 = vld [vmem:[#allocation7 + $0x20] sm:$0xff]
        %v737 = vld [vmem:[#allocation7 + $0x28] sm:$0xff]
        %v738 = vld [vmem:[#allocation7 + $0x40] sm:$0xff]
        %v739 = vld [vmem:[#allocation7 + $0x48] sm:$0xff]
        %v740 = vld [vmem:[#allocation7 + $0x60] sm:$0xff]
        %v741 = vld [vmem:[#allocation7 + $0x68] sm:$0xff]
        %v742 = vld [vmem:[#allocation7 + $0x80] sm:$0xff]
        %v743 = vld [vmem:[#allocation7 + $0x88] sm:$0xff]
        %v744 = vld [vmem:[#allocation7 + $0xa0] sm:$0xff]
        %v745 = vld [vmem:[#allocation7 + $0xa8] sm:$0xff]
        %v746 = vld [vmem:[#allocation7 + $0xc0] sm:$0xff]
        %v747 = vld [vmem:[#allocation7 + $0xc8] sm:$0xff]
        %v748 = vld [vmem:[#allocation7 + $0xe0] sm:$0xff]
        %v749 = vld [vmem:[#allocation7 + $0xe8] sm:$0xff]
        %v750 = vld [vmem:[#allocation7 + $0x100] sm:$0xff]
        %v751 = vld [vmem:[#allocation7 + $0x108] sm:$0xff]
        %v752 = vld [vmem:[#allocation7 + $0x120] sm:$0xff]
        %v753 = vld [vmem:[#allocation7 + $0x128] sm:$0xff]
        %v754 = vld [vmem:[#allocation7 + $0x140] sm:$0xff]
        %v755 = vld [vmem:[#allocation7 + $0x148] sm:$0xff]
        %v756 = vld [vmem:[#allocation7 + $0x160] sm:$0xff]
        %v757 = vld [vmem:[#allocation7 + $0x168] sm:$0xff]
        %v758 = vld [vmem:[#allocation7 + $0x180] sm:$0xff]
        %v759 = vld [vmem:[#allocation7 + $0x188] sm:$0xff]
        %v760 = vld [vmem:[#allocation7 + $0x1a0] sm:$0xff]
        %v761 = vld [vmem:[#allocation7 + $0x1a8] sm:$0xff]
        %v762 = vld [vmem:[#allocation7 + $0x1c0] sm:$0xff]
        %v763 = vld [vmem:[#allocation7 + $0x1c8] sm:$0xff]
        %v764 = vld [vmem:[#allocation7 + $0x1e0] sm:$0xff]
        %v765 = vld [vmem:[#allocation7 + $0x1e8] sm:$0xff]
        %v798 = vunpack.c.l.b16 %v734
        %v799 = vunpack.c.h.b16 %v734
        %v800 = vunpack.c.l.b16 %v735
        %v801 = vunpack.c.h.b16 %v735
        %v802 = vunpack.c.l.b16 %v736
        %v803 = vunpack.c.h.b16 %v736
        %v804 = vunpack.c.l.b16 %v737
        %v805 = vunpack.c.h.b16 %v737
        %v806 = vunpack.c.l.b16 %v738
        %v807 = vunpack.c.h.b16 %v738
        %v808 = vunpack.c.l.b16 %v739
        %v809 = vunpack.c.h.b16 %v739
        %v810 = vunpack.c.l.b16 %v740
        %v811 = vunpack.c.h.b16 %v740
        %v812 = vunpack.c.l.b16 %v741
        %v813 = vunpack.c.h.b16 %v741
        %v814 = vunpack.c.l.b16 %v742
        %v815 = vunpack.c.h.b16 %v742
        %v816 = vunpack.c.l.b16 %v743
        %v817 = vunpack.c.h.b16 %v743
        %v818 = vunpack.c.l.b16 %v744
        %v819 = vunpack.c.h.b16 %v744
        %v820 = vunpack.c.l.b16 %v745
        %v821 = vunpack.c.h.b16 %v745
        %v822 = vunpack.c.l.b16 %v746
        %v823 = vunpack.c.h.b16 %v746
        %v824 = vunpack.c.l.b16 %v747
        %v825 = vunpack.c.h.b16 %v747
        %v826 = vunpack.c.l.b16 %v748
        %v827 = vunpack.c.h.b16 %v748
        %v828 = vunpack.c.l.b16 %v749
        %v829 = vunpack.c.h.b16 %v749
        %v830 = vunpack.c.l.b16 %v750
        %v831 = vunpack.c.h.b16 %v750
        %v832 = vunpack.c.l.b16 %v751
        %v833 = vunpack.c.h.b16 %v751
        %v834 = vunpack.c.l.b16 %v752
        %v835 = vunpack.c.h.b16 %v752
        %v836 = vunpack.c.l.b16 %v753
        %v837 = vunpack.c.h.b16 %v753
        %v838 = vunpack.c.l.b16 %v754
        %v839 = vunpack.c.h.b16 %v754
        %v840 = vunpack.c.l.b16 %v755
        %v841 = vunpack.c.h.b16 %v755
        %v842 = vunpack.c.l.b16 %v756
        %v843 = vunpack.c.h.b16 %v756
        %v844 = vunpack.c.l.b16 %v757
        %v845 = vunpack.c.h.b16 %v757
        %v846 = vunpack.c.l.b16 %v758
        %v847 = vunpack.c.h.b16 %v758
        %v848 = vunpack.c.l.b16 %v759
        %v849 = vunpack.c.h.b16 %v759
        %v850 = vunpack.c.l.b16 %v760
        %v851 = vunpack.c.h.b16 %v760
        %v852 = vunpack.c.l.b16 %v761
        %v853 = vunpack.c.h.b16 %v761
        %v854 = vunpack.c.l.b16 %v762
        %v855 = vunpack.c.h.b16 %v762
        %v856 = vunpack.c.l.b16 %v763
        %v857 = vunpack.c.h.b16 %v763
        %v858 = vunpack.c.l.b16 %v764
        %v859 = vunpack.c.h.b16 %v764
        %v860 = vunpack.c.l.b16 %v765
        %v861 = vunpack.c.h.b16 %v765
        %v862 = vpack.c.b16 %v802, %v798
        %v863 = vpack.c.b16 %v803, %v799
        %v864 = vpack.c.b16 %v804, %v800
        %v865 = vpack.c.b16 %v805, %v801
        %v866 = vpack.c.b16 %v810, %v806
        %v867 = vpack.c.b16 %v811, %v807
        %v868 = vpack.c.b16 %v812, %v808
        %v869 = vpack.c.b16 %v813, %v809
        %v870 = vpack.c.b16 %v818, %v814
        %v871 = vpack.c.b16 %v819, %v815
        %v872 = vpack.c.b16 %v820, %v816
        %v873 = vpack.c.b16 %v821, %v817
        %v874 = vpack.c.b16 %v826, %v822
        %v875 = vpack.c.b16 %v827, %v823
        %v876 = vpack.c.b16 %v828, %v824
        %v877 = vpack.c.b16 %v829, %v825
        %v878 = vpack.c.b16 %v834, %v830
        %v879 = vpack.c.b16 %v835, %v831
        %v880 = vpack.c.b16 %v836, %v832
        %v881 = vpack.c.b16 %v837, %v833
        %v882 = vpack.c.b16 %v842, %v838
        %v883 = vpack.c.b16 %v843, %v839
        %v884 = vpack.c.b16 %v844, %v840
        %v885 = vpack.c.b16 %v845, %v841
        %v886 = vpack.c.b16 %v850, %v846
        %v887 = vpack.c.b16 %v851, %v847
        %v888 = vpack.c.b16 %v852, %v848
        %v889 = vpack.c.b16 %v853, %v849
        %v890 = vpack.c.b16 %v858, %v854
        %v891 = vpack.c.b16 %v859, %v855
        %v892 = vpack.c.b16 %v860, %v856
        %v893 = vpack.c.b16 %v861, %v857
        %926 = vmatprep.subr.bf16.mxu0 %v891
        %927 = vmatpush1.bf16.msra.mxu0 %v890
        %928 = vmatprep.subr.bf16.mxu0 %v887
        %929 = vmatpush1.bf16.msra.mxu0 %v886
        %930 = vmatprep.subr.bf16.mxu0 %v883
        %931 = vmatpush1.bf16.msra.mxu0 %v882
        %932 = vmatprep.subr.bf16.mxu0 %v879
        %933 = vmatpush1.bf16.msra.mxu0 %v878
        %934 = vmatprep.subr.bf16.mxu0 %v875
        %935 = vmatpush1.bf16.msra.mxu0 %v874
        %936 = vmatprep.subr.bf16.mxu0 %v871
        %937 = vmatpush1.bf16.msra.mxu0 %v870
        %938 = vmatprep.subr.bf16.mxu0 %v867
        %939 = vmatpush1.bf16.msra.mxu0 %v866
        %940 = vmatprep.subr.bf16.mxu0 %v863
        %941 = vmatpush1.bf16.msra.mxu0 %v862
        %942 = vmatprep.subr.bf16.mxu0 0
        %943 = vmatpush2.bf16.msra.mxu0 0
        %944 = vmatprep.subr.bf16.mxu0 0
        %945 = vmatpush2.bf16.msra.mxu0 0
        %946 = vmatprep.subr.bf16.mxu0 0
        %947 = vmatpush2.bf16.msra.mxu0 0
        %948 = vmatprep.subr.bf16.mxu0 0
        %949 = vmatpush2.bf16.msra.mxu0 0
        %950 = vmatprep.subr.bf16.mxu0 0
        %951 = vmatpush2.bf16.msra.mxu0 0
        %952 = vmatprep.subr.bf16.mxu0 0
        %953 = vmatpush2.bf16.msra.mxu0 0
        %954 = vmatprep.subr.bf16.mxu0 0
        %955 = vmatpush2.bf16.msra.mxu0 0
        %956 = vmatprep.subr.bf16.mxu0 0
        %957 = vmatpush2.bf16.msra.mxu0 0
        %958 = vmatprep.mubr.bf16.mxu0 0
        %959 = vmatmul.mubr.bf16.gmra.mxu0 %v685
        %v960 = vpop.f32.mrf.mxu0
        %v961 = vadd.f32 0.0, %v960
        %v962 = vpop.f32.mrf.mxu0
        %v963 = vadd.f32 0.0, %v962
        %v964 = vpop.f32.mrf.mxu0
        %v965 = vadd.f32 0.0, %v964
        %v966 = vpop.f32.mrf.mxu0
        %v967 = vadd.f32 0.0, %v966
        %968 = vmatprep.mubr.bf16.mxu0 0
        %969 = vmatmul.mubr.bf16.gmra.mxu0 %v686
        %v970 = vpop.f32.mrf.mxu0
        %v971 = vadd.f32 0.0, %v970
        %v972 = vpop.f32.mrf.mxu0
        %v973 = vadd.f32 0.0, %v972
        %v974 = vpop.f32.mrf.mxu0
        %v975 = vadd.f32 0.0, %v974
        %v976 = vpop.f32.mrf.mxu0
        %v977 = vadd.f32 0.0, %v976
        %978 = vmatprep.mubr.bf16.mxu0 0
        %979 = vmatmul.mubr.bf16.gmra.mxu0 %v687
        %v980 = vpop.f32.mrf.mxu0
        %v981 = vadd.f32 0.0, %v980
        %v982 = vpop.f32.mrf.mxu0
        %v983 = vadd.f32 0.0, %v982
        %v984 = vpop.f32.mrf.mxu0
        %v985 = vadd.f32 0.0, %v984
        %v986 = vpop.f32.mrf.mxu0
        %v987 = vadd.f32 0.0, %v986
        %988 = vmatprep.mubr.bf16.mxu0 0
        %989 = vmatmul.mubr.bf16.gmra.mxu0 %v688
        %v990 = vpop.f32.mrf.mxu0
        %v991 = vadd.f32 0.0, %v990
        %v992 = vpop.f32.mrf.mxu0
        %v993 = vadd.f32 0.0, %v992
        %v994 = vpop.f32.mrf.mxu0
        %v995 = vadd.f32 0.0, %v994
        %v996 = vpop.f32.mrf.mxu0
        %v997 = vadd.f32 0.0, %v996
        %998 = vmatprep.mubr.bf16.mxu0 0
        %999 = vmatmul.mubr.bf16.gmra.mxu0 %v689
        %v1000 = vpop.f32.mrf.mxu0
        %v1001 = vadd.f32 0.0, %v1000
        %v1002 = vpop.f32.mrf.mxu0
        %v1003 = vadd.f32 0.0, %v1002
        %v1004 = vpop.f32.mrf.mxu0
        %v1005 = vadd.f32 0.0, %v1004
        %v1006 = vpop.f32.mrf.mxu0
        %v1007 = vadd.f32 0.0, %v1006
        %1008 = vmatprep.mubr.bf16.mxu0 0
        %1009 = vmatmul.mubr.bf16.gmra.mxu0 %v690
        %v1010 = vpop.f32.mrf.mxu0
        %v1011 = vadd.f32 0.0, %v1010
        %v1012 = vpop.f32.mrf.mxu0
        %v1013 = vadd.f32 0.0, %v1012
        %v1014 = vpop.f32.mrf.mxu0
        %v1015 = vadd.f32 0.0, %v1014
        %v1016 = vpop.f32.mrf.mxu0
        %v1017 = vadd.f32 0.0, %v1016
        %1018 = vmatprep.mubr.bf16.mxu0 0
        %1019 = vmatmul.mubr.bf16.gmra.mxu0 %v691
        %v1020 = vpop.f32.mrf.mxu0
        %v1021 = vadd.f32 0.0, %v1020
        %v1022 = vpop.f32.mrf.mxu0
        %v1023 = vadd.f32 0.0, %v1022
        %v1024 = vpop.f32.mrf.mxu0
        %v1025 = vadd.f32 0.0, %v1024
        %v1026 = vpop.f32.mrf.mxu0
        %v1027 = vadd.f32 0.0, %v1026
        %1028 = vmatprep.mubr.bf16.mxu0 0
        %1029 = vmatmul.mubr.bf16.gmra.mxu0 %v692
        %v1030 = vpop.f32.mrf.mxu0
        %v1031 = vadd.f32 0.0, %v1030
        %v1032 = vpop.f32.mrf.mxu0
        %v1033 = vadd.f32 0.0, %v1032
        %v1034 = vpop.f32.mrf.mxu0
        %v1035 = vadd.f32 0.0, %v1034
        %v1036 = vpop.f32.mrf.mxu0
        %v1037 = vadd.f32 0.0, %v1036
        %1038 = vmatprep.mubr.bf16.mxu0 0
        %1039 = vmatmul.mubr.bf16.gmra.mxu0 %v693
        %v1040 = vpop.f32.mrf.mxu0
        %v1041 = vadd.f32 0.0, %v1040
        %v1042 = vpop.f32.mrf.mxu0
        %v1043 = vadd.f32 0.0, %v1042
        %v1044 = vpop.f32.mrf.mxu0
        %v1045 = vadd.f32 0.0, %v1044
        %v1046 = vpop.f32.mrf.mxu0
        %v1047 = vadd.f32 0.0, %v1046
        %1048 = vmatprep.mubr.bf16.mxu0 0
        %1049 = vmatmul.mubr.bf16.gmra.mxu0 %v694
        %v1050 = vpop.f32.mrf.mxu0
        %v1051 = vadd.f32 0.0, %v1050
        %v1052 = vpop.f32.mrf.mxu0
        %v1053 = vadd.f32 0.0, %v1052
        %v1054 = vpop.f32.mrf.mxu0
        %v1055 = vadd.f32 0.0, %v1054
        %v1056 = vpop.f32.mrf.mxu0
        %v1057 = vadd.f32 0.0, %v1056
        %1058 = vmatprep.mubr.bf16.mxu0 0
        %1059 = vmatmul.mubr.bf16.gmra.mxu0 %v695
        %v1060 = vpop.f32.mrf.mxu0
        %v1061 = vadd.f32 0.0, %v1060
        %v1062 = vpop.f32.mrf.mxu0
        %v1063 = vadd.f32 0.0, %v1062
        %v1064 = vpop.f32.mrf.mxu0
        %v1065 = vadd.f32 0.0, %v1064
        %v1066 = vpop.f32.mrf.mxu0
        %v1067 = vadd.f32 0.0, %v1066
        %1068 = vmatprep.mubr.bf16.mxu0 0
        %1069 = vmatmul.mubr.bf16.gmra.mxu0 %v696
        %v1070 = vpop.f32.mrf.mxu0
        %v1071 = vadd.f32 0.0, %v1070
        %v1072 = vpop.f32.mrf.mxu0
        %v1073 = vadd.f32 0.0, %v1072
        %v1074 = vpop.f32.mrf.mxu0
        %v1075 = vadd.f32 0.0, %v1074
        %v1076 = vpop.f32.mrf.mxu0
        %v1077 = vadd.f32 0.0, %v1076
        %1078 = vmatprep.mubr.bf16.mxu0 0
        %1079 = vmatmul.mubr.bf16.gmra.mxu0 %v697
        %v1080 = vpop.f32.mrf.mxu0
        %v1081 = vadd.f32 0.0, %v1080
        %v1082 = vpop.f32.mrf.mxu0
        %v1083 = vadd.f32 0.0, %v1082
        %v1084 = vpop.f32.mrf.mxu0
        %v1085 = vadd.f32 0.0, %v1084
        %v1086 = vpop.f32.mrf.mxu0
        %v1087 = vadd.f32 0.0, %v1086
        %1088 = vmatprep.mubr.bf16.mxu0 0
        %1089 = vmatmul.mubr.bf16.gmra.mxu0 %v698
        %v1090 = vpop.f32.mrf.mxu0
        %v1091 = vadd.f32 0.0, %v1090
        %v1092 = vpop.f32.mrf.mxu0
        %v1093 = vadd.f32 0.0, %v1092
        %v1094 = vpop.f32.mrf.mxu0
        %v1095 = vadd.f32 0.0, %v1094
        %v1096 = vpop.f32.mrf.mxu0
        %v1097 = vadd.f32 0.0, %v1096
        %1098 = vmatprep.mubr.bf16.mxu0 0
        %1099 = vmatmul.mubr.bf16.gmra.mxu0 %v699
        %v1100 = vpop.f32.mrf.mxu0
        %v1101 = vadd.f32 0.0, %v1100
        %v1102 = vpop.f32.mrf.mxu0
        %v1103 = vadd.f32 0.0, %v1102
        %v1104 = vpop.f32.mrf.mxu0
        %v1105 = vadd.f32 0.0, %v1104
        %v1106 = vpop.f32.mrf.mxu0
        %v1107 = vadd.f32 0.0, %v1106
        %1108 = vmatprep.mubr.bf16.mxu0 0
        %1109 = vmatmul.mubr.bf16.gmra.mxu0 %v700
        %v1110 = vpop.f32.mrf.mxu0
        %v1111 = vadd.f32 0.0, %v1110
        %v1112 = vpop.f32.mrf.mxu0
        %v1113 = vadd.f32 0.0, %v1112
        %v1114 = vpop.f32.mrf.mxu0
        %v1115 = vadd.f32 0.0, %v1114
        %v1116 = vpop.f32.mrf.mxu0
        %v1117 = vadd.f32 0.0, %v1116
        %1118 = vdwg.mxu0
        %1119 = vmatprep.subr.bf16.mxu0 %v893
        %1120 = vmatpush1.bf16.msra.mxu0 %v892
        %1121 = vmatprep.subr.bf16.mxu0 %v889
        %1122 = vmatpush1.bf16.msra.mxu0 %v888
        %1123 = vmatprep.subr.bf16.mxu0 %v885
        %1124 = vmatpush1.bf16.msra.mxu0 %v884
        %1125 = vmatprep.subr.bf16.mxu0 %v881
        %1126 = vmatpush1.bf16.msra.mxu0 %v880
        %1127 = vmatprep.subr.bf16.mxu0 %v877
        %1128 = vmatpush1.bf16.msra.mxu0 %v876
        %1129 = vmatprep.subr.bf16.mxu0 %v873
        %1130 = vmatpush1.bf16.msra.mxu0 %v872
        %1131 = vmatprep.subr.bf16.mxu0 %v869
        %1132 = vmatpush1.bf16.msra.mxu0 %v868
        %1133 = vmatprep.subr.bf16.mxu0 %v865
        %1134 = vmatpush1.bf16.msra.mxu0 %v864
        %1135 = vmatprep.subr.bf16.mxu0 0
        %1136 = vmatpush2.bf16.msra.mxu0 0
        %1137 = vmatprep.subr.bf16.mxu0 0
        %1138 = vmatpush2.bf16.msra.mxu0 0
        %1139 = vmatprep.subr.bf16.mxu0 0
        %1140 = vmatpush2.bf16.msra.mxu0 0
        %1141 = vmatprep.subr.bf16.mxu0 0
        %1142 = vmatpush2.bf16.msra.mxu0 0
        %1143 = vmatprep.subr.bf16.mxu0 0
        %1144 = vmatpush2.bf16.msra.mxu0 0
        %1145 = vmatprep.subr.bf16.mxu0 0
        %1146 = vmatpush2.bf16.msra.mxu0 0
        %1147 = vmatprep.subr.bf16.mxu0 0
        %1148 = vmatpush2.bf16.msra.mxu0 0
        %1149 = vmatprep.subr.bf16.mxu0 0
        %1150 = vmatpush2.bf16.msra.mxu0 0
        %1151 = vmatprep.mubr.bf16.mxu0 0
        %1152 = vmatmul.mubr.bf16.gmra.mxu0 %v685
        %v1153 = vpop.f32.mrf.mxu0
        %v1154 = vadd.f32 0.0, %v1153
        %v1155 = vpop.f32.mrf.mxu0
        %v1156 = vadd.f32 0.0, %v1155
        %v1157 = vpop.f32.mrf.mxu0
        %v1158 = vadd.f32 0.0, %v1157
        %v1159 = vpop.f32.mrf.mxu0
        %v1160 = vadd.f32 0.0, %v1159
        %1161 = vmatprep.mubr.bf16.mxu0 0
        %1162 = vmatmul.mubr.bf16.gmra.mxu0 %v686
        %v1163 = vpop.f32.mrf.mxu0
        %v1164 = vadd.f32 0.0, %v1163
        %v1165 = vpop.f32.mrf.mxu0
        %v1166 = vadd.f32 0.0, %v1165
        %v1167 = vpop.f32.mrf.mxu0
        %v1168 = vadd.f32 0.0, %v1167
        %v1169 = vpop.f32.mrf.mxu0
        %v1170 = vadd.f32 0.0, %v1169
        %1171 = vmatprep.mubr.bf16.mxu0 0
        %1172 = vmatmul.mubr.bf16.gmra.mxu0 %v687
        %v1173 = vpop.f32.mrf.mxu0
        %v1174 = vadd.f32 0.0, %v1173
        %v1175 = vpop.f32.mrf.mxu0
        %v1176 = vadd.f32 0.0, %v1175
        %v1177 = vpop.f32.mrf.mxu0
        %v1178 = vadd.f32 0.0, %v1177
        %v1179 = vpop.f32.mrf.mxu0
        %v1180 = vadd.f32 0.0, %v1179
        %1181 = vmatprep.mubr.bf16.mxu0 0
        %1182 = vmatmul.mubr.bf16.gmra.mxu0 %v688
        %v1183 = vpop.f32.mrf.mxu0
        %v1184 = vadd.f32 0.0, %v1183
        %v1185 = vpop.f32.mrf.mxu0
        %v1186 = vadd.f32 0.0, %v1185
        %v1187 = vpop.f32.mrf.mxu0
        %v1188 = vadd.f32 0.0, %v1187
        %v1189 = vpop.f32.mrf.mxu0
        %v1190 = vadd.f32 0.0, %v1189
        %1191 = vmatprep.mubr.bf16.mxu0 0
        %1192 = vmatmul.mubr.bf16.gmra.mxu0 %v689
        %v1193 = vpop.f32.mrf.mxu0
        %v1194 = vadd.f32 0.0, %v1193
        %v1195 = vpop.f32.mrf.mxu0
        %v1196 = vadd.f32 0.0, %v1195
        %v1197 = vpop.f32.mrf.mxu0
        %v1198 = vadd.f32 0.0, %v1197
        %v1199 = vpop.f32.mrf.mxu0
        %v1200 = vadd.f32 0.0, %v1199
        %1201 = vmatprep.mubr.bf16.mxu0 0
        %1202 = vmatmul.mubr.bf16.gmra.mxu0 %v690
        %v1203 = vpop.f32.mrf.mxu0
        %v1204 = vadd.f32 0.0, %v1203
        %v1205 = vpop.f32.mrf.mxu0
        %v1206 = vadd.f32 0.0, %v1205
        %v1207 = vpop.f32.mrf.mxu0
        %v1208 = vadd.f32 0.0, %v1207
        %v1209 = vpop.f32.mrf.mxu0
        %v1210 = vadd.f32 0.0, %v1209
        %1211 = vmatprep.mubr.bf16.mxu0 0
        %1212 = vmatmul.mubr.bf16.gmra.mxu0 %v691
        %v1213 = vpop.f32.mrf.mxu0
        %v1214 = vadd.f32 0.0, %v1213
        %v1215 = vpop.f32.mrf.mxu0
        %v1216 = vadd.f32 0.0, %v1215
        %v1217 = vpop.f32.mrf.mxu0
        %v1218 = vadd.f32 0.0, %v1217
        %v1219 = vpop.f32.mrf.mxu0
        %v1220 = vadd.f32 0.0, %v1219
        %1221 = vmatprep.mubr.bf16.mxu0 0
        %1222 = vmatmul.mubr.bf16.gmra.mxu0 %v692
        %v1223 = vpop.f32.mrf.mxu0
        %v1224 = vadd.f32 0.0, %v1223
        %v1225 = vpop.f32.mrf.mxu0
        %v1226 = vadd.f32 0.0, %v1225
        %v1227 = vpop.f32.mrf.mxu0
        %v1228 = vadd.f32 0.0, %v1227
        %v1229 = vpop.f32.mrf.mxu0
        %v1230 = vadd.f32 0.0, %v1229
        %1231 = vmatprep.mubr.bf16.mxu0 0
        %1232 = vmatmul.mubr.bf16.gmra.mxu0 %v693
        %v1233 = vpop.f32.mrf.mxu0
        %v1234 = vadd.f32 0.0, %v1233
        %v1235 = vpop.f32.mrf.mxu0
        %v1236 = vadd.f32 0.0, %v1235
        %v1237 = vpop.f32.mrf.mxu0
        %v1238 = vadd.f32 0.0, %v1237
        %v1239 = vpop.f32.mrf.mxu0
        %v1240 = vadd.f32 0.0, %v1239
        %1241 = vmatprep.mubr.bf16.mxu0 0
        %1242 = vmatmul.mubr.bf16.gmra.mxu0 %v694
        %v1243 = vpop.f32.mrf.mxu0
        %v1244 = vadd.f32 0.0, %v1243
        %v1245 = vpop.f32.mrf.mxu0
        %v1246 = vadd.f32 0.0, %v1245
        %v1247 = vpop.f32.mrf.mxu0
        %v1248 = vadd.f32 0.0, %v1247
        %v1249 = vpop.f32.mrf.mxu0
        %v1250 = vadd.f32 0.0, %v1249
        %1251 = vmatprep.mubr.bf16.mxu0 0
        %1252 = vmatmul.mubr.bf16.gmra.mxu0 %v695
        %v1253 = vpop.f32.mrf.mxu0
        %v1254 = vadd.f32 0.0, %v1253
        %v1255 = vpop.f32.mrf.mxu0
        %v1256 = vadd.f32 0.0, %v1255
        %v1257 = vpop.f32.mrf.mxu0
        %v1258 = vadd.f32 0.0, %v1257
        %v1259 = vpop.f32.mrf.mxu0
        %v1260 = vadd.f32 0.0, %v1259
        %1261 = vmatprep.mubr.bf16.mxu0 0
        %1262 = vmatmul.mubr.bf16.gmra.mxu0 %v696
        %v1263 = vpop.f32.mrf.mxu0
        %v1264 = vadd.f32 0.0, %v1263
        %v1265 = vpop.f32.mrf.mxu0
        %v1266 = vadd.f32 0.0, %v1265
        %v1267 = vpop.f32.mrf.mxu0
        %v1268 = vadd.f32 0.0, %v1267
        %v1269 = vpop.f32.mrf.mxu0
        %v1270 = vadd.f32 0.0, %v1269
        %1271 = vmatprep.mubr.bf16.mxu0 0
        %1272 = vmatmul.mubr.bf16.gmra.mxu0 %v697
        %v1273 = vpop.f32.mrf.mxu0
        %v1274 = vadd.f32 0.0, %v1273
        %v1275 = vpop.f32.mrf.mxu0
        %v1276 = vadd.f32 0.0, %v1275
        %v1277 = vpop.f32.mrf.mxu0
        %v1278 = vadd.f32 0.0, %v1277
        %v1279 = vpop.f32.mrf.mxu0
        %v1280 = vadd.f32 0.0, %v1279
        %1281 = vmatprep.mubr.bf16.mxu0 0
        %1282 = vmatmul.mubr.bf16.gmra.mxu0 %v698
        %v1283 = vpop.f32.mrf.mxu0
        %v1284 = vadd.f32 0.0, %v1283
        %v1285 = vpop.f32.mrf.mxu0
        %v1286 = vadd.f32 0.0, %v1285
        %v1287 = vpop.f32.mrf.mxu0
        %v1288 = vadd.f32 0.0, %v1287
        %v1289 = vpop.f32.mrf.mxu0
        %v1290 = vadd.f32 0.0, %v1289
        %1291 = vmatprep.mubr.bf16.mxu0 0
        %1292 = vmatmul.mubr.bf16.gmra.mxu0 %v699
        %v1293 = vpop.f32.mrf.mxu0
        %v1294 = vadd.f32 0.0, %v1293
        %v1295 = vpop.f32.mrf.mxu0
        %v1296 = vadd.f32 0.0, %v1295
        %v1297 = vpop.f32.mrf.mxu0
        %v1298 = vadd.f32 0.0, %v1297
        %v1299 = vpop.f32.mrf.mxu0
        %v1300 = vadd.f32 0.0, %v1299
        %1301 = vmatprep.mubr.bf16.mxu0 0
        %1302 = vmatmul.mubr.bf16.gmra.mxu0 %v700
        %v1303 = vpop.f32.mrf.mxu0
        %v1304 = vadd.f32 0.0, %v1303
        %v1305 = vpop.f32.mrf.mxu0
        %v1306 = vadd.f32 0.0, %v1305
        %v1307 = vpop.f32.mrf.mxu0
        %v1308 = vadd.f32 0.0, %v1307
        %v1309 = vpop.f32.mrf.mxu0
        %v1310 = vadd.f32 0.0, %v1309
        %1311 = vdwg.mxu0
        %v1312 = vmax.f32 %v961, 0.0
        %v1313 = vmax.f32 %v963, 0.0
        %v1314 = vmax.f32 %v1154, 0.0
        %v1315 = vmax.f32 %v1156, 0.0
        %v1316 = vmax.f32 %v965, 0.0
        %v1317 = vmax.f32 %v967, 0.0
        %v1318 = vmax.f32 %v1158, 0.0
        %v1319 = vmax.f32 %v1160, 0.0
        %v1320 = vmax.f32 %v971, 0.0
        %v1321 = vmax.f32 %v973, 0.0
        %v1322 = vmax.f32 %v1164, 0.0
        %v1323 = vmax.f32 %v1166, 0.0
        %v1324 = vmax.f32 %v975, 0.0
        %v1325 = vmax.f32 %v977, 0.0
        %v1326 = vmax.f32 %v1168, 0.0
        %v1327 = vmax.f32 %v1170, 0.0
        %v1328 = vmax.f32 %v981, 0.0
        %v1329 = vmax.f32 %v983, 0.0
        %v1330 = vmax.f32 %v1174, 0.0
        %v1331 = vmax.f32 %v1176, 0.0
        %v1332 = vmax.f32 %v985, 0.0
        %v1333 = vmax.f32 %v987, 0.0
        %v1334 = vmax.f32 %v1178, 0.0
        %v1335 = vmax.f32 %v1180, 0.0
        %v1336 = vmax.f32 %v991, 0.0
        %v1337 = vmax.f32 %v993, 0.0
        %v1338 = vmax.f32 %v1184, 0.0
        %v1339 = vmax.f32 %v1186, 0.0
        %v1340 = vmax.f32 %v995, 0.0
        %v1341 = vmax.f32 %v997, 0.0
        %v1342 = vmax.f32 %v1188, 0.0
        %v1343 = vmax.f32 %v1190, 0.0
        %v1344 = vmax.f32 %v1001, 0.0
        %v1345 = vmax.f32 %v1003, 0.0
        %v1346 = vmax.f32 %v1194, 0.0
        %v1347 = vmax.f32 %v1196, 0.0
        %v1348 = vmax.f32 %v1005, 0.0
        %v1349 = vmax.f32 %v1007, 0.0
        %v1350 = vmax.f32 %v1198, 0.0
        %v1351 = vmax.f32 %v1200, 0.0
        %v1352 = vmax.f32 %v1011, 0.0
        %v1353 = vmax.f32 %v1013, 0.0
        %v1354 = vmax.f32 %v1204, 0.0
        %v1355 = vmax.f32 %v1206, 0.0
        %v1356 = vmax.f32 %v1015, 0.0
        %v1357 = vmax.f32 %v1017, 0.0
        %v1358 = vmax.f32 %v1208, 0.0
        %v1359 = vmax.f32 %v1210, 0.0
        %v1360 = vmax.f32 %v1021, 0.0
        %v1361 = vmax.f32 %v1023, 0.0
        %v1362 = vmax.f32 %v1214, 0.0
        %v1363 = vmax.f32 %v1216, 0.0
        %v1364 = vmax.f32 %v1025, 0.0
        %v1365 = vmax.f32 %v1027, 0.0
        %v1366 = vmax.f32 %v1218, 0.0
        %v1367 = vmax.f32 %v1220, 0.0
        %v1368 = vmax.f32 %v1031, 0.0
        %v1369 = vmax.f32 %v1033, 0.0
        %v1370 = vmax.f32 %v1224, 0.0
        %v1371 = vmax.f32 %v1226, 0.0
        %v1372 = vmax.f32 %v1035, 0.0
        %v1373 = vmax.f32 %v1037, 0.0
        %v1374 = vmax.f32 %v1228, 0.0
        %v1375 = vmax.f32 %v1230, 0.0
        %v1376 = vmax.f32 %v1041, 0.0
        %v1377 = vmax.f32 %v1043, 0.0
        %v1378 = vmax.f32 %v1234, 0.0
        %v1379 = vmax.f32 %v1236, 0.0
        %v1380 = vmax.f32 %v1045, 0.0
        %v1381 = vmax.f32 %v1047, 0.0
        %v1382 = vmax.f32 %v1238, 0.0
        %v1383 = vmax.f32 %v1240, 0.0
        %v1384 = vmax.f32 %v1051, 0.0
        %v1385 = vmax.f32 %v1053, 0.0
        %v1386 = vmax.f32 %v1244, 0.0
        %v1387 = vmax.f32 %v1246, 0.0
        %v1388 = vmax.f32 %v1055, 0.0
        %v1389 = vmax.f32 %v1057, 0.0
        %v1390 = vmax.f32 %v1248, 0.0
        %v1391 = vmax.f32 %v1250, 0.0
        %v1392 = vmax.f32 %v1061, 0.0
        %v1393 = vmax.f32 %v1063, 0.0
        %v1394 = vmax.f32 %v1254, 0.0
        %v1395 = vmax.f32 %v1256, 0.0
        %v1396 = vmax.f32 %v1065, 0.0
        %v1397 = vmax.f32 %v1067, 0.0
        %v1398 = vmax.f32 %v1258, 0.0
        %v1399 = vmax.f32 %v1260, 0.0
        %v1400 = vmax.f32 %v1071, 0.0
        %v1401 = vmax.f32 %v1073, 0.0
        %v1402 = vmax.f32 %v1264, 0.0
        %v1403 = vmax.f32 %v1266, 0.0
        %v1404 = vmax.f32 %v1075, 0.0
        %v1405 = vmax.f32 %v1077, 0.0
        %v1406 = vmax.f32 %v1268, 0.0
        %v1407 = vmax.f32 %v1270, 0.0
        %v1408 = vmax.f32 %v1081, 0.0
        %v1409 = vmax.f32 %v1083, 0.0
        %v1410 = vmax.f32 %v1274, 0.0
        %v1411 = vmax.f32 %v1276, 0.0
        %v1412 = vmax.f32 %v1085, 0.0
        %v1413 = vmax.f32 %v1087, 0.0
        %v1414 = vmax.f32 %v1278, 0.0
        %v1415 = vmax.f32 %v1280, 0.0
        %v1416 = vmax.f32 %v1091, 0.0
        %v1417 = vmax.f32 %v1093, 0.0
        %v1418 = vmax.f32 %v1284, 0.0
        %v1419 = vmax.f32 %v1286, 0.0
        %v1420 = vmax.f32 %v1095, 0.0
        %v1421 = vmax.f32 %v1097, 0.0
        %v1422 = vmax.f32 %v1288, 0.0
        %v1423 = vmax.f32 %v1290, 0.0
        %v1424 = vmax.f32 %v1101, 0.0
        %v1425 = vmax.f32 %v1103, 0.0
        %v1426 = vmax.f32 %v1294, 0.0
        %v1427 = vmax.f32 %v1296, 0.0
        %v1428 = vmax.f32 %v1105, 0.0
        %v1429 = vmax.f32 %v1107, 0.0
        %v1430 = vmax.f32 %v1298, 0.0
        %v1431 = vmax.f32 %v1300, 0.0
        %v1432 = vmax.f32 %v1111, 0.0
        %v1433 = vmax.f32 %v1113, 0.0
        %v1434 = vmax.f32 %v1304, 0.0
        %v1435 = vmax.f32 %v1306, 0.0
        %v1436 = vmax.f32 %v1115, 0.0
        %v1437 = vmax.f32 %v1117, 0.0
        %v1438 = vmax.f32 %v1308, 0.0
        %v1439 = vmax.f32 %v1310, 0.0
        %v1440 = vld [vmem:[%s313] sm:$0xff]
        %v1441 = vld [vmem:[%s313 + $0x8] sm:$0xff]
        %v1442 = vld [vmem:[%s313 + $0x10] sm:$0xff]
        %v1443 = vld [vmem:[%s313 + $0x18] sm:$0xff]
        %v1444 = vld [vmem:[%s313 + $0x20] sm:$0xff]
        %v1445 = vld [vmem:[%s313 + $0x28] sm:$0xff]
        %v1446 = vld [vmem:[%s313 + $0x30] sm:$0xff]
        %v1447 = vld [vmem:[%s313 + $0x38] sm:$0xff]
        %v1448 = vld [vmem:[%s313 + $0x40] sm:$0xff]
        %v1449 = vld [vmem:[%s313 + $0x48] sm:$0xff]
        %v1450 = vld [vmem:[%s313 + $0x50] sm:$0xff]
        %v1451 = vld [vmem:[%s313 + $0x58] sm:$0xff]
        %v1452 = vld [vmem:[%s313 + $0x60] sm:$0xff]
        %v1453 = vld [vmem:[%s313 + $0x68] sm:$0xff]
        %v1454 = vld [vmem:[%s313 + $0x70] sm:$0xff]
        %v1455 = vld [vmem:[%s313 + $0x78] sm:$0xff]
        %v1456 = vld [vmem:[%s313 + $0x80] sm:$0xff]
        %v1457 = vld [vmem:[%s313 + $0x88] sm:$0xff]
        %v1458 = vld [vmem:[%s313 + $0x90] sm:$0xff]
        %v1459 = vld [vmem:[%s313 + $0x98] sm:$0xff]
        %v1460 = vld [vmem:[%s313 + $0xa0] sm:$0xff]
        %v1461 = vld [vmem:[%s313 + $0xa8] sm:$0xff]
        %v1462 = vld [vmem:[%s313 + $0xb0] sm:$0xff]
        %v1463 = vld [vmem:[%s313 + $0xb8] sm:$0xff]
        %v1464 = vld [vmem:[%s313 + $0xc0] sm:$0xff]
        %v1465 = vld [vmem:[%s313 + $0xc8] sm:$0xff]
        %v1466 = vld [vmem:[%s313 + $0xd0] sm:$0xff]
        %v1467 = vld [vmem:[%s313 + $0xd8] sm:$0xff]
        %v1468 = vld [vmem:[%s313 + $0xe0] sm:$0xff]
        %v1469 = vld [vmem:[%s313 + $0xe8] sm:$0xff]
        %v1470 = vld [vmem:[%s313 + $0xf0] sm:$0xff]
        %v1471 = vld [vmem:[%s313 + $0xf8] sm:$0xff]
        %v1472 = vadd.f32 %v1312, %v1313
        %v1473 = vadd.f32 %v1472, %v1314
        %v1474 = vadd.f32 %v1473, %v1315
        %1475 = vadd.xlane.f32.xlu0 %v1474
        %v1476 = vpop.xlane.xlu0 %1475
        %v1477 = vadd.f32 %v1316, %v1317
        %v1478 = vadd.f32 %v1477, %v1318
        %v1479 = vadd.f32 %v1478, %v1319
        %1480 = vadd.xlane.f32.xlu0 %v1479
        %v1481 = vpop.xlane.xlu0 %1480
        %v1482 = vadd.f32 %v1320, %v1321
        %v1483 = vadd.f32 %v1482, %v1322
        %v1484 = vadd.f32 %v1483, %v1323
        %1485 = vadd.xlane.f32.xlu0 %v1484
        %v1486 = vpop.xlane.xlu0 %1485
        %v1487 = vadd.f32 %v1324, %v1325
        %v1488 = vadd.f32 %v1487, %v1326
        %v1489 = vadd.f32 %v1488, %v1327
        %1490 = vadd.xlane.f32.xlu0 %v1489
        %v1491 = vpop.xlane.xlu0 %1490
        %v1492 = vadd.f32 %v1328, %v1329
        %v1493 = vadd.f32 %v1492, %v1330
        %v1494 = vadd.f32 %v1493, %v1331
        %1495 = vadd.xlane.f32.xlu0 %v1494
        %v1496 = vpop.xlane.xlu0 %1495
        %v1497 = vadd.f32 %v1332, %v1333
        %v1498 = vadd.f32 %v1497, %v1334
        %v1499 = vadd.f32 %v1498, %v1335
        %1500 = vadd.xlane.f32.xlu0 %v1499
        %v1501 = vpop.xlane.xlu0 %1500
        %v1502 = vadd.f32 %v1336, %v1337
        %v1503 = vadd.f32 %v1502, %v1338
        %v1504 = vadd.f32 %v1503, %v1339
        %1505 = vadd.xlane.f32.xlu0 %v1504
        %v1506 = vpop.xlane.xlu0 %1505
        %v1507 = vadd.f32 %v1340, %v1341
        %v1508 = vadd.f32 %v1507, %v1342
        %v1509 = vadd.f32 %v1508, %v1343
        %1510 = vadd.xlane.f32.xlu0 %v1509
        %v1511 = vpop.xlane.xlu0 %1510
        %v1512 = vadd.f32 %v1344, %v1345
        %v1513 = vadd.f32 %v1512, %v1346
        %v1514 = vadd.f32 %v1513, %v1347
        %1515 = vadd.xlane.f32.xlu0 %v1514
        %v1516 = vpop.xlane.xlu0 %1515
        %v1517 = vadd.f32 %v1348, %v1349
        %v1518 = vadd.f32 %v1517, %v1350
        %v1519 = vadd.f32 %v1518, %v1351
        %1520 = vadd.xlane.f32.xlu0 %v1519
        %v1521 = vpop.xlane.xlu0 %1520
        %v1522 = vadd.f32 %v1352, %v1353
        %v1523 = vadd.f32 %v1522, %v1354
        %v1524 = vadd.f32 %v1523, %v1355
        %1525 = vadd.xlane.f32.xlu0 %v1524
        %v1526 = vpop.xlane.xlu0 %1525
        %v1527 = vadd.f32 %v1356, %v1357
        %v1528 = vadd.f32 %v1527, %v1358
        %v1529 = vadd.f32 %v1528, %v1359
        %1530 = vadd.xlane.f32.xlu0 %v1529
        %v1531 = vpop.xlane.xlu0 %1530
        %v1532 = vadd.f32 %v1360, %v1361
        %v1533 = vadd.f32 %v1532, %v1362
        %v1534 = vadd.f32 %v1533, %v1363
        %1535 = vadd.xlane.f32.xlu0 %v1534
        %v1536 = vpop.xlane.xlu0 %1535
        %v1537 = vadd.f32 %v1364, %v1365
        %v1538 = vadd.f32 %v1537, %v1366
        %v1539 = vadd.f32 %v1538, %v1367
        %1540 = vadd.xlane.f32.xlu0 %v1539
        %v1541 = vpop.xlane.xlu0 %1540
        %v1542 = vadd.f32 %v1368, %v1369
        %v1543 = vadd.f32 %v1542, %v1370
        %v1544 = vadd.f32 %v1543, %v1371
        %1545 = vadd.xlane.f32.xlu0 %v1544
        %v1546 = vpop.xlane.xlu0 %1545
        %v1547 = vadd.f32 %v1372, %v1373
        %v1548 = vadd.f32 %v1547, %v1374
        %v1549 = vadd.f32 %v1548, %v1375
        %1550 = vadd.xlane.f32.xlu0 %v1549
        %v1551 = vpop.xlane.xlu0 %1550
        %v1552 = vadd.f32 %v1376, %v1377
        %v1553 = vadd.f32 %v1552, %v1378
        %v1554 = vadd.f32 %v1553, %v1379
        %1555 = vadd.xlane.f32.xlu0 %v1554
        %v1556 = vpop.xlane.xlu0 %1555
        %v1557 = vadd.f32 %v1380, %v1381
        %v1558 = vadd.f32 %v1557, %v1382
        %v1559 = vadd.f32 %v1558, %v1383
        %1560 = vadd.xlane.f32.xlu0 %v1559
        %v1561 = vpop.xlane.xlu0 %1560
        %v1562 = vadd.f32 %v1384, %v1385
        %v1563 = vadd.f32 %v1562, %v1386
        %v1564 = vadd.f32 %v1563, %v1387
        %1565 = vadd.xlane.f32.xlu0 %v1564
        %v1566 = vpop.xlane.xlu0 %1565
        %v1567 = vadd.f32 %v1388, %v1389
        %v1568 = vadd.f32 %v1567, %v1390
        %v1569 = vadd.f32 %v1568, %v1391
        %1570 = vadd.xlane.f32.xlu0 %v1569
        %v1571 = vpop.xlane.xlu0 %1570
        %v1572 = vadd.f32 %v1392, %v1393
        %v1573 = vadd.f32 %v1572, %v1394
        %v1574 = vadd.f32 %v1573, %v1395
        %1575 = vadd.xlane.f32.xlu0 %v1574
        %v1576 = vpop.xlane.xlu0 %1575
        %v1577 = vadd.f32 %v1396, %v1397
        %v1578 = vadd.f32 %v1577, %v1398
        %v1579 = vadd.f32 %v1578, %v1399
        %1580 = vadd.xlane.f32.xlu0 %v1579
        %v1581 = vpop.xlane.xlu0 %1580
        %v1582 = vadd.f32 %v1400, %v1401
        %v1583 = vadd.f32 %v1582, %v1402
        %v1584 = vadd.f32 %v1583, %v1403
        %1585 = vadd.xlane.f32.xlu0 %v1584
        %v1586 = vpop.xlane.xlu0 %1585
        %v1587 = vadd.f32 %v1404, %v1405
        %v1588 = vadd.f32 %v1587, %v1406
        %v1589 = vadd.f32 %v1588, %v1407
        %1590 = vadd.xlane.f32.xlu0 %v1589
        %v1591 = vpop.xlane.xlu0 %1590
        %v1592 = vadd.f32 %v1408, %v1409
        %v1593 = vadd.f32 %v1592, %v1410
        %v1594 = vadd.f32 %v1593, %v1411
        %1595 = vadd.xlane.f32.xlu0 %v1594
        %v1596 = vpop.xlane.xlu0 %1595
        %v1597 = vadd.f32 %v1412, %v1413
        %v1598 = vadd.f32 %v1597, %v1414
        %v1599 = vadd.f32 %v1598, %v1415
        %1600 = vadd.xlane.f32.xlu0 %v1599
        %v1601 = vpop.xlane.xlu0 %1600
        %v1602 = vadd.f32 %v1416, %v1417
        %v1603 = vadd.f32 %v1602, %v1418
        %v1604 = vadd.f32 %v1603, %v1419
        %1605 = vadd.xlane.f32.xlu0 %v1604
        %v1606 = vpop.xlane.xlu0 %1605
        %v1607 = vadd.f32 %v1420, %v1421
        %v1608 = vadd.f32 %v1607, %v1422
        %v1609 = vadd.f32 %v1608, %v1423
        %1610 = vadd.xlane.f32.xlu0 %v1609
        %v1611 = vpop.xlane.xlu0 %1610
        %v1612 = vadd.f32 %v1424, %v1425
        %v1613 = vadd.f32 %v1612, %v1426
        %v1614 = vadd.f32 %v1613, %v1427
        %1615 = vadd.xlane.f32.xlu0 %v1614
        %v1616 = vpop.xlane.xlu0 %1615
        %v1617 = vadd.f32 %v1428, %v1429
        %v1618 = vadd.f32 %v1617, %v1430
        %v1619 = vadd.f32 %v1618, %v1431
        %1620 = vadd.xlane.f32.xlu0 %v1619
        %v1621 = vpop.xlane.xlu0 %1620
        %v1622 = vadd.f32 %v1432, %v1433
        %v1623 = vadd.f32 %v1622, %v1434
        %v1624 = vadd.f32 %v1623, %v1435
        %1625 = vadd.xlane.f32.xlu0 %v1624
        %v1626 = vpop.xlane.xlu0 %1625
        %v1627 = vadd.f32 %v1436, %v1437
        %v1628 = vadd.f32 %v1627, %v1438
        %v1629 = vadd.f32 %v1628, %v1439
        %1630 = vadd.xlane.f32.xlu0 %v1629
        %v1631 = vpop.xlane.xlu0 %1630
        %v1632 = vadd.f32 %v1440, %v1476
        %v1633 = vadd.f32 %v1441, %v1481
        %v1634 = vadd.f32 %v1442, %v1486
        %v1635 = vadd.f32 %v1443, %v1491
        %v1636 = vadd.f32 %v1444, %v1496
        %v1637 = vadd.f32 %v1445, %v1501
        %v1638 = vadd.f32 %v1446, %v1506
        %v1639 = vadd.f32 %v1447, %v1511
        %v1640 = vadd.f32 %v1448, %v1516
        %v1641 = vadd.f32 %v1449, %v1521
        %v1642 = vadd.f32 %v1450, %v1526
        %v1643 = vadd.f32 %v1451, %v1531
        %v1644 = vadd.f32 %v1452, %v1536
        %v1645 = vadd.f32 %v1453, %v1541
        %v1646 = vadd.f32 %v1454, %v1546
        %v1647 = vadd.f32 %v1455, %v1551
        %v1648 = vadd.f32 %v1456, %v1556
        %v1649 = vadd.f32 %v1457, %v1561
        %v1650 = vadd.f32 %v1458, %v1566
        %v1651 = vadd.f32 %v1459, %v1571
        %v1652 = vadd.f32 %v1460, %v1576
        %v1653 = vadd.f32 %v1461, %v1581
        %v1654 = vadd.f32 %v1462, %v1586
        %v1655 = vadd.f32 %v1463, %v1591
        %v1656 = vadd.f32 %v1464, %v1596
        %v1657 = vadd.f32 %v1465, %v1601
        %v1658 = vadd.f32 %v1466, %v1606
        %v1659 = vadd.f32 %v1467, %v1611
        %v1660 = vadd.f32 %v1468, %v1616
        %v1661 = vadd.f32 %v1469, %v1621
        %v1662 = vadd.f32 %v1470, %v1626
        %v1663 = vadd.f32 %v1471, %v1631
        %1664 = vst.msk [vmem:[%s313] sm:$0xff] %vm701, %v1632
        %1665 = vst.msk [vmem:[%s313 + $0x8] sm:$0xff] %vm701, %v1633
        %1666 = vst.msk [vmem:[%s313 + $0x10] sm:$0xff] %vm701, %v1634
        %1667 = vst.msk [vmem:[%s313 + $0x18] sm:$0xff] %vm701, %v1635
        %1668 = vst.msk [vmem:[%s313 + $0x20] sm:$0xff] %vm701, %v1636
        %1669 = vst.msk [vmem:[%s313 + $0x28] sm:$0xff] %vm701, %v1637
        %1670 = vst.msk [vmem:[%s313 + $0x30] sm:$0xff] %vm701, %v1638
        %1671 = vst.msk [vmem:[%s313 + $0x38] sm:$0xff] %vm701, %v1639
        %1672 = vst.msk [vmem:[%s313 + $0x40] sm:$0xff] %vm701, %v1640
        %1673 = vst.msk [vmem:[%s313 + $0x48] sm:$0xff] %vm701, %v1641
        %1674 = vst.msk [vmem:[%s313 + $0x50] sm:$0xff] %vm701, %v1642
        %1675 = vst.msk [vmem:[%s313 + $0x58] sm:$0xff] %vm701, %v1643
        %1676 = vst.msk [vmem:[%s313 + $0x60] sm:$0xff] %vm701, %v1644
        %1677 = vst.msk [vmem:[%s313 + $0x68] sm:$0xff] %vm701, %v1645
        %1678 = vst.msk [vmem:[%s313 + $0x70] sm:$0xff] %vm701, %v1646
        %1679 = vst.msk [vmem:[%s313 + $0x78] sm:$0xff] %vm701, %v1647
        %1680 = vst.msk [vmem:[%s313 + $0x80] sm:$0xff] %vm701, %v1648
        %1681 = vst.msk [vmem:[%s313 + $0x88] sm:$0xff] %vm701, %v1649
        %1682 = vst.msk [vmem:[%s313 + $0x90] sm:$0xff] %vm701, %v1650
        %1683 = vst.msk [vmem:[%s313 + $0x98] sm:$0xff] %vm701, %v1651
        %1684 = vst.msk [vmem:[%s313 + $0xa0] sm:$0xff] %vm701, %v1652
        %1685 = vst.msk [vmem:[%s313 + $0xa8] sm:$0xff] %vm701, %v1653
        %1686 = vst.msk [vmem:[%s313 + $0xb0] sm:$0xff] %vm701, %v1654
        %1687 = vst.msk [vmem:[%s313 + $0xb8] sm:$0xff] %vm701, %v1655
        %1688 = vst.msk [vmem:[%s313 + $0xc0] sm:$0xff] %vm701, %v1656
        %1689 = vst.msk [vmem:[%s313 + $0xc8] sm:$0xff] %vm701, %v1657
        %1690 = vst.msk [vmem:[%s313 + $0xd0] sm:$0xff] %vm701, %v1658
        %1691 = vst.msk [vmem:[%s313 + $0xd8] sm:$0xff] %vm701, %v1659
        %1692 = vst.msk [vmem:[%s313 + $0xe0] sm:$0xff] %vm701, %v1660
        %1693 = vst.msk [vmem:[%s313 + $0xe8] sm:$0xff] %vm701, %v1661
        %1694 = vst.msk [vmem:[%s313 + $0xf0] sm:$0xff] %vm701, %v1662
        %1695 = vst.msk [vmem:[%s313 + $0xf8] sm:$0xff] %vm701, %v1663
        %v1696 = vld [vmem:[%s303] ss:$2 sm:$0xf]
        %v1697 = vadd.f32 %v1312, %v1316
        %v1698 = vadd.f32 %v1697, %v1320
        %v1699 = vadd.f32 %v1698, %v1324
        %v1700 = vadd.f32 %v1699, %v1328
        %v1701 = vadd.f32 %v1700, %v1332
        %v1702 = vadd.f32 %v1701, %v1336
        %v1703 = vadd.f32 %v1702, %v1340
        %v1704 = vadd.f32 %v1703, %v1344
        %v1705 = vadd.f32 %v1704, %v1348
        %v1706 = vadd.f32 %v1705, %v1352
        %v1707 = vadd.f32 %v1706, %v1356
        %v1708 = vadd.f32 %v1707, %v1360
        %v1709 = vadd.f32 %v1708, %v1364
        %v1710 = vadd.f32 %v1709, %v1368
        %v1711 = vadd.f32 %v1710, %v1372
        %v1712 = vadd.f32 %v1711, %v1376
        %v1713 = vadd.f32 %v1712, %v1380
        %v1714 = vadd.f32 %v1713, %v1384
        %v1715 = vadd.f32 %v1714, %v1388
        %v1716 = vadd.f32 %v1715, %v1392
        %v1717 = vadd.f32 %v1716, %v1396
        %v1718 = vadd.f32 %v1717, %v1400
        %v1719 = vadd.f32 %v1718, %v1404
        %v1720 = vadd.f32 %v1719, %v1408
        %v1721 = vadd.f32 %v1720, %v1412
        %v1722 = vadd.f32 %v1721, %v1416
        %v1723 = vadd.f32 %v1722, %v1420
        %v1724 = vadd.f32 %v1723, %v1424
        %v1725 = vadd.f32 %v1724, %v1428
        %v1726 = vadd.f32 %v1725, %v1432
        %v1727 = vadd.f32 %v1726, %v1436
        %v1728 = vrot.slane %v1727, 4
        %v1729 = vadd.f32 %v1727, %v1728
        %v1730 = vrot.slane %v1729, 2
        %v1731 = vadd.f32 %v1729, %v1730
        %v1732 = vrot.slane %v1731, 1
        %v1733 = vadd.f32 %v1731, %v1732
        %v1734 = vadd.f32 %v1313, %v1317
        %v1735 = vadd.f32 %v1734, %v1321
        %v1736 = vadd.f32 %v1735, %v1325
        %v1737 = vadd.f32 %v1736, %v1329
        %v1738 = vadd.f32 %v1737, %v1333
        %v1739 = vadd.f32 %v1738, %v1337
        %v1740 = vadd.f32 %v1739, %v1341
        %v1741 = vadd.f32 %v1740, %v1345
        %v1742 = vadd.f32 %v1741, %v1349
        %v1743 = vadd.f32 %v1742, %v1353
        %v1744 = vadd.f32 %v1743, %v1357
        %v1745 = vadd.f32 %v1744, %v1361
        %v1746 = vadd.f32 %v1745, %v1365
        %v1747 = vadd.f32 %v1746, %v1369
        %v1748 = vadd.f32 %v1747, %v1373
        %v1749 = vadd.f32 %v1748, %v1377
        %v1750 = vadd.f32 %v1749, %v1381
        %v1751 = vadd.f32 %v1750, %v1385
        %v1752 = vadd.f32 %v1751, %v1389
        %v1753 = vadd.f32 %v1752, %v1393
        %v1754 = vadd.f32 %v1753, %v1397
        %v1755 = vadd.f32 %v1754, %v1401
        %v1756 = vadd.f32 %v1755, %v1405
        %v1757 = vadd.f32 %v1756, %v1409
        %v1758 = vadd.f32 %v1757, %v1413
        %v1759 = vadd.f32 %v1758, %v1417
        %v1760 = vadd.f32 %v1759, %v1421
        %v1761 = vadd.f32 %v1760, %v1425
        %v1762 = vadd.f32 %v1761, %v1429
        %v1763 = vadd.f32 %v1762, %v1433
        %v1764 = vadd.f32 %v1763, %v1437
        %v1765 = vrot.slane %v1764, 4
        %v1766 = vadd.f32 %v1764, %v1765
        %v1767 = vrot.slane %v1766, 2
        %v1768 = vadd.f32 %v1766, %v1767
        %v1769 = vrot.slane %v1768, 1
        %v1770 = vadd.f32 %v1768, %v1769
        %v1771 = vadd.f32 %v1314, %v1318
        %v1772 = vadd.f32 %v1771, %v1322
        %v1773 = vadd.f32 %v1772, %v1326
        %v1774 = vadd.f32 %v1773, %v1330
        %v1775 = vadd.f32 %v1774, %v1334
        %v1776 = vadd.f32 %v1775, %v1338
        %v1777 = vadd.f32 %v1776, %v1342
        %v1778 = vadd.f32 %v1777, %v1346
        %v1779 = vadd.f32 %v1778, %v1350
        %v1780 = vadd.f32 %v1779, %v1354
        %v1781 = vadd.f32 %v1780, %v1358
        %v1782 = vadd.f32 %v1781, %v1362
        %v1783 = vadd.f32 %v1782, %v1366
        %v1784 = vadd.f32 %v1783, %v1370
        %v1785 = vadd.f32 %v1784, %v1374
        %v1786 = vadd.f32 %v1785, %v1378
        %v1787 = vadd.f32 %v1786, %v1382
        %v1788 = vadd.f32 %v1787, %v1386
        %v1789 = vadd.f32 %v1788, %v1390
        %v1790 = vadd.f32 %v1789, %v1394
        %v1791 = vadd.f32 %v1790, %v1398
        %v1792 = vadd.f32 %v1791, %v1402
        %v1793 = vadd.f32 %v1792, %v1406
        %v1794 = vadd.f32 %v1793, %v1410
        %v1795 = vadd.f32 %v1794, %v1414
        %v1796 = vadd.f32 %v1795, %v1418
        %v1797 = vadd.f32 %v1796, %v1422
        %v1798 = vadd.f32 %v1797, %v1426
        %v1799 = vadd.f32 %v1798, %v1430
        %v1800 = vadd.f32 %v1799, %v1434
        %v1801 = vadd.f32 %v1800, %v1438
        %v1802 = vrot.slane %v1801, 4
        %v1803 = vadd.f32 %v1801, %v1802
        %v1804 = vrot.slane %v1803, 2
        %v1805 = vadd.f32 %v1803, %v1804
        %v1806 = vrot.slane %v1805, 1
        %v1807 = vadd.f32 %v1805, %v1806
        %v1808 = vadd.f32 %v1315, %v1319
        %v1809 = vadd.f32 %v1808, %v1323
        %v1810 = vadd.f32 %v1809, %v1327
        %v1811 = vadd.f32 %v1810, %v1331
        %v1812 = vadd.f32 %v1811, %v1335
        %v1813 = vadd.f32 %v1812, %v1339
        %v1814 = vadd.f32 %v1813, %v1343
        %v1815 = vadd.f32 %v1814, %v1347
        %v1816 = vadd.f32 %v1815, %v1351
        %v1817 = vadd.f32 %v1816, %v1355
        %v1818 = vadd.f32 %v1817, %v1359
        %v1819 = vadd.f32 %v1818, %v1363
        %v1820 = vadd.f32 %v1819, %v1367
        %v1821 = vadd.f32 %v1820, %v1371
        %v1822 = vadd.f32 %v1821, %v1375
        %v1823 = vadd.f32 %v1822, %v1379
        %v1824 = vadd.f32 %v1823, %v1383
        %v1825 = vadd.f32 %v1824, %v1387
        %v1826 = vadd.f32 %v1825, %v1391
        %v1827 = vadd.f32 %v1826, %v1395
        %v1828 = vadd.f32 %v1827, %v1399
        %v1829 = vadd.f32 %v1828, %v1403
        %v1830 = vadd.f32 %v1829, %v1407
        %v1831 = vadd.f32 %v1830, %v1411
        %v1832 = vadd.f32 %v1831, %v1415
        %v1833 = vadd.f32 %v1832, %v1419
        %v1834 = vadd.f32 %v1833, %v1423
        %v1835 = vadd.f32 %v1834, %v1427
        %v1836 = vadd.f32 %v1835, %v1431
        %v1837 = vadd.f32 %v1836, %v1435
        %v1838 = vadd.f32 %v1837, %v1439
        %v1839 = vrot.slane %v1838, 4
        %v1840 = vadd.f32 %v1838, %v1839
        %v1841 = vrot.slane %v1840, 2
        %v1842 = vadd.f32 %v1840, %v1841
        %v1843 = vrot.slane %v1842, 1
        %v1844 = vadd.f32 %v1842, %v1843
        %v1849 = vcombine.low %v1733, %v1770
        %v1850 = vcombine.low %v1807, %v1844
        %v1852 = vunpack.c.l.s4 1966171168
        %v1853 = vunpack.c.0.s8 %v1852
        %v1854 = vlaneseq
        %v1855 = vshrl.u32 %v1854, 7
        %v1856 = vsub.s32 %v1853, %v1855
        %v1857 = vrot.slane %v1849, %v1856
        %v1859 = vunpack.c.l.s4 1966171168
        %v1860 = vunpack.c.0.s8 %v1859
        %v1861 = vlaneseq
        %v1862 = vshrl.u32 %v1861, 7
        %v1863 = vsub.s32 %v1860, %v1862
        %v1864 = vrot.slane %v1850, %v1863
        %v1865 = vcombine.low %v1857, %v1864
        %v1867 = vunpack.c.l.s4 1966171168
        %v1868 = vunpack.c.0.s8 %v1867
        %v1869 = vlaneseq
        %v1870 = vshrl.u32 %v1869, 7
        %v1871 = vsub.s32 %v1868, %v1870
        %v1872 = vrot.slane %v1865, %v1871
        %v1874 = vadd.f32 %v1696, %v1872
        %v1875 = vlaneseq
        %vm1876 = vcmp.ge.s32.totalorder %v1875, 0
        %vm1877 = vcmp.lt.s32.totalorder %v1875, 512
        %vm1878 = vmand %vm1876, %vm1877
        %1879 = vst.msk [vmem:[%s303] ss:$2 sm:$0xf] %vm1878, %v1874
        %v1880 = vmax.f32 %v961, %v965
        %v1881 = vmax.f32 %v963, %v967
        %v1882 = vmax.f32 %v1154, %v1158
        %v1883 = vmax.f32 %v1156, %v1160
        %v1884 = vmax.f32 %v1880, %v971
        %v1885 = vmax.f32 %v1881, %v973
        %v1886 = vmax.f32 %v1882, %v1164
        %v1887 = vmax.f32 %v1883, %v1166
        %v1888 = vmax.f32 %v1884, %v975
        %v1889 = vmax.f32 %v1885, %v977
        %v1890 = vmax.f32 %v1886, %v1168
        %v1891 = vmax.f32 %v1887, %v1170
        %v1892 = vmax.f32 %v1888, %v981
        %v1893 = vmax.f32 %v1889, %v983
        %v1894 = vmax.f32 %v1890, %v1174
        %v1895 = vmax.f32 %v1891, %v1176
        %v1896 = vmax.f32 %v1892, %v985
        %v1897 = vmax.f32 %v1893, %v987
        %v1898 = vmax.f32 %v1894, %v1178
        %v1899 = vmax.f32 %v1895, %v1180
        %v1900 = vmax.f32 %v1896, %v991
        %v1901 = vmax.f32 %v1897, %v993
        %v1902 = vmax.f32 %v1898, %v1184
        %v1903 = vmax.f32 %v1899, %v1186
        %v1904 = vmax.f32 %v1900, %v995
        %v1905 = vmax.f32 %v1901, %v997
        %v1906 = vmax.f32 %v1902, %v1188
        %v1907 = vmax.f32 %v1903, %v1190
        %v1908 = vmax.f32 %v1904, %v1001
        %v1909 = vmax.f32 %v1905, %v1003
        %v1910 = vmax.f32 %v1906, %v1194
        %v1911 = vmax.f32 %v1907, %v1196
        %v1912 = vmax.f32 %v1908, %v1005
        %v1913 = vmax.f32 %v1909, %v1007
        %v1914 = vmax.f32 %v1910, %v1198
        %v1915 = vmax.f32 %v1911, %v1200
        %v1916 = vmax.f32 %v1912, %v1011
        %v1917 = vmax.f32 %v1913, %v1013
        %v1918 = vmax.f32 %v1914, %v1204
        %v1919 = vmax.f32 %v1915, %v1206
        %v1920 = vmax.f32 %v1916, %v1015
        %v1921 = vmax.f32 %v1917, %v1017
        %v1922 = vmax.f32 %v1918, %v1208
        %v1923 = vmax.f32 %v1919, %v1210
        %v1924 = vmax.f32 %v1920, %v1021
        %v1925 = vmax.f32 %v1921, %v1023
        %v1926 = vmax.f32 %v1922, %v1214
        %v1927 = vmax.f32 %v1923, %v1216
        %v1928 = vmax.f32 %v1924, %v1025
        %v1929 = vmax.f32 %v1925, %v1027
        %v1930 = vmax.f32 %v1926, %v1218
        %v1931 = vmax.f32 %v1927, %v1220
        %v1932 = vmax.f32 %v1928, %v1031
        %v1933 = vmax.f32 %v1929, %v1033
        %v1934 = vmax.f32 %v1930, %v1224
        %v1935 = vmax.f32 %v1931, %v1226
        %v1936 = vmax.f32 %v1932, %v1035
        %v1937 = vmax.f32 %v1933, %v1037
        %v1938 = vmax.f32 %v1934, %v1228
        %v1939 = vmax.f32 %v1935, %v1230
        %v1940 = vmax.f32 %v1936, %v1041
        %v1941 = vmax.f32 %v1937, %v1043
        %v1942 = vmax.f32 %v1938, %v1234
        %v1943 = vmax.f32 %v1939, %v1236
        %v1944 = vmax.f32 %v1940, %v1045
        %v1945 = vmax.f32 %v1941, %v1047
        %v1946 = vmax.f32 %v1942, %v1238
        %v1947 = vmax.f32 %v1943, %v1240
        %v1948 = vmax.f32 %v1944, %v1051
        %v1949 = vmax.f32 %v1945, %v1053
        %v1950 = vmax.f32 %v1946, %v1244
        %v1951 = vmax.f32 %v1947, %v1246
        %v1952 = vmax.f32 %v1948, %v1055
        %v1953 = vmax.f32 %v1949, %v1057
        %v1954 = vmax.f32 %v1950, %v1248
        %v1955 = vmax.f32 %v1951, %v1250
        %v1956 = vmax.f32 %v1952, %v1061
        %v1957 = vmax.f32 %v1953, %v1063
        %v1958 = vmax.f32 %v1954, %v1254
        %v1959 = vmax.f32 %v1955, %v1256
        %v1960 = vmax.f32 %v1956, %v1065
        %v1961 = vmax.f32 %v1957, %v1067
        %v1962 = vmax.f32 %v1958, %v1258
        %v1963 = vmax.f32 %v1959, %v1260
        %v1964 = vmax.f32 %v1960, %v1071
        %v1965 = vmax.f32 %v1961, %v1073
        %v1966 = vmax.f32 %v1962, %v1264
        %v1967 = vmax.f32 %v1963, %v1266
        %v1968 = vmax.f32 %v1964, %v1075
        %v1969 = vmax.f32 %v1965, %v1077
        %v1970 = vmax.f32 %v1966, %v1268
        %v1971 = vmax.f32 %v1967, %v1270
        %v1972 = vmax.f32 %v1968, %v1081
        %v1973 = vmax.f32 %v1969, %v1083
        %v1974 = vmax.f32 %v1970, %v1274
        %v1975 = vmax.f32 %v1971, %v1276
        %v1976 = vmax.f32 %v1972, %v1085
        %v1977 = vmax.f32 %v1973, %v1087
        %v1978 = vmax.f32 %v1974, %v1278
        %v1979 = vmax.f32 %v1975, %v1280
        %v1980 = vmax.f32 %v1976, %v1091
        %v1981 = vmax.f32 %v1977, %v1093
        %v1982 = vmax.f32 %v1978, %v1284
        %v1983 = vmax.f32 %v1979, %v1286
        %v1984 = vmax.f32 %v1980, %v1095
        %v1985 = vmax.f32 %v1981, %v1097
        %v1986 = vmax.f32 %v1982, %v1288
        %v1987 = vmax.f32 %v1983, %v1290
        %v1988 = vmax.f32 %v1984, %v1101
        %v1989 = vmax.f32 %v1985, %v1103
        %v1990 = vmax.f32 %v1986, %v1294
        %v1991 = vmax.f32 %v1987, %v1296
        %v1992 = vmax.f32 %v1988, %v1105
        %v1993 = vmax.f32 %v1989, %v1107
        %v1994 = vmax.f32 %v1990, %v1298
        %v1995 = vmax.f32 %v1991, %v1300
        %v1996 = vmax.f32 %v1992, %v1111
        %v1997 = vmax.f32 %v1993, %v1113
        %v1998 = vmax.f32 %v1994, %v1304
        %v1999 = vmax.f32 %v1995, %v1306
        %v2000 = vmax.f32 %v1996, %v1115
        %v2001 = vmax.f32 %v1997, %v1117
        %v2002 = vmax.f32 %v1998, %v1308
        %v2003 = vmax.f32 %v1999, %v1310
        %v2004 = vmax.f32 %v2000, %v2001
        %v2005 = vmax.f32 %v2002, %v2003
        %v2006 = vmax.f32 %v2004, %v2005
        %2007 = vmax.xlane.f32.xlu0 %v2006
        %v2008 = vpop.xlane.xlu0 %2007
        %v2009 = vrot.slane %v2008, 4
        %v2010 = vmax.f32 %v2008, %v2009
        %v2011 = vrot.slane %v2010, 2
        %v2012 = vmax.f32 %v2010, %v2011
        %v2013 = vrot.slane %v2012, 1
        %v2014 = vmax.f32 %v2012, %v2013
        %s2015 = vtos %v2014
        %s2016 = scalar_lea.vmem %s303, 1 [#allocation8]
        %v2017 = vld [vmem:[%s2016] ss:$2 sm:$0xf]
        %v2018 = vstv %s2015
        %v2019 = vmax.f32 %v2017, %v2018
        %2020 = vst.msk [vmem:[%s2016] ss:$2 sm:$0xf] %vm1878, %v2019
        %s2021 = scalar_lea.vmem [#allocation7], 16
        %v2022 = vld [vmem:[%s2021] sm:$0xff]
        %v2023 = vld [vmem:[%s2021 + $0x8] sm:$0xff]
        %v2024 = vld [vmem:[%s2021 + $0x20] sm:$0xff]
        %v2025 = vld [vmem:[%s2021 + $0x28] sm:$0xff]
        %v2026 = vld [vmem:[%s2021 + $0x40] sm:$0xff]
        %v2027 = vld [vmem:[%s2021 + $0x48] sm:$0xff]
        %v2028 = vld [vmem:[%s2021 + $0x60] sm:$0xff]
        %v2029 = vld [vmem:[%s2021 + $0x68] sm:$0xff]
        %v2030 = vld [vmem:[%s2021 + $0x80] sm:$0xff]
        %v2031 = vld [vmem:[%s2021 + $0x88] sm:$0xff]
        %v2032 = vld [vmem:[%s2021 + $0xa0] sm:$0xff]
        %v2033 = vld [vmem:[%s2021 + $0xa8] sm:$0xff]
        %v2034 = vld [vmem:[%s2021 + $0xc0] sm:$0xff]
        %v2035 = vld [vmem:[%s2021 + $0xc8] sm:$0xff]
        %v2036 = vld [vmem:[%s2021 + $0xe0] sm:$0xff]
        %v2037 = vld [vmem:[%s2021 + $0xe8] sm:$0xff]
        %v2038 = vld [vmem:[%s2021 + $0x100] sm:$0xff]
        %v2039 = vld [vmem:[%s2021 + $0x108] sm:$0xff]
        %v2040 = vld [vmem:[%s2021 + $0x120] sm:$0xff]
        %v2041 = vld [vmem:[%s2021 + $0x128] sm:$0xff]
        %v2042 = vld [vmem:[%s2021 + $0x140] sm:$0xff]
        %v2043 = vld [vmem:[%s2021 + $0x148] sm:$0xff]
        %v2044 = vld [vmem:[%s2021 + $0x160] sm:$0xff]
        %v2045 = vld [vmem:[%s2021 + $0x168] sm:$0xff]
        %v2046 = vld [vmem:[%s2021 + $0x180] sm:$0xff]
        %v2047 = vld [vmem:[%s2021 + $0x188] sm:$0xff]
        %v2048 = vld [vmem:[%s2021 + $0x1a0] sm:$0xff]
        %v2049 = vld [vmem:[%s2021 + $0x1a8] sm:$0xff]
        %v2050 = vld [vmem:[%s2021 + $0x1c0] sm:$0xff]
        %v2051 = vld [vmem:[%s2021 + $0x1c8] sm:$0xff]
        %v2052 = vld [vmem:[%s2021 + $0x1e0] sm:$0xff]
        %v2053 = vld [vmem:[%s2021 + $0x1e8] sm:$0xff]
        %v2086 = vunpack.c.l.b16 %v2022
        %v2087 = vunpack.c.h.b16 %v2022
        %v2088 = vunpack.c.l.b16 %v2023
        %v2089 = vunpack.c.h.b16 %v2023
        %v2090 = vunpack.c.l.b16 %v2024
        %v2091 = vunpack.c.h.b16 %v2024
        %v2092 = vunpack.c.l.b16 %v2025
        %v2093 = vunpack.c.h.b16 %v2025
        %v2094 = vunpack.c.l.b16 %v2026
        %v2095 = vunpack.c.h.b16 %v2026
        %v2096 = vunpack.c.l.b16 %v2027
        %v2097 = vunpack.c.h.b16 %v2027
        %v2098 = vunpack.c.l.b16 %v2028
        %v2099 = vunpack.c.h.b16 %v2028
        %v2100 = vunpack.c.l.b16 %v2029
        %v2101 = vunpack.c.h.b16 %v2029
        %v2102 = vunpack.c.l.b16 %v2030
        %v2103 = vunpack.c.h.b16 %v2030
        %v2104 = vunpack.c.l.b16 %v2031
        %v2105 = vunpack.c.h.b16 %v2031
        %v2106 = vunpack.c.l.b16 %v2032
        %v2107 = vunpack.c.h.b16 %v2032
        %v2108 = vunpack.c.l.b16 %v2033
        %v2109 = vunpack.c.h.b16 %v2033
        %v2110 = vunpack.c.l.b16 %v2034
        %v2111 = vunpack.c.h.b16 %v2034
        %v2112 = vunpack.c.l.b16 %v2035
        %v2113 = vunpack.c.h.b16 %v2035
        %v2114 = vunpack.c.l.b16 %v2036
        %v2115 = vunpack.c.h.b16 %v2036
        %v2116 = vunpack.c.l.b16 %v2037
        %v2117 = vunpack.c.h.b16 %v2037
        %v2118 = vunpack.c.l.b16 %v2038
        %v2119 = vunpack.c.h.b16 %v2038
        %v2120 = vunpack.c.l.b16 %v2039
        %v2121 = vunpack.c.h.b16 %v2039
        %v2122 = vunpack.c.l.b16 %v2040
        %v2123 = vunpack.c.h.b16 %v2040
        %v2124 = vunpack.c.l.b16 %v2041
        %v2125 = vunpack.c.h.b16 %v2041
        %v2126 = vunpack.c.l.b16 %v2042
        %v2127 = vunpack.c.h.b16 %v2042
        %v2128 = vunpack.c.l.b16 %v2043
        %v2129 = vunpack.c.h.b16 %v2043
        %v2130 = vunpack.c.l.b16 %v2044
        %v2131 = vunpack.c.h.b16 %v2044
        %v2132 = vunpack.c.l.b16 %v2045
        %v2133 = vunpack.c.h.b16 %v2045
        %v2134 = vunpack.c.l.b16 %v2046
        %v2135 = vunpack.c.h.b16 %v2046
        %v2136 = vunpack.c.l.b16 %v2047
        %v2137 = vunpack.c.h.b16 %v2047
        %v2138 = vunpack.c.l.b16 %v2048
        %v2139 = vunpack.c.h.b16 %v2048
        %v2140 = vunpack.c.l.b16 %v2049
        %v2141 = vunpack.c.h.b16 %v2049
        %v2142 = vunpack.c.l.b16 %v2050
        %v2143 = vunpack.c.h.b16 %v2050
        %v2144 = vunpack.c.l.b16 %v2051
        %v2145 = vunpack.c.h.b16 %v2051
        %v2146 = vunpack.c.l.b16 %v2052
        %v2147 = vunpack.c.h.b16 %v2052
        %v2148 = vunpack.c.l.b16 %v2053
        %v2149 = vunpack.c.h.b16 %v2053
        %v2150 = vpack.c.b16 %v2090, %v2086
        %v2151 = vpack.c.b16 %v2091, %v2087
        %v2152 = vpack.c.b16 %v2092, %v2088
        %v2153 = vpack.c.b16 %v2093, %v2089
        %v2154 = vpack.c.b16 %v2098, %v2094
        %v2155 = vpack.c.b16 %v2099, %v2095
        %v2156 = vpack.c.b16 %v2100, %v2096
        %v2157 = vpack.c.b16 %v2101, %v2097
        %v2158 = vpack.c.b16 %v2106, %v2102
        %v2159 = vpack.c.b16 %v2107, %v2103
        %v2160 = vpack.c.b16 %v2108, %v2104
        %v2161 = vpack.c.b16 %v2109, %v2105
        %v2162 = vpack.c.b16 %v2114, %v2110
        %v2163 = vpack.c.b16 %v2115, %v2111
        %v2164 = vpack.c.b16 %v2116, %v2112
        %v2165 = vpack.c.b16 %v2117, %v2113
        %v2166 = vpack.c.b16 %v2122, %v2118
        %v2167 = vpack.c.b16 %v2123, %v2119
        %v2168 = vpack.c.b16 %v2124, %v2120
        %v2169 = vpack.c.b16 %v2125, %v2121
        %v2170 = vpack.c.b16 %v2130, %v2126
        %v2171 = vpack.c.b16 %v2131, %v2127
        %v2172 = vpack.c.b16 %v2132, %v2128
        %v2173 = vpack.c.b16 %v2133, %v2129
        %v2174 = vpack.c.b16 %v2138, %v2134
        %v2175 = vpack.c.b16 %v2139, %v2135
        %v2176 = vpack.c.b16 %v2140, %v2136
        %v2177 = vpack.c.b16 %v2141, %v2137
        %v2178 = vpack.c.b16 %v2146, %v2142
        %v2179 = vpack.c.b16 %v2147, %v2143
        %v2180 = vpack.c.b16 %v2148, %v2144
        %v2181 = vpack.c.b16 %v2149, %v2145
        %2214 = vmatprep.subr.bf16.mxu0 %v2179
        %2215 = vmatpush1.bf16.msra.mxu0 %v2178
        %2216 = vmatprep.subr.bf16.mxu0 %v2175
        %2217 = vmatpush1.bf16.msra.mxu0 %v2174
        %2218 = vmatprep.subr.bf16.mxu0 %v2171
        %2219 = vmatpush1.bf16.msra.mxu0 %v2170
        %2220 = vmatprep.subr.bf16.mxu0 %v2167
        %2221 = vmatpush1.bf16.msra.mxu0 %v2166
        %2222 = vmatprep.subr.bf16.mxu0 %v2163
        %2223 = vmatpush1.bf16.msra.mxu0 %v2162
        %2224 = vmatprep.subr.bf16.mxu0 %v2159
        %2225 = vmatpush1.bf16.msra.mxu0 %v2158
        %2226 = vmatprep.subr.bf16.mxu0 %v2155
        %2227 = vmatpush1.bf16.msra.mxu0 %v2154
        %2228 = vmatprep.subr.bf16.mxu0 %v2151
        %2229 = vmatpush1.bf16.msra.mxu0 %v2150
        %2230 = vmatprep.subr.bf16.mxu0 0
        %2231 = vmatpush2.bf16.msra.mxu0 0
        %2232 = vmatprep.subr.bf16.mxu0 0
        %2233 = vmatpush2.bf16.msra.mxu0 0
        %2234 = vmatprep.subr.bf16.mxu0 0
        %2235 = vmatpush2.bf16.msra.mxu0 0
        %2236 = vmatprep.subr.bf16.mxu0 0
        %2237 = vmatpush2.bf16.msra.mxu0 0
        %2238 = vmatprep.subr.bf16.mxu0 0
        %2239 = vmatpush2.bf16.msra.mxu0 0
        %2240 = vmatprep.subr.bf16.mxu0 0
        %2241 = vmatpush2.bf16.msra.mxu0 0
        %2242 = vmatprep.subr.bf16.mxu0 0
        %2243 = vmatpush2.bf16.msra.mxu0 0
        %2244 = vmatprep.subr.bf16.mxu0 0
        %2245 = vmatpush2.bf16.msra.mxu0 0
        %2246 = vmatprep.mubr.bf16.mxu0 0
        %2247 = vmatmul.mubr.bf16.gmra.mxu0 %v685
        %v2248 = vpop.f32.mrf.mxu0
        %v2249 = vadd.f32 0.0, %v2248
        %v2250 = vpop.f32.mrf.mxu0
        %v2251 = vadd.f32 0.0, %v2250
        %v2252 = vpop.f32.mrf.mxu0
        %v2253 = vadd.f32 0.0, %v2252
        %v2254 = vpop.f32.mrf.mxu0
        %v2255 = vadd.f32 0.0, %v2254
        %2256 = vmatprep.mubr.bf16.mxu0 0
        %2257 = vmatmul.mubr.bf16.gmra.mxu0 %v686
        %v2258 = vpop.f32.mrf.mxu0
        %v2259 = vadd.f32 0.0, %v2258
        %v2260 = vpop.f32.mrf.mxu0
        %v2261 = vadd.f32 0.0, %v2260
        %v2262 = vpop.f32.mrf.mxu0
        %v2263 = vadd.f32 0.0, %v2262
        %v2264 = vpop.f32.mrf.mxu0
        %v2265 = vadd.f32 0.0, %v2264
        %2266 = vmatprep.mubr.bf16.mxu0 0
        %2267 = vmatmul.mubr.bf16.gmra.mxu0 %v687
        %v2268 = vpop.f32.mrf.mxu0
        %v2269 = vadd.f32 0.0, %v2268
        %v2270 = vpop.f32.mrf.mxu0
        %v2271 = vadd.f32 0.0, %v2270
        %v2272 = vpop.f32.mrf.mxu0
        %v2273 = vadd.f32 0.0, %v2272
        %v2274 = vpop.f32.mrf.mxu0
        %v2275 = vadd.f32 0.0, %v2274
        %2276 = vmatprep.mubr.bf16.mxu0 0
        %2277 = vmatmul.mubr.bf16.gmra.mxu0 %v688
        %v2278 = vpop.f32.mrf.mxu0
        %v2279 = vadd.f32 0.0, %v2278
        %v2280 = vpop.f32.mrf.mxu0
        %v2281 = vadd.f32 0.0, %v2280
        %v2282 = vpop.f32.mrf.mxu0
        %v2283 = vadd.f32 0.0, %v2282
        %v2284 = vpop.f32.mrf.mxu0
        %v2285 = vadd.f32 0.0, %v2284
        %2286 = vmatprep.mubr.bf16.mxu0 0
        %2287 = vmatmul.mubr.bf16.gmra.mxu0 %v689
        %v2288 = vpop.f32.mrf.mxu0
        %v2289 = vadd.f32 0.0, %v2288
        %v2290 = vpop.f32.mrf.mxu0
        %v2291 = vadd.f32 0.0, %v2290
        %v2292 = vpop.f32.mrf.mxu0
        %v2293 = vadd.f32 0.0, %v2292
        %v2294 = vpop.f32.mrf.mxu0
        %v2295 = vadd.f32 0.0, %v2294
        %2296 = vmatprep.mubr.bf16.mxu0 0
        %2297 = vmatmul.mubr.bf16.gmra.mxu0 %v690
        %v2298 = vpop.f32.mrf.mxu0
        %v2299 = vadd.f32 0.0, %v2298
        %v2300 = vpop.f32.mrf.mxu0
        %v2301 = vadd.f32 0.0, %v2300
        %v2302 = vpop.f32.mrf.mxu0
        %v2303 = vadd.f32 0.0, %v2302
        %v2304 = vpop.f32.mrf.mxu0
        %v2305 = vadd.f32 0.0, %v2304
        %2306 = vmatprep.mubr.bf16.mxu0 0
        %2307 = vmatmul.mubr.bf16.gmra.mxu0 %v691
        %v2308 = vpop.f32.mrf.mxu0
        %v2309 = vadd.f32 0.0, %v2308
        %v2310 = vpop.f32.mrf.mxu0
        %v2311 = vadd.f32 0.0, %v2310
        %v2312 = vpop.f32.mrf.mxu0
        %v2313 = vadd.f32 0.0, %v2312
        %v2314 = vpop.f32.mrf.mxu0
        %v2315 = vadd.f32 0.0, %v2314
        %2316 = vmatprep.mubr.bf16.mxu0 0
        %2317 = vmatmul.mubr.bf16.gmra.mxu0 %v692
        %v2318 = vpop.f32.mrf.mxu0
        %v2319 = vadd.f32 0.0, %v2318
        %v2320 = vpop.f32.mrf.mxu0
        %v2321 = vadd.f32 0.0, %v2320
        %v2322 = vpop.f32.mrf.mxu0
        %v2323 = vadd.f32 0.0, %v2322
        %v2324 = vpop.f32.mrf.mxu0
        %v2325 = vadd.f32 0.0, %v2324
        %2326 = vmatprep.mubr.bf16.mxu0 0
        %2327 = vmatmul.mubr.bf16.gmra.mxu0 %v693
        %v2328 = vpop.f32.mrf.mxu0
        %v2329 = vadd.f32 0.0, %v2328
        %v2330 = vpop.f32.mrf.mxu0
        %v2331 = vadd.f32 0.0, %v2330
        %v2332 = vpop.f32.mrf.mxu0
        %v2333 = vadd.f32 0.0, %v2332
        %v2334 = vpop.f32.mrf.mxu0
        %v2335 = vadd.f32 0.0, %v2334
        %2336 = vmatprep.mubr.bf16.mxu0 0
        %2337 = vmatmul.mubr.bf16.gmra.mxu0 %v694
        %v2338 = vpop.f32.mrf.mxu0
        %v2339 = vadd.f32 0.0, %v2338
        %v2340 = vpop.f32.mrf.mxu0
        %v2341 = vadd.f32 0.0, %v2340
        %v2342 = vpop.f32.mrf.mxu0
        %v2343 = vadd.f32 0.0, %v2342
        %v2344 = vpop.f32.mrf.mxu0
        %v2345 = vadd.f32 0.0, %v2344
        %2346 = vmatprep.mubr.bf16.mxu0 0
        %2347 = vmatmul.mubr.bf16.gmra.mxu0 %v695
        %v2348 = vpop.f32.mrf.mxu0
        %v2349 = vadd.f32 0.0, %v2348
        %v2350 = vpop.f32.mrf.mxu0
        %v2351 = vadd.f32 0.0, %v2350
        %v2352 = vpop.f32.mrf.mxu0
        %v2353 = vadd.f32 0.0, %v2352
        %v2354 = vpop.f32.mrf.mxu0
        %v2355 = vadd.f32 0.0, %v2354
        %2356 = vmatprep.mubr.bf16.mxu0 0
        %2357 = vmatmul.mubr.bf16.gmra.mxu0 %v696
        %v2358 = vpop.f32.mrf.mxu0
        %v2359 = vadd.f32 0.0, %v2358
        %v2360 = vpop.f32.mrf.mxu0
        %v2361 = vadd.f32 0.0, %v2360
        %v2362 = vpop.f32.mrf.mxu0
        %v2363 = vadd.f32 0.0, %v2362
        %v2364 = vpop.f32.mrf.mxu0
        %v2365 = vadd.f32 0.0, %v2364
        %2366 = vmatprep.mubr.bf16.mxu0 0
        %2367 = vmatmul.mubr.bf16.gmra.mxu0 %v697
        %v2368 = vpop.f32.mrf.mxu0
        %v2369 = vadd.f32 0.0, %v2368
        %v2370 = vpop.f32.mrf.mxu0
        %v2371 = vadd.f32 0.0, %v2370
        %v2372 = vpop.f32.mrf.mxu0
        %v2373 = vadd.f32 0.0, %v2372
        %v2374 = vpop.f32.mrf.mxu0
        %v2375 = vadd.f32 0.0, %v2374
        %2376 = vmatprep.mubr.bf16.mxu0 0
        %2377 = vmatmul.mubr.bf16.gmra.mxu0 %v698
        %v2378 = vpop.f32.mrf.mxu0
        %v2379 = vadd.f32 0.0, %v2378
        %v2380 = vpop.f32.mrf.mxu0
        %v2381 = vadd.f32 0.0, %v2380
        %v2382 = vpop.f32.mrf.mxu0
        %v2383 = vadd.f32 0.0, %v2382
        %v2384 = vpop.f32.mrf.mxu0
        %v2385 = vadd.f32 0.0, %v2384
        %2386 = vmatprep.mubr.bf16.mxu0 0
        %2387 = vmatmul.mubr.bf16.gmra.mxu0 %v699
        %v2388 = vpop.f32.mrf.mxu0
        %v2389 = vadd.f32 0.0, %v2388
        %v2390 = vpop.f32.mrf.mxu0
        %v2391 = vadd.f32 0.0, %v2390
        %v2392 = vpop.f32.mrf.mxu0
        %v2393 = vadd.f32 0.0, %v2392
        %v2394 = vpop.f32.mrf.mxu0
        %v2395 = vadd.f32 0.0, %v2394
        %2396 = vmatprep.mubr.bf16.mxu0 0
        %2397 = vmatmul.mubr.bf16.gmra.mxu0 %v700
        %v2398 = vpop.f32.mrf.mxu0
        %v2399 = vadd.f32 0.0, %v2398
        %v2400 = vpop.f32.mrf.mxu0
        %v2401 = vadd.f32 0.0, %v2400
        %v2402 = vpop.f32.mrf.mxu0
        %v2403 = vadd.f32 0.0, %v2402
        %v2404 = vpop.f32.mrf.mxu0
        %v2405 = vadd.f32 0.0, %v2404
        %2406 = vdwg.mxu0
        %2407 = vmatprep.subr.bf16.mxu0 %v2181
        %2408 = vmatpush1.bf16.msra.mxu0 %v2180
        %2409 = vmatprep.subr.bf16.mxu0 %v2177
        %2410 = vmatpush1.bf16.msra.mxu0 %v2176
        %2411 = vmatprep.subr.bf16.mxu0 %v2173
        %2412 = vmatpush1.bf16.msra.mxu0 %v2172
        %2413 = vmatprep.subr.bf16.mxu0 %v2169
        %2414 = vmatpush1.bf16.msra.mxu0 %v2168
        %2415 = vmatprep.subr.bf16.mxu0 %v2165
        %2416 = vmatpush1.bf16.msra.mxu0 %v2164
        %2417 = vmatprep.subr.bf16.mxu0 %v2161
        %2418 = vmatpush1.bf16.msra.mxu0 %v2160
        %2419 = vmatprep.subr.bf16.mxu0 %v2157
        %2420 = vmatpush1.bf16.msra.mxu0 %v2156
        %2421 = vmatprep.subr.bf16.mxu0 %v2153
        %2422 = vmatpush1.bf16.msra.mxu0 %v2152
        %2423 = vmatprep.subr.bf16.mxu0 0
        %2424 = vmatpush2.bf16.msra.mxu0 0
        %2425 = vmatprep.subr.bf16.mxu0 0
        %2426 = vmatpush2.bf16.msra.mxu0 0
        %2427 = vmatprep.subr.bf16.mxu0 0
        %2428 = vmatpush2.bf16.msra.mxu0 0
        %2429 = vmatprep.subr.bf16.mxu0 0
        %2430 = vmatpush2.bf16.msra.mxu0 0
        %2431 = vmatprep.subr.bf16.mxu0 0
        %2432 = vmatpush2.bf16.msra.mxu0 0
        %2433 = vmatprep.subr.bf16.mxu0 0
        %2434 = vmatpush2.bf16.msra.mxu0 0
        %2435 = vmatprep.subr.bf16.mxu0 0
        %2436 = vmatpush2.bf16.msra.mxu0 0
        %2437 = vmatprep.subr.bf16.mxu0 0
        %2438 = vmatpush2.bf16.msra.mxu0 0
        %2439 = vmatprep.mubr.bf16.mxu0 0
        %2440 = vmatmul.mubr.bf16.gmra.mxu0 %v685
        %v2441 = vpop.f32.mrf.mxu0
        %v2442 = vadd.f32 0.0, %v2441
        %v2443 = vpop.f32.mrf.mxu0
        %v2444 = vadd.f32 0.0, %v2443
        %v2445 = vpop.f32.mrf.mxu0
        %v2446 = vadd.f32 0.0, %v2445
        %v2447 = vpop.f32.mrf.mxu0
        %v2448 = vadd.f32 0.0, %v2447
        %2449 = vmatprep.mubr.bf16.mxu0 0
        %2450 = vmatmul.mubr.bf16.gmra.mxu0 %v686
        %v2451 = vpop.f32.mrf.mxu0
        %v2452 = vadd.f32 0.0, %v2451
        %v2453 = vpop.f32.mrf.mxu0
        %v2454 = vadd.f32 0.0, %v2453
        %v2455 = vpop.f32.mrf.mxu0
        %v2456 = vadd.f32 0.0, %v2455
        %v2457 = vpop.f32.mrf.mxu0
        %v2458 = vadd.f32 0.0, %v2457
        %2459 = vmatprep.mubr.bf16.mxu0 0
        %2460 = vmatmul.mubr.bf16.gmra.mxu0 %v687
        %v2461 = vpop.f32.mrf.mxu0
        %v2462 = vadd.f32 0.0, %v2461
        %v2463 = vpop.f32.mrf.mxu0
        %v2464 = vadd.f32 0.0, %v2463
        %v2465 = vpop.f32.mrf.mxu0
        %v2466 = vadd.f32 0.0, %v2465
        %v2467 = vpop.f32.mrf.mxu0
        %v2468 = vadd.f32 0.0, %v2467
        %2469 = vmatprep.mubr.bf16.mxu0 0
        %2470 = vmatmul.mubr.bf16.gmra.mxu0 %v688
        %v2471 = vpop.f32.mrf.mxu0
        %v2472 = vadd.f32 0.0, %v2471
        %v2473 = vpop.f32.mrf.mxu0
        %v2474 = vadd.f32 0.0, %v2473
        %v2475 = vpop.f32.mrf.mxu0
        %v2476 = vadd.f32 0.0, %v2475
        %v2477 = vpop.f32.mrf.mxu0
        %v2478 = vadd.f32 0.0, %v2477
        %2479 = vmatprep.mubr.bf16.mxu0 0
        %2480 = vmatmul.mubr.bf16.gmra.mxu0 %v689
        %v2481 = vpop.f32.mrf.mxu0
        %v2482 = vadd.f32 0.0, %v2481
        %v2483 = vpop.f32.mrf.mxu0
        %v2484 = vadd.f32 0.0, %v2483
        %v2485 = vpop.f32.mrf.mxu0
        %v2486 = vadd.f32 0.0, %v2485
        %v2487 = vpop.f32.mrf.mxu0
        %v2488 = vadd.f32 0.0, %v2487
        %2489 = vmatprep.mubr.bf16.mxu0 0
        %2490 = vmatmul.mubr.bf16.gmra.mxu0 %v690
        %v2491 = vpop.f32.mrf.mxu0
        %v2492 = vadd.f32 0.0, %v2491
        %v2493 = vpop.f32.mrf.mxu0
        %v2494 = vadd.f32 0.0, %v2493
        %v2495 = vpop.f32.mrf.mxu0
        %v2496 = vadd.f32 0.0, %v2495
        %v2497 = vpop.f32.mrf.mxu0
        %v2498 = vadd.f32 0.0, %v2497
        %2499 = vmatprep.mubr.bf16.mxu0 0
        %2500 = vmatmul.mubr.bf16.gmra.mxu0 %v691
        %v2501 = vpop.f32.mrf.mxu0
        %v2502 = vadd.f32 0.0, %v2501
        %v2503 = vpop.f32.mrf.mxu0
        %v2504 = vadd.f32 0.0, %v2503
        %v2505 = vpop.f32.mrf.mxu0
        %v2506 = vadd.f32 0.0, %v2505
        %v2507 = vpop.f32.mrf.mxu0
        %v2508 = vadd.f32 0.0, %v2507
        %2509 = vmatprep.mubr.bf16.mxu0 0
        %2510 = vmatmul.mubr.bf16.gmra.mxu0 %v692
        %v2511 = vpop.f32.mrf.mxu0
        %v2512 = vadd.f32 0.0, %v2511
        %v2513 = vpop.f32.mrf.mxu0
        %v2514 = vadd.f32 0.0, %v2513
        %v2515 = vpop.f32.mrf.mxu0
        %v2516 = vadd.f32 0.0, %v2515
        %v2517 = vpop.f32.mrf.mxu0
        %v2518 = vadd.f32 0.0, %v2517
        %2519 = vmatprep.mubr.bf16.mxu0 0
        %2520 = vmatmul.mubr.bf16.gmra.mxu0 %v693
        %v2521 = vpop.f32.mrf.mxu0
        %v2522 = vadd.f32 0.0, %v2521
        %v2523 = vpop.f32.mrf.mxu0
        %v2524 = vadd.f32 0.0, %v2523
        %v2525 = vpop.f32.mrf.mxu0
        %v2526 = vadd.f32 0.0, %v2525
        %v2527 = vpop.f32.mrf.mxu0
        %v2528 = vadd.f32 0.0, %v2527
        %2529 = vmatprep.mubr.bf16.mxu0 0
        %2530 = vmatmul.mubr.bf16.gmra.mxu0 %v694
        %v2531 = vpop.f32.mrf.mxu0
        %v2532 = vadd.f32 0.0, %v2531
        %v2533 = vpop.f32.mrf.mxu0
        %v2534 = vadd.f32 0.0, %v2533
        %v2535 = vpop.f32.mrf.mxu0
        %v2536 = vadd.f32 0.0, %v2535
        %v2537 = vpop.f32.mrf.mxu0
        %v2538 = vadd.f32 0.0, %v2537
        %2539 = vmatprep.mubr.bf16.mxu0 0
        %2540 = vmatmul.mubr.bf16.gmra.mxu0 %v695
        %v2541 = vpop.f32.mrf.mxu0
        %v2542 = vadd.f32 0.0, %v2541
        %v2543 = vpop.f32.mrf.mxu0
        %v2544 = vadd.f32 0.0, %v2543
        %v2545 = vpop.f32.mrf.mxu0
        %v2546 = vadd.f32 0.0, %v2545
        %v2547 = vpop.f32.mrf.mxu0
        %v2548 = vadd.f32 0.0, %v2547
        %2549 = vmatprep.mubr.bf16.mxu0 0
        %2550 = vmatmul.mubr.bf16.gmra.mxu0 %v696
        %v2551 = vpop.f32.mrf.mxu0
        %v2552 = vadd.f32 0.0, %v2551
        %v2553 = vpop.f32.mrf.mxu0
        %v2554 = vadd.f32 0.0, %v2553
        %v2555 = vpop.f32.mrf.mxu0
        %v2556 = vadd.f32 0.0, %v2555
        %v2557 = vpop.f32.mrf.mxu0
        %v2558 = vadd.f32 0.0, %v2557
        %2559 = vmatprep.mubr.bf16.mxu0 0
        %2560 = vmatmul.mubr.bf16.gmra.mxu0 %v697
        %v2561 = vpop.f32.mrf.mxu0
        %v2562 = vadd.f32 0.0, %v2561
        %v2563 = vpop.f32.mrf.mxu0
        %v2564 = vadd.f32 0.0, %v2563
        %v2565 = vpop.f32.mrf.mxu0
        %v2566 = vadd.f32 0.0, %v2565
        %v2567 = vpop.f32.mrf.mxu0
        %v2568 = vadd.f32 0.0, %v2567
        %2569 = vmatprep.mubr.bf16.mxu0 0
        %2570 = vmatmul.mubr.bf16.gmra.mxu0 %v698
        %v2571 = vpop.f32.mrf.mxu0
        %v2572 = vadd.f32 0.0, %v2571
        %v2573 = vpop.f32.mrf.mxu0
        %v2574 = vadd.f32 0.0, %v2573
        %v2575 = vpop.f32.mrf.mxu0
        %v2576 = vadd.f32 0.0, %v2575
        %v2577 = vpop.f32.mrf.mxu0
        %v2578 = vadd.f32 0.0, %v2577
        %2579 = vmatprep.mubr.bf16.mxu0 0
        %2580 = vmatmul.mubr.bf16.gmra.mxu0 %v699
        %v2581 = vpop.f32.mrf.mxu0
        %v2582 = vadd.f32 0.0, %v2581
        %v2583 = vpop.f32.mrf.mxu0
        %v2584 = vadd.f32 0.0, %v2583
        %v2585 = vpop.f32.mrf.mxu0
        %v2586 = vadd.f32 0.0, %v2585
        %v2587 = vpop.f32.mrf.mxu0
        %v2588 = vadd.f32 0.0, %v2587
        %2589 = vmatprep.mubr.bf16.mxu0 0
        %2590 = vmatmul.mubr.bf16.gmra.mxu0 %v700
        %v2591 = vpop.f32.mrf.mxu0
        %v2592 = vadd.f32 0.0, %v2591
        %v2593 = vpop.f32.mrf.mxu0
        %v2594 = vadd.f32 0.0, %v2593
        %v2595 = vpop.f32.mrf.mxu0
        %v2596 = vadd.f32 0.0, %v2595
        %v2597 = vpop.f32.mrf.mxu0
        %v2598 = vadd.f32 0.0, %v2597
        %2599 = vdwg.mxu0
        %v2600 = vmax.f32 %v2249, 0.0
        %v2601 = vmax.f32 %v2251, 0.0
        %v2602 = vmax.f32 %v2442, 0.0
        %v2603 = vmax.f32 %v2444, 0.0
        %v2604 = vmax.f32 %v2253, 0.0
        %v2605 = vmax.f32 %v2255, 0.0
        %v2606 = vmax.f32 %v2446, 0.0
        %v2607 = vmax.f32 %v2448, 0.0
        %v2608 = vmax.f32 %v2259, 0.0
        %v2609 = vmax.f32 %v2261, 0.0
        %v2610 = vmax.f32 %v2452, 0.0
        %v2611 = vmax.f32 %v2454, 0.0
        %v2612 = vmax.f32 %v2263, 0.0
        %v2613 = vmax.f32 %v2265, 0.0
        %v2614 = vmax.f32 %v2456, 0.0
        %v2615 = vmax.f32 %v2458, 0.0
        %v2616 = vmax.f32 %v2269, 0.0
        %v2617 = vmax.f32 %v2271, 0.0
        %v2618 = vmax.f32 %v2462, 0.0
        %v2619 = vmax.f32 %v2464, 0.0
        %v2620 = vmax.f32 %v2273, 0.0
        %v2621 = vmax.f32 %v2275, 0.0
        %v2622 = vmax.f32 %v2466, 0.0
        %v2623 = vmax.f32 %v2468, 0.0
        %v2624 = vmax.f32 %v2279, 0.0
        %v2625 = vmax.f32 %v2281, 0.0
        %v2626 = vmax.f32 %v2472, 0.0
        %v2627 = vmax.f32 %v2474, 0.0
        %v2628 = vmax.f32 %v2283, 0.0
        %v2629 = vmax.f32 %v2285, 0.0
        %v2630 = vmax.f32 %v2476, 0.0
        %v2631 = vmax.f32 %v2478, 0.0
        %v2632 = vmax.f32 %v2289, 0.0
        %v2633 = vmax.f32 %v2291, 0.0
        %v2634 = vmax.f32 %v2482, 0.0
        %v2635 = vmax.f32 %v2484, 0.0
        %v2636 = vmax.f32 %v2293, 0.0
        %v2637 = vmax.f32 %v2295, 0.0
        %v2638 = vmax.f32 %v2486, 0.0
        %v2639 = vmax.f32 %v2488, 0.0
        %v2640 = vmax.f32 %v2299, 0.0
        %v2641 = vmax.f32 %v2301, 0.0
        %v2642 = vmax.f32 %v2492, 0.0
        %v2643 = vmax.f32 %v2494, 0.0
        %v2644 = vmax.f32 %v2303, 0.0
        %v2645 = vmax.f32 %v2305, 0.0
        %v2646 = vmax.f32 %v2496, 0.0
        %v2647 = vmax.f32 %v2498, 0.0
        %v2648 = vmax.f32 %v2309, 0.0
        %v2649 = vmax.f32 %v2311, 0.0
        %v2650 = vmax.f32 %v2502, 0.0
        %v2651 = vmax.f32 %v2504, 0.0
        %v2652 = vmax.f32 %v2313, 0.0
        %v2653 = vmax.f32 %v2315, 0.0
        %v2654 = vmax.f32 %v2506, 0.0
        %v2655 = vmax.f32 %v2508, 0.0
        %v2656 = vmax.f32 %v2319, 0.0
        %v2657 = vmax.f32 %v2321, 0.0
        %v2658 = vmax.f32 %v2512, 0.0
        %v2659 = vmax.f32 %v2514, 0.0
        %v2660 = vmax.f32 %v2323, 0.0
        %v2661 = vmax.f32 %v2325, 0.0
        %v2662 = vmax.f32 %v2516, 0.0
        %v2663 = vmax.f32 %v2518, 0.0
        %v2664 = vmax.f32 %v2329, 0.0
        %v2665 = vmax.f32 %v2331, 0.0
        %v2666 = vmax.f32 %v2522, 0.0
        %v2667 = vmax.f32 %v2524, 0.0
        %v2668 = vmax.f32 %v2333, 0.0
        %v2669 = vmax.f32 %v2335, 0.0
        %v2670 = vmax.f32 %v2526, 0.0
        %v2671 = vmax.f32 %v2528, 0.0
        %v2672 = vmax.f32 %v2339, 0.0
        %v2673 = vmax.f32 %v2341, 0.0
        %v2674 = vmax.f32 %v2532, 0.0
        %v2675 = vmax.f32 %v2534, 0.0
        %v2676 = vmax.f32 %v2343, 0.0
        %v2677 = vmax.f32 %v2345, 0.0
        %v2678 = vmax.f32 %v2536, 0.0
        %v2679 = vmax.f32 %v2538, 0.0
        %v2680 = vmax.f32 %v2349, 0.0
        %v2681 = vmax.f32 %v2351, 0.0
        %v2682 = vmax.f32 %v2542, 0.0
        %v2683 = vmax.f32 %v2544, 0.0
        %v2684 = vmax.f32 %v2353, 0.0
        %v2685 = vmax.f32 %v2355, 0.0
        %v2686 = vmax.f32 %v2546, 0.0
        %v2687 = vmax.f32 %v2548, 0.0
        %v2688 = vmax.f32 %v2359, 0.0
        %v2689 = vmax.f32 %v2361, 0.0
        %v2690 = vmax.f32 %v2552, 0.0
        %v2691 = vmax.f32 %v2554, 0.0
        %v2692 = vmax.f32 %v2363, 0.0
        %v2693 = vmax.f32 %v2365, 0.0
        %v2694 = vmax.f32 %v2556, 0.0
        %v2695 = vmax.f32 %v2558, 0.0
        %v2696 = vmax.f32 %v2369, 0.0
        %v2697 = vmax.f32 %v2371, 0.0
        %v2698 = vmax.f32 %v2562, 0.0
        %v2699 = vmax.f32 %v2564, 0.0
        %v2700 = vmax.f32 %v2373, 0.0
        %v2701 = vmax.f32 %v2375, 0.0
        %v2702 = vmax.f32 %v2566, 0.0
        %v2703 = vmax.f32 %v2568, 0.0
        %v2704 = vmax.f32 %v2379, 0.0
        %v2705 = vmax.f32 %v2381, 0.0
        %v2706 = vmax.f32 %v2572, 0.0
        %v2707 = vmax.f32 %v2574, 0.0
        %v2708 = vmax.f32 %v2383, 0.0
        %v2709 = vmax.f32 %v2385, 0.0
        %v2710 = vmax.f32 %v2576, 0.0
        %v2711 = vmax.f32 %v2578, 0.0
        %v2712 = vmax.f32 %v2389, 0.0
        %v2713 = vmax.f32 %v2391, 0.0
        %v2714 = vmax.f32 %v2582, 0.0
        %v2715 = vmax.f32 %v2584, 0.0
        %v2716 = vmax.f32 %v2393, 0.0
        %v2717 = vmax.f32 %v2395, 0.0
        %v2718 = vmax.f32 %v2586, 0.0
        %v2719 = vmax.f32 %v2588, 0.0
        %v2720 = vmax.f32 %v2399, 0.0
        %v2721 = vmax.f32 %v2401, 0.0
        %v2722 = vmax.f32 %v2592, 0.0
        %v2723 = vmax.f32 %v2594, 0.0
        %v2724 = vmax.f32 %v2403, 0.0
        %v2725 = vmax.f32 %v2405, 0.0
        %v2726 = vmax.f32 %v2596, 0.0
        %v2727 = vmax.f32 %v2598, 0.0
        %v2728 = vld [vmem:[%s313] sm:$0xff]
        %v2729 = vld [vmem:[%s313 + $0x8] sm:$0xff]
        %v2730 = vld [vmem:[%s313 + $0x10] sm:$0xff]
        %v2731 = vld [vmem:[%s313 + $0x18] sm:$0xff]
        %v2732 = vld [vmem:[%s313 + $0x20] sm:$0xff]
        %v2733 = vld [vmem:[%s313 + $0x28] sm:$0xff]
        %v2734 = vld [vmem:[%s313 + $0x30] sm:$0xff]
        %v2735 = vld [vmem:[%s313 + $0x38] sm:$0xff]
        %v2736 = vld [vmem:[%s313 + $0x40] sm:$0xff]
        %v2737 = vld [vmem:[%s313 + $0x48] sm:$0xff]
        %v2738 = vld [vmem:[%s313 + $0x50] sm:$0xff]
        %v2739 = vld [vmem:[%s313 + $0x58] sm:$0xff]
        %v2740 = vld [vmem:[%s313 + $0x60] sm:$0xff]
        %v2741 = vld [vmem:[%s313 + $0x68] sm:$0xff]
        %v2742 = vld [vmem:[%s313 + $0x70] sm:$0xff]
        %v2743 = vld [vmem:[%s313 + $0x78] sm:$0xff]
        %v2744 = vld [vmem:[%s313 + $0x80] sm:$0xff]
        %v2745 = vld [vmem:[%s313 + $0x88] sm:$0xff]
        %v2746 = vld [vmem:[%s313 + $0x90] sm:$0xff]
        %v2747 = vld [vmem:[%s313 + $0x98] sm:$0xff]
        %v2748 = vld [vmem:[%s313 + $0xa0] sm:$0xff]
        %v2749 = vld [vmem:[%s313 + $0xa8] sm:$0xff]
        %v2750 = vld [vmem:[%s313 + $0xb0] sm:$0xff]
        %v2751 = vld [vmem:[%s313 + $0xb8] sm:$0xff]
        %v2752 = vld [vmem:[%s313 + $0xc0] sm:$0xff]
        %v2753 = vld [vmem:[%s313 + $0xc8] sm:$0xff]
        %v2754 = vld [vmem:[%s313 + $0xd0] sm:$0xff]
        %v2755 = vld [vmem:[%s313 + $0xd8] sm:$0xff]
        %v2756 = vld [vmem:[%s313 + $0xe0] sm:$0xff]
        %v2757 = vld [vmem:[%s313 + $0xe8] sm:$0xff]
        %v2758 = vld [vmem:[%s313 + $0xf0] sm:$0xff]
        %v2759 = vld [vmem:[%s313 + $0xf8] sm:$0xff]
        %v2760 = vadd.f32 %v2600, %v2601
        %v2761 = vadd.f32 %v2760, %v2602
        %v2762 = vadd.f32 %v2761, %v2603
        %2763 = vadd.xlane.f32.xlu0 %v2762
        %v2764 = vpop.xlane.xlu0 %2763
        %v2765 = vadd.f32 %v2604, %v2605
        %v2766 = vadd.f32 %v2765, %v2606
        %v2767 = vadd.f32 %v2766, %v2607
        %2768 = vadd.xlane.f32.xlu0 %v2767
        %v2769 = vpop.xlane.xlu0 %2768
        %v2770 = vadd.f32 %v2608, %v2609
        %v2771 = vadd.f32 %v2770, %v2610
        %v2772 = vadd.f32 %v2771, %v2611
        %2773 = vadd.xlane.f32.xlu0 %v2772
        %v2774 = vpop.xlane.xlu0 %2773
        %v2775 = vadd.f32 %v2612, %v2613
        %v2776 = vadd.f32 %v2775, %v2614
        %v2777 = vadd.f32 %v2776, %v2615
        %2778 = vadd.xlane.f32.xlu0 %v2777
        %v2779 = vpop.xlane.xlu0 %2778
        %v2780 = vadd.f32 %v2616, %v2617
        %v2781 = vadd.f32 %v2780, %v2618
        %v2782 = vadd.f32 %v2781, %v2619
        %2783 = vadd.xlane.f32.xlu0 %v2782
        %v2784 = vpop.xlane.xlu0 %2783
        %v2785 = vadd.f32 %v2620, %v2621
        %v2786 = vadd.f32 %v2785, %v2622
        %v2787 = vadd.f32 %v2786, %v2623
        %2788 = vadd.xlane.f32.xlu0 %v2787
        %v2789 = vpop.xlane.xlu0 %2788
        %v2790 = vadd.f32 %v2624, %v2625
        %v2791 = vadd.f32 %v2790, %v2626
        %v2792 = vadd.f32 %v2791, %v2627
        %2793 = vadd.xlane.f32.xlu0 %v2792
        %v2794 = vpop.xlane.xlu0 %2793
        %v2795 = vadd.f32 %v2628, %v2629
        %v2796 = vadd.f32 %v2795, %v2630
        %v2797 = vadd.f32 %v2796, %v2631
        %2798 = vadd.xlane.f32.xlu0 %v2797
        %v2799 = vpop.xlane.xlu0 %2798
        %v2800 = vadd.f32 %v2632, %v2633
        %v2801 = vadd.f32 %v2800, %v2634
        %v2802 = vadd.f32 %v2801, %v2635
        %2803 = vadd.xlane.f32.xlu0 %v2802
        %v2804 = vpop.xlane.xlu0 %2803
        %v2805 = vadd.f32 %v2636, %v2637
        %v2806 = vadd.f32 %v2805, %v2638
        %v2807 = vadd.f32 %v2806, %v2639
        %2808 = vadd.xlane.f32.xlu0 %v2807
        %v2809 = vpop.xlane.xlu0 %2808
        %v2810 = vadd.f32 %v2640, %v2641
        %v2811 = vadd.f32 %v2810, %v2642
        %v2812 = vadd.f32 %v2811, %v2643
        %2813 = vadd.xlane.f32.xlu0 %v2812
        %v2814 = vpop.xlane.xlu0 %2813
        %v2815 = vadd.f32 %v2644, %v2645
        %v2816 = vadd.f32 %v2815, %v2646
        %v2817 = vadd.f32 %v2816, %v2647
        %2818 = vadd.xlane.f32.xlu0 %v2817
        %v2819 = vpop.xlane.xlu0 %2818
        %v2820 = vadd.f32 %v2648, %v2649
        %v2821 = vadd.f32 %v2820, %v2650
        %v2822 = vadd.f32 %v2821, %v2651
        %2823 = vadd.xlane.f32.xlu0 %v2822
        %v2824 = vpop.xlane.xlu0 %2823
        %v2825 = vadd.f32 %v2652, %v2653
        %v2826 = vadd.f32 %v2825, %v2654
        %v2827 = vadd.f32 %v2826, %v2655
        %2828 = vadd.xlane.f32.xlu0 %v2827
        %v2829 = vpop.xlane.xlu0 %2828
        %v2830 = vadd.f32 %v2656, %v2657
        %v2831 = vadd.f32 %v2830, %v2658
        %v2832 = vadd.f32 %v2831, %v2659
        %2833 = vadd.xlane.f32.xlu0 %v2832
        %v2834 = vpop.xlane.xlu0 %2833
        %v2835 = vadd.f32 %v2660, %v2661
        %v2836 = vadd.f32 %v2835, %v2662
        %v2837 = vadd.f32 %v2836, %v2663
        %2838 = vadd.xlane.f32.xlu0 %v2837
        %v2839 = vpop.xlane.xlu0 %2838
        %v2840 = vadd.f32 %v2664, %v2665
        %v2841 = vadd.f32 %v2840, %v2666
        %v2842 = vadd.f32 %v2841, %v2667
        %2843 = vadd.xlane.f32.xlu0 %v2842
        %v2844 = vpop.xlane.xlu0 %2843
        %v2845 = vadd.f32 %v2668, %v2669
        %v2846 = vadd.f32 %v2845, %v2670
        %v2847 = vadd.f32 %v2846, %v2671
        %2848 = vadd.xlane.f32.xlu0 %v2847
        %v2849 = vpop.xlane.xlu0 %2848
        %v2850 = vadd.f32 %v2672, %v2673
        %v2851 = vadd.f32 %v2850, %v2674
        %v2852 = vadd.f32 %v2851, %v2675
        %2853 = vadd.xlane.f32.xlu0 %v2852
        %v2854 = vpop.xlane.xlu0 %2853
        %v2855 = vadd.f32 %v2676, %v2677
        %v2856 = vadd.f32 %v2855, %v2678
        %v2857 = vadd.f32 %v2856, %v2679
        %2858 = vadd.xlane.f32.xlu0 %v2857
        %v2859 = vpop.xlane.xlu0 %2858
        %v2860 = vadd.f32 %v2680, %v2681
        %v2861 = vadd.f32 %v2860, %v2682
        %v2862 = vadd.f32 %v2861, %v2683
        %2863 = vadd.xlane.f32.xlu0 %v2862
        %v2864 = vpop.xlane.xlu0 %2863
        %v2865 = vadd.f32 %v2684, %v2685
        %v2866 = vadd.f32 %v2865, %v2686
        %v2867 = vadd.f32 %v2866, %v2687
        %2868 = vadd.xlane.f32.xlu0 %v2867
        %v2869 = vpop.xlane.xlu0 %2868
        %v2870 = vadd.f32 %v2688, %v2689
        %v2871 = vadd.f32 %v2870, %v2690
        %v2872 = vadd.f32 %v2871, %v2691
        %2873 = vadd.xlane.f32.xlu0 %v2872
        %v2874 = vpop.xlane.xlu0 %2873
        %v2875 = vadd.f32 %v2692, %v2693
        %v2876 = vadd.f32 %v2875, %v2694
        %v2877 = vadd.f32 %v2876, %v2695
        %2878 = vadd.xlane.f32.xlu0 %v2877
        %v2879 = vpop.xlane.xlu0 %2878
        %v2880 = vadd.f32 %v2696, %v2697
        %v2881 = vadd.f32 %v2880, %v2698
        %v2882 = vadd.f32 %v2881, %v2699
        %2883 = vadd.xlane.f32.xlu0 %v2882
        %v2884 = vpop.xlane.xlu0 %2883
        %v2885 = vadd.f32 %v2700, %v2701
        %v2886 = vadd.f32 %v2885, %v2702
        %v2887 = vadd.f32 %v2886, %v2703
        %2888 = vadd.xlane.f32.xlu0 %v2887
        %v2889 = vpop.xlane.xlu0 %2888
        %v2890 = vadd.f32 %v2704, %v2705
        %v2891 = vadd.f32 %v2890, %v2706
        %v2892 = vadd.f32 %v2891, %v2707
        %2893 = vadd.xlane.f32.xlu0 %v2892
        %v2894 = vpop.xlane.xlu0 %2893
        %v2895 = vadd.f32 %v2708, %v2709
        %v2896 = vadd.f32 %v2895, %v2710
        %v2897 = vadd.f32 %v2896, %v2711
        %2898 = vadd.xlane.f32.xlu0 %v2897
        %v2899 = vpop.xlane.xlu0 %2898
        %v2900 = vadd.f32 %v2712, %v2713
        %v2901 = vadd.f32 %v2900, %v2714
        %v2902 = vadd.f32 %v2901, %v2715
        %2903 = vadd.xlane.f32.xlu0 %v2902
        %v2904 = vpop.xlane.xlu0 %2903
        %v2905 = vadd.f32 %v2716, %v2717
        %v2906 = vadd.f32 %v2905, %v2718
        %v2907 = vadd.f32 %v2906, %v2719
        %2908 = vadd.xlane.f32.xlu0 %v2907
        %v2909 = vpop.xlane.xlu0 %2908
        %v2910 = vadd.f32 %v2720, %v2721
        %v2911 = vadd.f32 %v2910, %v2722
        %v2912 = vadd.f32 %v2911, %v2723
        %2913 = vadd.xlane.f32.xlu0 %v2912
        %v2914 = vpop.xlane.xlu0 %2913
        %v2915 = vadd.f32 %v2724, %v2725
        %v2916 = vadd.f32 %v2915, %v2726
        %v2917 = vadd.f32 %v2916, %v2727
        %2918 = vadd.xlane.f32.xlu0 %v2917
        %v2919 = vpop.xlane.xlu0 %2918
        %v2920 = vadd.f32 %v2728, %v2764
        %v2921 = vadd.f32 %v2729, %v2769
        %v2922 = vadd.f32 %v2730, %v2774
        %v2923 = vadd.f32 %v2731, %v2779
        %v2924 = vadd.f32 %v2732, %v2784
        %v2925 = vadd.f32 %v2733, %v2789
        %v2926 = vadd.f32 %v2734, %v2794
        %v2927 = vadd.f32 %v2735, %v2799
        %v2928 = vadd.f32 %v2736, %v2804
        %v2929 = vadd.f32 %v2737, %v2809
        %v2930 = vadd.f32 %v2738, %v2814
        %v2931 = vadd.f32 %v2739, %v2819
        %v2932 = vadd.f32 %v2740, %v2824
        %v2933 = vadd.f32 %v2741, %v2829
        %v2934 = vadd.f32 %v2742, %v2834
        %v2935 = vadd.f32 %v2743, %v2839
        %v2936 = vadd.f32 %v2744, %v2844
        %v2937 = vadd.f32 %v2745, %v2849
        %v2938 = vadd.f32 %v2746, %v2854
        %v2939 = vadd.f32 %v2747, %v2859
        %v2940 = vadd.f32 %v2748, %v2864
        %v2941 = vadd.f32 %v2749, %v2869
        %v2942 = vadd.f32 %v2750, %v2874
        %v2943 = vadd.f32 %v2751, %v2879
        %v2944 = vadd.f32 %v2752, %v2884
        %v2945 = vadd.f32 %v2753, %v2889
        %v2946 = vadd.f32 %v2754, %v2894
        %v2947 = vadd.f32 %v2755, %v2899
        %v2948 = vadd.f32 %v2756, %v2904
        %v2949 = vadd.f32 %v2757, %v2909
        %v2950 = vadd.f32 %v2758, %v2914
        %v2951 = vadd.f32 %v2759, %v2919
        %2952 = vst.msk [vmem:[%s313] sm:$0xff] %vm701, %v2920
        %2953 = vst.msk [vmem:[%s313 + $0x8] sm:$0xff] %vm701, %v2921
        %2954 = vst.msk [vmem:[%s313 + $0x10] sm:$0xff] %vm701, %v2922
        %2955 = vst.msk [vmem:[%s313 + $0x18] sm:$0xff] %vm701, %v2923
        %2956 = vst.msk [vmem:[%s313 + $0x20] sm:$0xff] %vm701, %v2924
        %2957 = vst.msk [vmem:[%s313 + $0x28] sm:$0xff] %vm701, %v2925
        %2958 = vst.msk [vmem:[%s313 + $0x30] sm:$0xff] %vm701, %v2926
        %2959 = vst.msk [vmem:[%s313 + $0x38] sm:$0xff] %vm701, %v2927
        %2960 = vst.msk [vmem:[%s313 + $0x40] sm:$0xff] %vm701, %v2928
        %2961 = vst.msk [vmem:[%s313 + $0x48] sm:$0xff] %vm701, %v2929
        %2962 = vst.msk [vmem:[%s313 + $0x50] sm:$0xff] %vm701, %v2930
        %2963 = vst.msk [vmem:[%s313 + $0x58] sm:$0xff] %vm701, %v2931
        %2964 = vst.msk [vmem:[%s313 + $0x60] sm:$0xff] %vm701, %v2932
        %2965 = vst.msk [vmem:[%s313 + $0x68] sm:$0xff] %vm701, %v2933
        %2966 = vst.msk [vmem:[%s313 + $0x70] sm:$0xff] %vm701, %v2934
        %2967 = vst.msk [vmem:[%s313 + $0x78] sm:$0xff] %vm701, %v2935
        %2968 = vst.msk [vmem:[%s313 + $0x80] sm:$0xff] %vm701, %v2936
        %2969 = vst.msk [vmem:[%s313 + $0x88] sm:$0xff] %vm701, %v2937
        %2970 = vst.msk [vmem:[%s313 + $0x90] sm:$0xff] %vm701, %v2938
        %2971 = vst.msk [vmem:[%s313 + $0x98] sm:$0xff] %vm701, %v2939
        %2972 = vst.msk [vmem:[%s313 + $0xa0] sm:$0xff] %vm701, %v2940
        %2973 = vst.msk [vmem:[%s313 + $0xa8] sm:$0xff] %vm701, %v2941
        %2974 = vst.msk [vmem:[%s313 + $0xb0] sm:$0xff] %vm701, %v2942
        %2975 = vst.msk [vmem:[%s313 + $0xb8] sm:$0xff] %vm701, %v2943
        %2976 = vst.msk [vmem:[%s313 + $0xc0] sm:$0xff] %vm701, %v2944
        %2977 = vst.msk [vmem:[%s313 + $0xc8] sm:$0xff] %vm701, %v2945
        %2978 = vst.msk [vmem:[%s313 + $0xd0] sm:$0xff] %vm701, %v2946
        %2979 = vst.msk [vmem:[%s313 + $0xd8] sm:$0xff] %vm701, %v2947
        %2980 = vst.msk [vmem:[%s313 + $0xe0] sm:$0xff] %vm701, %v2948
        %2981 = vst.msk [vmem:[%s313 + $0xe8] sm:$0xff] %vm701, %v2949
        %2982 = vst.msk [vmem:[%s313 + $0xf0] sm:$0xff] %vm701, %v2950
        %2983 = vst.msk [vmem:[%s313 + $0xf8] sm:$0xff] %vm701, %v2951
        %s2984 = scalar_lea.vmem %s303, 8 [#allocation8]
        %v2985 = vld [vmem:[%s2984] ss:$2 sm:$0xf]
        %v2986 = vadd.f32 %v2600, %v2604
        %v2987 = vadd.f32 %v2986, %v2608
        %v2988 = vadd.f32 %v2987, %v2612
        %v2989 = vadd.f32 %v2988, %v2616
        %v2990 = vadd.f32 %v2989, %v2620
        %v2991 = vadd.f32 %v2990, %v2624
        %v2992 = vadd.f32 %v2991, %v2628
        %v2993 = vadd.f32 %v2992, %v2632
        %v2994 = vadd.f32 %v2993, %v2636
        %v2995 = vadd.f32 %v2994, %v2640
        %v2996 = vadd.f32 %v2995, %v2644
        %v2997 = vadd.f32 %v2996, %v2648
        %v2998 = vadd.f32 %v2997, %v2652
        %v2999 = vadd.f32 %v2998, %v2656
        %v3000 = vadd.f32 %v2999, %v2660
        %v3001 = vadd.f32 %v3000, %v2664
        %v3002 = vadd.f32 %v3001, %v2668
        %v3003 = vadd.f32 %v3002, %v2672
        %v3004 = vadd.f32 %v3003, %v2676
        %v3005 = vadd.f32 %v3004, %v2680
        %v3006 = vadd.f32 %v3005, %v2684
        %v3007 = vadd.f32 %v3006, %v2688
        %v3008 = vadd.f32 %v3007, %v2692
        %v3009 = vadd.f32 %v3008, %v2696
        %v3010 = vadd.f32 %v3009, %v2700
        %v3011 = vadd.f32 %v3010, %v2704
        %v3012 = vadd.f32 %v3011, %v2708
        %v3013 = vadd.f32 %v3012, %v2712
        %v3014 = vadd.f32 %v3013, %v2716
        %v3015 = vadd.f32 %v3014, %v2720
        %v3016 = vadd.f32 %v3015, %v2724
        %v3017 = vrot.slane %v3016, 4
        %v3018 = vadd.f32 %v3016, %v3017
        %v3019 = vrot.slane %v3018, 2
        %v3020 = vadd.f32 %v3018, %v3019
        %v3021 = vrot.slane %v3020, 1
        %v3022 = vadd.f32 %v3020, %v3021
        %v3023 = vadd.f32 %v2601, %v2605
        %v3024 = vadd.f32 %v3023, %v2609
        %v3025 = vadd.f32 %v3024, %v2613
        %v3026 = vadd.f32 %v3025, %v2617
        %v3027 = vadd.f32 %v3026, %v2621
        %v3028 = vadd.f32 %v3027, %v2625
        %v3029 = vadd.f32 %v3028, %v2629
        %v3030 = vadd.f32 %v3029, %v2633
        %v3031 = vadd.f32 %v3030, %v2637
        %v3032 = vadd.f32 %v3031, %v2641
        %v3033 = vadd.f32 %v3032, %v2645
        %v3034 = vadd.f32 %v3033, %v2649
        %v3035 = vadd.f32 %v3034, %v2653
        %v3036 = vadd.f32 %v3035, %v2657
        %v3037 = vadd.f32 %v3036, %v2661
        %v3038 = vadd.f32 %v3037, %v2665
        %v3039 = vadd.f32 %v3038, %v2669
        %v3040 = vadd.f32 %v3039, %v2673
        %v3041 = vadd.f32 %v3040, %v2677
        %v3042 = vadd.f32 %v3041, %v2681
        %v3043 = vadd.f32 %v3042, %v2685
        %v3044 = vadd.f32 %v3043, %v2689
        %v3045 = vadd.f32 %v3044, %v2693
        %v3046 = vadd.f32 %v3045, %v2697
        %v3047 = vadd.f32 %v3046, %v2701
        %v3048 = vadd.f32 %v3047, %v2705
        %v3049 = vadd.f32 %v3048, %v2709
        %v3050 = vadd.f32 %v3049, %v2713
        %v3051 = vadd.f32 %v3050, %v2717
        %v3052 = vadd.f32 %v3051, %v2721
        %v3053 = vadd.f32 %v3052, %v2725
        %v3054 = vrot.slane %v3053, 4
        %v3055 = vadd.f32 %v3053, %v3054
        %v3056 = vrot.slane %v3055, 2
        %v3057 = vadd.f32 %v3055, %v3056
        %v3058 = vrot.slane %v3057, 1
        %v3059 = vadd.f32 %v3057, %v3058
        %v3060 = vadd.f32 %v2602, %v2606
        %v3061 = vadd.f32 %v3060, %v2610
        %v3062 = vadd.f32 %v3061, %v2614
        %v3063 = vadd.f32 %v3062, %v2618
        %v3064 = vadd.f32 %v3063, %v2622
        %v3065 = vadd.f32 %v3064, %v2626
        %v3066 = vadd.f32 %v3065, %v2630
        %v3067 = vadd.f32 %v3066, %v2634
        %v3068 = vadd.f32 %v3067, %v2638
        %v3069 = vadd.f32 %v3068, %v2642
        %v3070 = vadd.f32 %v3069, %v2646
        %v3071 = vadd.f32 %v3070, %v2650
        %v3072 = vadd.f32 %v3071, %v2654
        %v3073 = vadd.f32 %v3072, %v2658
        %v3074 = vadd.f32 %v3073, %v2662
        %v3075 = vadd.f32 %v3074, %v2666
        %v3076 = vadd.f32 %v3075, %v2670
        %v3077 = vadd.f32 %v3076, %v2674
        %v3078 = vadd.f32 %v3077, %v2678
        %v3079 = vadd.f32 %v3078, %v2682
        %v3080 = vadd.f32 %v3079, %v2686
        %v3081 = vadd.f32 %v3080, %v2690
        %v3082 = vadd.f32 %v3081, %v2694
        %v3083 = vadd.f32 %v3082, %v2698
        %v3084 = vadd.f32 %v3083, %v2702
        %v3085 = vadd.f32 %v3084, %v2706
        %v3086 = vadd.f32 %v3085, %v2710
        %v3087 = vadd.f32 %v3086, %v2714
        %v3088 = vadd.f32 %v3087, %v2718
        %v3089 = vadd.f32 %v3088, %v2722
        %v3090 = vadd.f32 %v3089, %v2726
        %v3091 = vrot.slane %v3090, 4
        %v3092 = vadd.f32 %v3090, %v3091
        %v3093 = vrot.slane %v3092, 2
        %v3094 = vadd.f32 %v3092, %v3093
        %v3095 = vrot.slane %v3094, 1
        %v3096 = vadd.f32 %v3094, %v3095
        %v3097 = vadd.f32 %v2603, %v2607
        %v3098 = vadd.f32 %v3097, %v2611
        %v3099 = vadd.f32 %v3098, %v2615
        %v3100 = vadd.f32 %v3099, %v2619
        %v3101 = vadd.f32 %v3100, %v2623
        %v3102 = vadd.f32 %v3101, %v2627
        %v3103 = vadd.f32 %v3102, %v2631
        %v3104 = vadd.f32 %v3103, %v2635
        %v3105 = vadd.f32 %v3104, %v2639
        %v3106 = vadd.f32 %v3105, %v2643
        %v3107 = vadd.f32 %v3106, %v2647
        %v3108 = vadd.f32 %v3107, %v2651
        %v3109 = vadd.f32 %v3108, %v2655
        %v3110 = vadd.f32 %v3109, %v2659
        %v3111 = vadd.f32 %v3110, %v2663
        %v3112 = vadd.f32 %v3111, %v2667
        %v3113 = vadd.f32 %v3112, %v2671
        %v3114 = vadd.f32 %v3113, %v2675
        %v3115 = vadd.f32 %v3114, %v2679
        %v3116 = vadd.f32 %v3115, %v2683
        %v3117 = vadd.f32 %v3116, %v2687
        %v3118 = vadd.f32 %v3117, %v2691
        %v3119 = vadd.f32 %v3118, %v2695
        %v3120 = vadd.f32 %v3119, %v2699
        %v3121 = vadd.f32 %v3120, %v2703
        %v3122 = vadd.f32 %v3121, %v2707
        %v3123 = vadd.f32 %v3122, %v2711
        %v3124 = vadd.f32 %v3123, %v2715
        %v3125 = vadd.f32 %v3124, %v2719
        %v3126 = vadd.f32 %v3125, %v2723
        %v3127 = vadd.f32 %v3126, %v2727
        %v3128 = vrot.slane %v3127, 4
        %v3129 = vadd.f32 %v3127, %v3128
        %v3130 = vrot.slane %v3129, 2
        %v3131 = vadd.f32 %v3129, %v3130
        %v3132 = vrot.slane %v3131, 1
        %v3133 = vadd.f32 %v3131, %v3132
        %v3138 = vcombine.low %v3022, %v3059
        %v3139 = vcombine.low %v3096, %v3133
        %v3141 = vunpack.c.l.s4 1966171168
        %v3142 = vunpack.c.0.s8 %v3141
        %v3143 = vlaneseq
        %v3144 = vshrl.u32 %v3143, 7
        %v3145 = vsub.s32 %v3142, %v3144
        %v3146 = vrot.slane %v3138, %v3145
        %v3148 = vunpack.c.l.s4 1966171168
        %v3149 = vunpack.c.0.s8 %v3148
        %v3150 = vlaneseq
        %v3151 = vshrl.u32 %v3150, 7
        %v3152 = vsub.s32 %v3149, %v3151
        %v3153 = vrot.slane %v3139, %v3152
        %v3154 = vcombine.low %v3146, %v3153
        %v3156 = vunpack.c.l.s4 1966171168
        %v3157 = vunpack.c.0.s8 %v3156
        %v3158 = vlaneseq
        %v3159 = vshrl.u32 %v3158, 7
        %v3160 = vsub.s32 %v3157, %v3159
        %v3161 = vrot.slane %v3154, %v3160
        %v3163 = vadd.f32 %v2985, %v3161
        %3164 = vst.msk [vmem:[%s2984] ss:$2 sm:$0xf] %vm1878, %v3163
        %v3165 = vmax.f32 %v2249, %v2253
        %v3166 = vmax.f32 %v2251, %v2255
        %v3167 = vmax.f32 %v2442, %v2446
        %v3168 = vmax.f32 %v2444, %v2448
        %v3169 = vmax.f32 %v3165, %v2259
        %v3170 = vmax.f32 %v3166, %v2261
        %v3171 = vmax.f32 %v3167, %v2452
        %v3172 = vmax.f32 %v3168, %v2454
        %v3173 = vmax.f32 %v3169, %v2263
        %v3174 = vmax.f32 %v3170, %v2265
        %v3175 = vmax.f32 %v3171, %v2456
        %v3176 = vmax.f32 %v3172, %v2458
        %v3177 = vmax.f32 %v3173, %v2269
        %v3178 = vmax.f32 %v3174, %v2271
        %v3179 = vmax.f32 %v3175, %v2462
        %v3180 = vmax.f32 %v3176, %v2464
        %v3181 = vmax.f32 %v3177, %v2273
        %v3182 = vmax.f32 %v3178, %v2275
        %v3183 = vmax.f32 %v3179, %v2466
        %v3184 = vmax.f32 %v3180, %v2468
        %v3185 = vmax.f32 %v3181, %v2279
        %v3186 = vmax.f32 %v3182, %v2281
        %v3187 = vmax.f32 %v3183, %v2472
        %v3188 = vmax.f32 %v3184, %v2474
        %v3189 = vmax.f32 %v3185, %v2283
        %v3190 = vmax.f32 %v3186, %v2285
        %v3191 = vmax.f32 %v3187, %v2476
        %v3192 = vmax.f32 %v3188, %v2478
        %v3193 = vmax.f32 %v3189, %v2289
        %v3194 = vmax.f32 %v3190, %v2291
        %v3195 = vmax.f32 %v3191, %v2482
        %v3196 = vmax.f32 %v3192, %v2484
        %v3197 = vmax.f32 %v3193, %v2293
        %v3198 = vmax.f32 %v3194, %v2295
        %v3199 = vmax.f32 %v3195, %v2486
        %v3200 = vmax.f32 %v3196, %v2488
        %v3201 = vmax.f32 %v3197, %v2299
        %v3202 = vmax.f32 %v3198, %v2301
        %v3203 = vmax.f32 %v3199, %v2492
        %v3204 = vmax.f32 %v3200, %v2494
        %v3205 = vmax.f32 %v3201, %v2303
        %v3206 = vmax.f32 %v3202, %v2305
        %v3207 = vmax.f32 %v3203, %v2496
        %v3208 = vmax.f32 %v3204, %v2498
        %v3209 = vmax.f32 %v3205, %v2309
        %v3210 = vmax.f32 %v3206, %v2311
        %v3211 = vmax.f32 %v3207, %v2502
        %v3212 = vmax.f32 %v3208, %v2504
        %v3213 = vmax.f32 %v3209, %v2313
        %v3214 = vmax.f32 %v3210, %v2315
        %v3215 = vmax.f32 %v3211, %v2506
        %v3216 = vmax.f32 %v3212, %v2508
        %v3217 = vmax.f32 %v3213, %v2319
        %v3218 = vmax.f32 %v3214, %v2321
        %v3219 = vmax.f32 %v3215, %v2512
        %v3220 = vmax.f32 %v3216, %v2514
        %v3221 = vmax.f32 %v3217, %v2323
        %v3222 = vmax.f32 %v3218, %v2325
        %v3223 = vmax.f32 %v3219, %v2516
        %v3224 = vmax.f32 %v3220, %v2518
        %v3225 = vmax.f32 %v3221, %v2329
        %v3226 = vmax.f32 %v3222, %v2331
        %v3227 = vmax.f32 %v3223, %v2522
        %v3228 = vmax.f32 %v3224, %v2524
        %v3229 = vmax.f32 %v3225, %v2333
        %v3230 = vmax.f32 %v3226, %v2335
        %v3231 = vmax.f32 %v3227, %v2526
        %v3232 = vmax.f32 %v3228, %v2528
        %v3233 = vmax.f32 %v3229, %v2339
        %v3234 = vmax.f32 %v3230, %v2341
        %v3235 = vmax.f32 %v3231, %v2532
        %v3236 = vmax.f32 %v3232, %v2534
        %v3237 = vmax.f32 %v3233, %v2343
        %v3238 = vmax.f32 %v3234, %v2345
        %v3239 = vmax.f32 %v3235, %v2536
        %v3240 = vmax.f32 %v3236, %v2538
        %v3241 = vmax.f32 %v3237, %v2349
        %v3242 = vmax.f32 %v3238, %v2351
        %v3243 = vmax.f32 %v3239, %v2542
        %v3244 = vmax.f32 %v3240, %v2544
        %v3245 = vmax.f32 %v3241, %v2353
        %v3246 = vmax.f32 %v3242, %v2355
        %v3247 = vmax.f32 %v3243, %v2546
        %v3248 = vmax.f32 %v3244, %v2548
        %v3249 = vmax.f32 %v3245, %v2359
        %v3250 = vmax.f32 %v3246, %v2361
        %v3251 = vmax.f32 %v3247, %v2552
        %v3252 = vmax.f32 %v3248, %v2554
        %v3253 = vmax.f32 %v3249, %v2363
        %v3254 = vmax.f32 %v3250, %v2365
        %v3255 = vmax.f32 %v3251, %v2556
        %v3256 = vmax.f32 %v3252, %v2558
        %v3257 = vmax.f32 %v3253, %v2369
        %v3258 = vmax.f32 %v3254, %v2371
        %v3259 = vmax.f32 %v3255, %v2562
        %v3260 = vmax.f32 %v3256, %v2564
        %v3261 = vmax.f32 %v3257, %v2373
        %v3262 = vmax.f32 %v3258, %v2375
        %v3263 = vmax.f32 %v3259, %v2566
        %v3264 = vmax.f32 %v3260, %v2568
        %v3265 = vmax.f32 %v3261, %v2379
        %v3266 = vmax.f32 %v3262, %v2381
        %v3267 = vmax.f32 %v3263, %v2572
        %v3268 = vmax.f32 %v3264, %v2574
        %v3269 = vmax.f32 %v3265, %v2383
        %v3270 = vmax.f32 %v3266, %v2385
        %v3271 = vmax.f32 %v3267, %v2576
        %v3272 = vmax.f32 %v3268, %v2578
        %v3273 = vmax.f32 %v3269, %v2389
        %v3274 = vmax.f32 %v3270, %v2391
        %v3275 = vmax.f32 %v3271, %v2582
        %v3276 = vmax.f32 %v3272, %v2584
        %v3277 = vmax.f32 %v3273, %v2393
        %v3278 = vmax.f32 %v3274, %v2395
        %v3279 = vmax.f32 %v3275, %v2586
        %v3280 = vmax.f32 %v3276, %v2588
        %v3281 = vmax.f32 %v3277, %v2399
        %v3282 = vmax.f32 %v3278, %v2401
        %v3283 = vmax.f32 %v3279, %v2592
        %v3284 = vmax.f32 %v3280, %v2594
        %v3285 = vmax.f32 %v3281, %v2403
        %v3286 = vmax.f32 %v3282, %v2405
        %v3287 = vmax.f32 %v3283, %v2596
        %v3288 = vmax.f32 %v3284, %v2598
        %v3289 = vmax.f32 %v3285, %v3286
        %v3290 = vmax.f32 %v3287, %v3288
        %v3291 = vmax.f32 %v3289, %v3290
        %3292 = vmax.xlane.f32.xlu0 %v3291
        %v3293 = vpop.xlane.xlu0 %3292
        %v3294 = vrot.slane %v3293, 4
        %v3295 = vmax.f32 %v3293, %v3294
        %v3296 = vrot.slane %v3295, 2
        %v3297 = vmax.f32 %v3295, %v3296
        %v3298 = vrot.slane %v3297, 1
        %v3299 = vmax.f32 %v3297, %v3298
        %s3300 = vtos %v3299
        %s3301 = scalar_lea.vmem %s2984, 1 [#allocation8]
        %v3302 = vld [vmem:[%s3301] ss:$2 sm:$0xf]
        %v3303 = vstv %s3300
        %v3304 = vmax.f32 %v3302, %v3303
        %3305 = vst.msk [vmem:[%s3301] ss:$2 sm:$0xf] %vm1878, %v3304
        %s3306 = smul.u32 %s28, 2
        %s3307 = sadd.s32 %s3306, %s29
        %s3308 = smul.u32 32, %s3307
        %p3309 = scmp.lt.s32.totalorder %s3308, 127
        %s3310 = scalar_select %p3309, %s3308, 127
        %s3311 = smul.addr %s3310, 8
        %s3312 = scalar_lea.vmem %s4, %s3311
        %s3313 = sand.u32 %s167, 1
        %s3314 = scalar_lea.sflag [#allocation4], %s3313
        %s3315 = sand.u32 %s167, 1
        %s3316 = smul.addr %s3315, 16
        %s3317 = scalar_lea.vmem [#allocation8], %s3316
        // Predicated region
        $region53: #{tpu_custom_call.1} parent=35 // pred_check
          %p3318 = pneg %p151
        $region54: #{tpu_custom_call.1} parent=35 // pred_check_branch
          %3320 = sbr.rel (%p3318) target = $region56
        $region55: #{tpu_custom_call.1} parent=35 // pred_region
          %s3321 = smul.u32 %s28, 2
          %s3322 = sadd.s32 %s3321, %s29
          %s3323 = smul.u32 32, %s3322
        $region56: #{tpu_custom_call.1} parent=35 // pred_fallthru
          _
        // Predicated region
        $region57: #{tpu_custom_call.1} parent=35 // pred_check
          %p3324 = pneg %p177
        $region58: #{tpu_custom_call.1} parent=35 // pred_check_branch
          %3326 = sbr.rel (%p3324) target = $region60
        $region59: #{tpu_custom_call.1} parent=35 // pred_region
          %s3328 = ssub.s32 256, 256
          %3329 = vsyncadd %s3314, %s3328
          %s3330 = smul.addr %s28, 8
          %s3331 = smul.addr %s3330, 32
          %s3332 = scalar_lea.hbm %s5, %s3331
          %s3334 = sshll.u32 %s3317, 4
          %s3335 = int_to_ptr.vmem [resolvable:$true] %s3334
          %3337 = dma.vmem_to_hbm [thread:$0]  %s3335, 256, %s3332, %s3314
        $region60: #{tpu_custom_call.1} parent=35 // pred_fallthru
          _
      $region36: #{tpu_custom_call.1} parent=5 // pred_fallthru
        _
      %p3338 = scmp.le.s32.totalorder 2, %s19
      // Predicated region
      $region61: #{tpu_custom_call.1} parent=5 // pred_check
        %p3339 = pneg %p3338
      $region62: #{tpu_custom_call.1} parent=5 // pred_check_branch
        %3341 = sbr.rel (%p3339) target = $region64
      $region63: #{tpu_custom_call.1} parent=5 // pred_region
        %s3342 = ssub.s32 %s19, 2
        // Predicated region
        $region65: #{tpu_custom_call.1} parent=63 // pred_check
          %p3343 = pneg %p157
        $region66: #{tpu_custom_call.1} parent=63 // pred_check_branch
          %3345 = sbr.rel (%p3343) target = $region68
        $region67: #{tpu_custom_call.1} parent=63 // pred_region
          %s3346 = smul.u32 %s30, 2
          %s3347 = sadd.s32 %s3346, %s31
          %s3348 = smul.u32 32, %s3347
          %p3349 = scmp.lt.s32.totalorder %s3348, 127
          %s3350 = scalar_select %p3349, %s3348, 127
          %s3351 = smul.addr %s3350, 8
          %s3352 = scalar_lea.vmem %s4, %s3351
        $region68: #{tpu_custom_call.1} parent=63 // pred_fallthru
          _
        // Predicated region
        $region69: #{tpu_custom_call.1} parent=63 // pred_check
          %p3353 = pneg %p183
        $region70: #{tpu_custom_call.1} parent=63 // pred_check_branch
          %3355 = sbr.rel (%p3353) target = $region72
        $region71: #{tpu_custom_call.1} parent=63 // pred_region
          %s3356 = sand.u32 %s168, 1
          %s3357 = scalar_lea.sflag [#allocation4], %s3356
          %s3358 = sand.u32 %s168, 1
          %s3359 = smul.addr %s3358, 16
          %s3360 = scalar_lea.vmem [#allocation8], %s3359
          %3361 = dma.done %s3357, 256
        $region72: #{tpu_custom_call.1} parent=63 // pred_fallthru
          _
      $region64: #{tpu_custom_call.1} parent=5 // pred_fallthru
        _
    $region6: #{tpu_custom_call.1} parent=1 // loop_footer
      %s23 = sadd.s32 1, %s19
    $region7: #{tpu_custom_call.1} parent=1 // loop_footer_branch
      %18 = sbr.rel target = $region3
    $region8: #{tpu_custom_call.1} parent=1 // loop_exit
      _
    %3362 = vsyncpa [#allocation3], 1
    %s3363 = scalar_lea.sflag [#allocation3], 1
    %3364 = vsyncpa %s3363, 1
    %3365 = vsyncpa [#allocation6], 1
    %3366 = vsyncpa [#allocation4], 1
    %s3367 = scalar_lea.sflag [#allocation4], 1
    %3368 = vsyncpa %s3367, 1

</llo_original>
